<compile_context>
chip_gen: v7x
topology: tpu7x:2x2x1
jax: 0.10.0
libtpu: 0.0.40
codegen_flags: <defaults>
</compile_context>

<pallas_src>
import math

import jax
import jax.numpy as jnp
from jax import lax
from jax.experimental import pallas as pl
from jax.experimental.pallas import tpu as pltpu

VMEM_LIMIT = 32 * 1024 * 1024  # scoped-VMEM headroom (small shapes; raise as inputs grow)


# --------------------------------------------------------------------------
# Fused depth-stack MixerBlock kernel (grid = (depth,), activations resident)
# --------------------------------------------------------------------------

def fused_mixer_kernel(xr_ref, xi_ref, posr_ref, posi_ref,
                       wcr_ref, wci_ref, bcr_ref, bci_ref,
                       w1r_ref, w1i_ref, b1r_ref, b1i_ref,
                       w2r_ref, w2i_ref, b2r_ref, b2i_ref,
                       or_ref, oi_ref):
    """One grid step == one MixerBlock (plus the per-layer complex-position add).

    Per block:
      x += complex_position
      x = conv(seq_layernorm(x)) + x          # causal (tril-masked) Conv1d over T
      x = patch_ff(patch_layernorm(x)) + x    # two complex Linears, no activation
    """
    d = pl.program_id(0)
    B, T, D = xr_ref.shape
    n = float(B * T * D)
    eps = 1e-6

    # Depth 0: seed the resident activation state from the kernel inputs.
    @pl.when(d == 0)
    def _():
        or_ref[...] = xr_ref[...]
        oi_ref[...] = xi_ref[...]

    # x += complex_position (broadcast over batch)
    xr = or_ref[...] + posr_ref[...][None, :, :]
    xi = oi_ref[...] + posi_ref[...][None, :, :]

    def global_scale(zr, zi):
        # ComplexLayerNorm: polar(2*|z|/(E*sqrt(Var+eps)), arg z) == s * z with a
        # single GLOBAL scalar s (torch.mean / unbiased torch.var over ALL elems).
        # Single-pass stats: E[|z|] and E[|z|^2].
        sq = zr * zr + zi * zi
        mean = jnp.sum(jnp.sqrt(sq)) / n
        var = (jnp.sum(sq) - n * mean * mean) / (n - 1.0)   # torch.var (unbiased)
        return 2.0 / (mean * jnp.sqrt(var + eps))

    # ---- seq ComplexLayerNorm ----
    s1 = global_scale(xr, xi)
    nr = xr * s1
    ni = xi * s1

    # ---- causal sequence mixing: complex Conv1d(T, T, 1), tril mask in weight ----
    # 3-multiply complex product, bf16 operands, f32 accumulation, one batched
    # einsum (no per-batch Python loop of tiny matmuls).
    wr = wcr_ref[...]
    wi = wci_ref[...]
    wrb = jnp.broadcast_to(wr, (B, T, T)).astype(jnp.bfloat16)
    wib = jnp.broadcast_to(wi, (B, T, T)).astype(jnp.bfloat16)
    wsb = jnp.broadcast_to(wr + wi, (B, T, T)).astype(jnp.bfloat16)
    t1 = jnp.einsum('bts,bsd->btd', wrb, nr.astype(jnp.bfloat16),
                    preferred_element_type=jnp.float32)
    t2 = jnp.einsum('bts,bsd->btd', wib, ni.astype(jnp.bfloat16),
                    preferred_element_type=jnp.float32)
    t3 = jnp.einsum('bts,bsd->btd', wsb, (nr + ni).astype(jnp.bfloat16),
                    preferred_element_type=jnp.float32)
    x2r = (t1 - t2) + bcr_ref[...][None, :, :] + xr            # conv + residual
    x2i = (t3 - t1 - t2) + bci_ref[...][None, :, :] + xi

    # ---- patch ComplexLayerNorm ----
    s2 = global_scale(x2r, x2i)
    pr = (x2r * s2).reshape(B * T, D)
    pi = (x2i * s2).reshape(B * T, D)

    # ---- patch FeedForward: complex Linear(D, 4D) -> Linear(4D, D), no act ----
    dn = (((1,), (1,)), ((), ()))                              # x @ W^T

    def cplx_linear(ar, ai, wr_, wi_, br, bi):
        # Gauss 3-multiply complex matmul, bf16 operands, f32 accumulation.
        k1 = lax.dot_general(ar.astype(jnp.bfloat16), wr_.astype(jnp.bfloat16),
                             dn, preferred_element_type=jnp.float32)
        k2 = lax.dot_general(ai.astype(jnp.bfloat16), wi_.astype(jnp.bfloat16),
                             dn, preferred_element_type=jnp.float32)
        k3 = lax.dot_general((ar + ai).astype(jnp.bfloat16),
                             (wr_ + wi_).astype(jnp.bfloat16),
                             dn, preferred_element_type=jnp.float32)
        return k1 - k2 + br, k3 - k1 - k2 + bi

    # TODO(synk): at large D the 4*D*D complex FF weights should be K/N-tiled with
    # an accumulator grid axis to stay within v7x's 64 MiB VMEM; whole-resident per
    # depth step is fine at these shapes.
    hr, hi = cplx_linear(pr, pi, w1r_ref[...], w1i_ref[...],
                         b1r_ref[...], b1i_ref[...])
    fr, fi = cplx_linear(hr, hi, w2r_ref[...], w2i_ref[...],
                         b2r_ref[...], b2i_ref[...])

    or_ref[...] = fr.reshape(B, T, D) + x2r                    # + residual
    oi_ref[...] = fi.reshape(B, T, D) + x2i


def fused_mixer_blocks(xr, xi, pos_r, pos_i, st):
    B, T, D = xr.shape
    depth = st["wc_r"].shape[0]
    inner = st["w1_r"].shape[1]

    def resident(shape):                       # same block across the depth axis
        nd = len(shape)
        return pl.BlockSpec(shape, lambda d: (0,) * nd)

    def per_depth(shape):                      # one weight slice per depth step
        nd = len(shape)
        return pl.BlockSpec((None,) + shape, lambda d: (d,) + (0,) * nd)

    in_specs = [
        resident((B, T, D)), resident((B, T, D)),      # xr, xi
        resident((T, D)), resident((T, D)),            # complex_position
        per_depth((T, T)), per_depth((T, T)),          # conv weight
        per_depth((T, 1)), per_depth((T, 1)),          # conv bias
        per_depth((inner, D)), per_depth((inner, D)),  # Linear(D, 4D) weight
        per_depth((1, inner)), per_depth((1, inner)),  # Linear(D, 4D) bias
        per_depth((D, inner)), per_depth((D, inner)),  # Linear(4D, D) weight
        per_depth((1, D)), per_depth((1, D)),          # Linear(4D, D) bias
    ]
    # NOTE: the depth axis is sequential ("arbitrary") because the activation is
    # the carried state; the global (whole-tensor) LayerNorm statistic couples all
    # batches, so there is no clean batch-parallel axis for this kernel.
    return pl.pallas_call(
        fused_mixer_kernel,
        grid=(depth,),
        out_shape=(jax.ShapeDtypeStruct((B, T, D), jnp.float32),
                   jax.ShapeDtypeStruct((B, T, D), jnp.float32)),
        in_specs=in_specs,
        out_specs=(resident((B, T, D)), resident((B, T, D))),
        compiler_params=pltpu.CompilerParams(
            dimension_semantics=("arbitrary",),
            vmem_limit_bytes=VMEM_LIMIT),
    )(xr, xi, pos_r, pos_i,
      st["wc_r"], st["wc_i"], st["bc_r"], st["bc_i"],
      st["w1_r"], st["w1_i"], st["b1_r"], st["b1_i"],
      st["w2_r"], st["w2_i"], st["b2_r"], st["b2_i"])


# --------------------------------------------------------------------------
# LM head: complex Linear(dim, n_vocab, bias=False), keep real part only
# --------------------------------------------------------------------------

def lm_head_kernel(xr_ref, xi_ref, wr_ref, wi_ref, out_ref):
    B, T, D = xr_ref.shape
    xr = xr_ref[...].reshape(B * T, D).astype(jnp.bfloat16)
    xi = xi_ref[...].reshape(B * T, D).astype(jnp.bfloat16)
    dn = (((1,), (1,)), ((), ()))
    # real part of (xr + i xi)(Wr + i Wi)^T needs only 2 matmuls (already minimal).
    real = (lax.dot_general(xr, wr_ref[...].astype(jnp.bfloat16), dn,
                            preferred_element_type=jnp.float32)
            - lax.dot_general(xi, wi_ref[...].astype(jnp.bfloat16), dn,
                              preferred_element_type=jnp.float32))
    out_ref[...] = real.reshape(B, T, -1)


def lm_head(xr, xi, w_r, w_i):
    B, T, D = xr.shape
    V = w_r.shape[0]
    # lane-dense vocab tiles; 256-wide preferred for the 2x256 MXU on v6e/v7x.
    tv = 256 if V % 256 == 0 else (128 if V % 128 == 0 else V)
    # TODO(synk): for very large V, fuse the CE logsumexp as an online reduction
    # over these same vocab tiles instead of materializing the full logits slab.
    return pl.pallas_call(
        lm_head_kernel,
        grid=(V // tv,),
        out_shape=jax.ShapeDtypeStruct((B, T, V), jnp.float32),
        in_specs=[pl.BlockSpec((B, T, D), lambda v: (0, 0, 0)),
                  pl.BlockSpec((B, T, D), lambda v: (0, 0, 0)),
                  pl.BlockSpec((tv, D), lambda v: (v, 0)),
                  pl.BlockSpec((tv, D), lambda v: (v, 0))],
        out_specs=pl.BlockSpec((B, T, tv), lambda v: (0, 0, v)),
        compiler_params=pltpu.CompilerParams(
            dimension_semantics=("parallel",),     # engages the 2nd TC on v7x
            vmem_limit_bytes=VMEM_LIMIT),
    )(xr, xi, w_r, w_i)


# --------------------------------------------------------------------------
# Cross-entropy (mean) on shifted positions — last timestep masked in-kernel
# --------------------------------------------------------------------------

def ce_kernel(logits_ref, labels_ref, loss_ref):
    logits = logits_ref[...]                     # (B, T, V) f32 (full, unsliced)
    labels = labels_ref[...]                     # (B, T) int32, pre-shifted; col T-1 is dummy
    B, T, V = logits.shape
    m = jnp.max(logits, axis=-1, keepdims=True)
    lse = jnp.log(jnp.sum(jnp.exp(logits - m), axis=-1, keepdims=True)) + m
    vocab = lax.broadcasted_iota(jnp.int32, (B, T, V), 2)
    onehot = (vocab == labels[:, :, None]).astype(jnp.float32)
    correct = jnp.sum(logits * onehot, axis=-1, keepdims=True)
    tpos = lax.broadcasted_iota(jnp.int32, (B, T, 1), 1)
    valid = (tpos < (T - 1)).astype(jnp.float32)             # skip last position
    loss_ref[0, 0] = jnp.sum((lse - correct) * valid) / float(B * (T - 1))


def cross_entropy(logits, shifted_labels):
    loss = pl.pallas_call(
        ce_kernel,
        out_shape=jax.ShapeDtypeStruct((1, 1), jnp.float32),
        in_specs=[pl.BlockSpec(memory_space=pltpu.MemorySpace.VMEM),
                  pl.BlockSpec(memory_space=pltpu.MemorySpace.VMEM)],
        out_specs=pl.BlockSpec(memory_space=pltpu.MemorySpace.SMEM),
        compiler_params=pltpu.CompilerParams(vmem_limit_bytes=VMEM_LIMIT),
    )(logits, shifted_labels)
    return loss[0, 0]


# --------------------------------------------------------------------------
# Forward
# --------------------------------------------------------------------------

def language_mixer_forward(params, input_ids, labels):
    # TODO(synk): nn.Embedding lookup is a data-dependent gather; kept in plain JAX.
    emb = params["wte"][input_ids]                      # (B, T, D) float32
    xr = emb
    xi = jnp.zeros_like(emb)                            # .to(torch.cfloat): imag = 0

    xr, xi = fused_mixer_blocks(xr, xi, params["pos_r"], params["pos_i"],
                                params["stacked"])

    logits = lm_head(xr, xi, params["lm_r"], params["lm_i"])    # (B, T, V), real part

    B, T, V = logits.shape
    lab = labels.reshape(B, -1).astype(jnp.int32)
    # Shift only the tiny label array host-side; the big logits slab is NOT sliced.
    shifted = jnp.concatenate([lab[:, 1:], jnp.zeros((B, 1), jnp.int32)], axis=1)
    loss = cross_entropy(logits, shifted)
    output = jnp.transpose(logits, (0, 2, 1))           # torch returns (b, e, t)
    return loss, output


# --------------------------------------------------------------------------
# Deterministic parameter init (synthetic; shapes follow the module's __init__)
# --------------------------------------------------------------------------

def init_params(key, n_vocab, dim, length, depth, expansion=4):
    inner = dim * expansion
    keys = iter(jax.random.split(key, 64))

    def nrm(shape, scale=0.02):
        return scale * jax.random.normal(next(keys), shape, dtype=jnp.float32)

    # mixer_mask: tril baked into the conv weight (inference-time semantics).
    tril = jnp.tril(jnp.ones((length, length), jnp.float32))[None]

    stacked = dict(
        wc_r=nrm((depth, length, length)) * tril,   # complex Conv1d(T, T, 1) weight
        wc_i=nrm((depth, length, length)) * tril,
        bc_r=nrm((depth, length, 1)),
        bc_i=nrm((depth, length, 1)),
        w1_r=nrm((depth, inner, dim)), w1_i=nrm((depth, inner, dim)),  # Linear(dim, 4*dim)
        b1_r=nrm((depth, 1, inner)),   b1_i=nrm((depth, 1, inner)),
        w2_r=nrm((depth, dim, inner)), w2_i=nrm((depth, dim, inner)),  # Linear(4*dim, dim)
        b2_r=nrm((depth, 1, dim)),     b2_i=nrm((depth, 1, dim)),
        # NOTE: a_layer / b_layer exist in the module but are unused in forward.
    )

    # complex_position[i, :] = exp(2*pi*i/length * 1j)
    i = jnp.arange(length, dtype=jnp.float32)
    ang = 2.0 * math.pi * i / length
    pos_r = jnp.broadcast_to(jnp.cos(ang)[:, None], (length, dim)).astype(jnp.float32)
    pos_i = jnp.broadcast_to(jnp.sin(ang)[:, None], (length, dim)).astype(jnp.float32)

    return dict(
        wte=nrm((n_vocab, dim), scale=1.0),
        stacked=stacked,
        lm_r=nrm((n_vocab, dim)),
        lm_i=nrm((n_vocab, dim)),
        pos_r=pos_r,
        pos_i=pos_i,
    )


# --------------------------------------------------------------------------
# Main
# --------------------------------------------------------------------------

if __name__ == "__main__":
    B, T, D, V, DEPTH = 2, 8, 128, 512, 2   # small shapes consistent with the module

    key = jax.random.PRNGKey(0)
    kp, kids, klab = jax.random.split(key, 3)
    params = init_params(kp, n_vocab=V, dim=D, length=T, depth=DEPTH)

    input_ids = jax.random.randint(kids, (B, T), 0, V, dtype=jnp.int32)
    labels = jax.random.randint(klab, (B, 1, T), 0, V, dtype=jnp.int32)  # 'b p t'

    loss, output = jax.jit(language_mixer_forward)(params, input_ids, labels)
    jax.block_until_ready((loss, output))

    assert output.shape == (B, V, T)
    assert bool(jnp.isfinite(loss))
    print("KERNEL_OK")
</pallas_src>

<mosaic_0001>
module attributes {stable_mosaic.version = 11 : i64} {
  func.func @lm_head_kernel(%arg0: i32, %arg1: memref<2x8x128xf32, #tpu.memory_space<vmem>>, %arg2: memref<2x8x128xf32, #tpu.memory_space<vmem>>, %arg3: memref<256x128xf32, #tpu.memory_space<vmem>>, %arg4: memref<256x128xf32, #tpu.memory_space<vmem>>, %arg5: memref<2x8x256xf32, #tpu.memory_space<vmem>>) attributes {dimension_semantics = [#tpu.dimension_semantics<parallel>], iteration_bounds = array<i64: 2>, scalar_prefetch = 0 : i64, scratch_operands = 0 : i64, tpu.core_type = #tpu.core_type<tc>, window_params = [{pipeline_mode = #tpu.pipeline_mode<synchronous>, transform_indices = @transform_0, window_bounds = array<i64: 2, 8, 128>}, {pipeline_mode = #tpu.pipeline_mode<synchronous>, transform_indices = @transform_1, window_bounds = array<i64: 2, 8, 128>}, {transform_indices = @transform_2, window_bounds = array<i64: 256, 128>}, {transform_indices = @transform_3, window_bounds = array<i64: 256, 128>}, {transform_indices = @transform_4, window_bounds = array<i64: 2, 8, 256>}]} {
    %c0 = arith.constant 0 : index
    %c0_0 = arith.constant 0 : index
    %c0_1 = arith.constant 0 : index
    %0 = vector.load %arg1[%c0, %c0_0, %c0_1] : memref<2x8x128xf32, #tpu.memory_space<vmem>>, vector<2x8x128xf32>
    %1 = vector.shape_cast %0 : vector<2x8x128xf32> to vector<16x128xf32>
    %2 = arith.truncf %1 : vector<16x128xf32> to vector<16x128xbf16>
    %c0_2 = arith.constant 0 : index
    %c0_3 = arith.constant 0 : index
    %c0_4 = arith.constant 0 : index
    %3 = vector.load %arg2[%c0_2, %c0_3, %c0_4] : memref<2x8x128xf32, #tpu.memory_space<vmem>>, vector<2x8x128xf32>
    %4 = vector.shape_cast %3 : vector<2x8x128xf32> to vector<16x128xf32>
    %5 = arith.truncf %4 : vector<16x128xf32> to vector<16x128xbf16>
    %c0_5 = arith.constant 0 : index
    %c0_6 = arith.constant 0 : index
    %6 = vector.load %arg3[%c0_5, %c0_6] : memref<256x128xf32, #tpu.memory_space<vmem>>, vector<256x128xf32>
    %7 = arith.truncf %6 : vector<256x128xf32> to vector<256x128xbf16>
    %cst = arith.constant dense<0.000000e+00> : vector<16x256xf32>
    %8 = tpu.matmul %2, %7, %cst {dimension_numbers = #tpu.dot_dimension_numbers<[1], [1], [0], [0], [0, 0, 1, 0], [], []>} : vector<16x128xbf16>, vector<256x128xbf16>, vector<16x256xf32> -> vector<16x256xf32>
    %c0_7 = arith.constant 0 : index
    %c0_8 = arith.constant 0 : index
    %9 = vector.load %arg4[%c0_7, %c0_8] : memref<256x128xf32, #tpu.memory_space<vmem>>, vector<256x128xf32>
    %10 = arith.truncf %9 : vector<256x128xf32> to vector<256x128xbf16>
    %cst_9 = arith.constant dense<0.000000e+00> : vector<16x256xf32>
    %11 = tpu.matmul %5, %10, %cst_9 {dimension_numbers = #tpu.dot_dimension_numbers<[1], [1], [0], [0], [0, 0, 1, 0], [], []>} : vector<16x128xbf16>, vector<256x128xbf16>, vector<16x256xf32> -> vector<16x256xf32>
    %12 = arith.subf %8, %11 : vector<16x256xf32>
    %13 = vector.shape_cast %12 : vector<16x256xf32> to vector<2x8x256xf32>
    %c0_10 = arith.constant 0 : index
    %c0_11 = arith.constant 0 : index
    %c0_12 = arith.constant 0 : index
    %14 = vector.load %arg5[%c0_10, %c0_11, %c0_12] : memref<2x8x256xf32, #tpu.memory_space<vmem>>, vector<2x8x256xf32>
    tpu.vector_store %arg5[%c0_10, %c0_11, %c0_12], %13 {strides = array<i32>} : memref<2x8x256xf32, #tpu.memory_space<vmem>>, vector<2x8x256xf32>,
    return
  }
  func.func @transform_0(%arg0: i32) -> (i32, i32, i32) {
    %c0_i32 = arith.constant 0 : i32
    %c0_i32_0 = arith.constant 0 : i32
    %c0_i32_1 = arith.constant 0 : i32
    %c0_i32_2 = arith.constant 0 : i32
    return %c0_i32, %c0_i32_0, %c0_i32_1 : i32, i32, i32
  }
  func.func @transform_1(%arg0: i32) -> (i32, i32, i32) {
    %c0_i32 = arith.constant 0 : i32
    %c0_i32_0 = arith.constant 0 : i32
    %c0_i32_1 = arith.constant 0 : i32
    %c0_i32_2 = arith.constant 0 : i32
    return %c0_i32, %c0_i32_0, %c0_i32_1 : i32, i32, i32
  }
  func.func @transform_2(%arg0: i32) -> (i32, i32) {
    %c0_i32 = arith.constant 0 : i32
    %c0_i32_0 = arith.constant 0 : i32
    return %arg0, %c0_i32 : i32, i32
  }
  func.func @transform_3(%arg0: i32) -> (i32, i32) {
    %c0_i32 = arith.constant 0 : i32
    %c0_i32_0 = arith.constant 0 : i32
    return %arg0, %c0_i32 : i32, i32
  }
  func.func @transform_4(%arg0: i32) -> (i32, i32, i32) {
    %c0_i32 = arith.constant 0 : i32
    %c0_i32_0 = arith.constant 0 : i32
    %c0_i32_1 = arith.constant 0 : i32
    return %c0_i32, %c0_i32_0, %arg0 : i32, i32, i32
  }
}

module attributes {stable_mosaic.version = 11 : i64} {
  func.func @fused_mixer_kernel(%arg0: i32, %arg1: memref<2x8x128xf32, #tpu.memory_space<vmem>>, %arg2: memref<2x8x128xf32, #tpu.memory_space<vmem>>, %arg3: memref<8x128xf32, #tpu.memory_space<vmem>>, %arg4: memref<8x128xf32, #tpu.memory_space<vmem>>, %arg5: memref<1x8x8xf32, #tpu.memory_space<vmem>>, %arg6: memref<1x8x8xf32, #tpu.memory_space<vmem>>, %arg7: memref<1x8x1xf32, #tpu.memory_space<vmem>>, %arg8: memref<1x8x1xf32, #tpu.memory_space<vmem>>, %arg9: memref<1x512x128xf32, #tpu.memory_space<vmem>>, %arg10: memref<1x512x128xf32, #tpu.memory_space<vmem>>, %arg11: memref<1x1x512xf32, #tpu.memory_space<vmem>>, %arg12: memref<1x1x512xf32, #tpu.memory_space<vmem>>, %arg13: memref<1x128x512xf32, #tpu.memory_space<vmem>>, %arg14: memref<1x128x512xf32, #tpu.memory_space<vmem>>, %arg15: memref<1x1x128xf32, #tpu.memory_space<vmem>>, %arg16: memref<1x1x128xf32, #tpu.memory_space<vmem>>, %arg17: memref<2x8x128xf32, #tpu.memory_space<vmem>>, %arg18: memref<2x8x128xf32, #tpu.memory_space<vmem>>) attributes {dimension_semantics = [#tpu.dimension_semantics<arbitrary>], iteration_bounds = array<i64: 2>, scalar_prefetch = 0 : i64, scratch_operands = 0 : i64, tpu.core_type = #tpu.core_type<tc>, window_params = [{pipeline_mode = #tpu.pipeline_mode<synchronous>, transform_indices = @transform_0, window_bounds = array<i64: 2, 8, 128>}, {pipeline_mode = #tpu.pipeline_mode<synchronous>, transform_indices = @transform_1, window_bounds = array<i64: 2, 8, 128>}, {pipeline_mode = #tpu.pipeline_mode<synchronous>, transform_indices = @transform_2, window_bounds = array<i64: 8, 128>}, {pipeline_mode = #tpu.pipeline_mode<synchronous>, transform_indices = @transform_3, window_bounds = array<i64: 8, 128>}, {transform_indices = @transform_4, window_bounds = array<i64: 1, 8, 8>}, {transform_indices = @transform_5, window_bounds = array<i64: 1, 8, 8>}, {transform_indices = @transform_6, window_bounds = array<i64: 1, 8, 1>}, {transform_indices = @transform_7, window_bounds = array<i64: 1, 8, 1>}, {transform_indices = @transform_8, window_bounds = array<i64: 1, 512, 128>}, {transform_indices = @transform_9, window_bounds = array<i64: 1, 512, 128>}, {transform_indices = @transform_10, window_bounds = array<i64: 1, 1, 512>}, {transform_indices = @transform_11, window_bounds = array<i64: 1, 1, 512>}, {transform_indices = @transform_12, window_bounds = array<i64: 1, 128, 512>}, {transform_indices = @transform_13, window_bounds = array<i64: 1, 128, 512>}, {transform_indices = @transform_14, window_bounds = array<i64: 1, 1, 128>}, {transform_indices = @transform_15, window_bounds = array<i64: 1, 1, 128>}, {pipeline_mode = #tpu.pipeline_mode<synchronous>, transform_indices = @transform_16, window_bounds = array<i64: 2, 8, 128>}, {pipeline_mode = #tpu.pipeline_mode<synchronous>, transform_indices = @transform_17, window_bounds = array<i64: 2, 8, 128>}]} {
    %c0_i32 = arith.constant 0 : i32
    %0 = arith.cmpi eq, %arg0, %c0_i32 : i32
    %1 = arith.extui %0 : i1 to i32
    %c0_i32_0 = arith.constant 0 : i32
    %2 = arith.cmpi ne, %1, %c0_i32_0 : i32
    scf.if %2 {
      %c0_74 = arith.constant 0 : index
      %c0_75 = arith.constant 0 : index
      %c0_76 = arith.constant 0 : index
      %159 = vector.load %arg1[%c0_74, %c0_75, %c0_76] : memref<2x8x128xf32, #tpu.memory_space<vmem>>, vector<2x8x128xf32>
      %c0_77 = arith.constant 0 : index
      %c0_78 = arith.constant 0 : index
      %c0_79 = arith.constant 0 : index
      %160 = vector.load %arg17[%c0_77, %c0_78, %c0_79] : memref<2x8x128xf32, #tpu.memory_space<vmem>>, vector<2x8x128xf32>
      tpu.vector_store %arg17[%c0_77, %c0_78, %c0_79], %159 {strides = array<i32>} : memref<2x8x128xf32, #tpu.memory_space<vmem>>, vector<2x8x128xf32>,
      %c0_80 = arith.constant 0 : index
      %c0_81 = arith.constant 0 : index
      %c0_82 = arith.constant 0 : index
      %161 = vector.load %arg2[%c0_80, %c0_81, %c0_82] : memref<2x8x128xf32, #tpu.memory_space<vmem>>, vector<2x8x128xf32>
      %c0_83 = arith.constant 0 : index
      %c0_84 = arith.constant 0 : index
      %c0_85 = arith.constant 0 : index
      %162 = vector.load %arg18[%c0_83, %c0_84, %c0_85] : memref<2x8x128xf32, #tpu.memory_space<vmem>>, vector<2x8x128xf32>
      tpu.vector_store %arg18[%c0_83, %c0_84, %c0_85], %161 {strides = array<i32>} : memref<2x8x128xf32, #tpu.memory_space<vmem>>, vector<2x8x128xf32>,
    } else {
    }
    %c0 = arith.constant 0 : index
    %c0_1 = arith.constant 0 : index
    %c0_2 = arith.constant 0 : index
    %3 = vector.load %arg17[%c0, %c0_1, %c0_2] : memref<2x8x128xf32, #tpu.memory_space<vmem>>, vector<2x8x128xf32>
    %c0_3 = arith.constant 0 : index
    %c0_4 = arith.constant 0 : index
    %4 = vector.load %arg3[%c0_3, %c0_4] : memref<8x128xf32, #tpu.memory_space<vmem>>, vector<8x128xf32>
    %5 = vector.shape_cast %4 : vector<8x128xf32> to vector<1x8x128xf32>
    %6 = vector.broadcast %5 : vector<1x8x128xf32> to vector<2x8x128xf32>
    %7 = arith.addf %3, %6 : vector<2x8x128xf32>
    %c0_5 = arith.constant 0 : index
    %c0_6 = arith.constant 0 : index
    %c0_7 = arith.constant 0 : index
    %8 = vector.load %arg18[%c0_5, %c0_6, %c0_7] : memref<2x8x128xf32, #tpu.memory_space<vmem>>, vector<2x8x128xf32>
    %c0_8 = arith.constant 0 : index
    %c0_9 = arith.constant 0 : index
    %9 = vector.load %arg4[%c0_8, %c0_9] : memref<8x128xf32, #tpu.memory_space<vmem>>, vector<8x128xf32>
    %10 = vector.shape_cast %9 : vector<8x128xf32> to vector<1x8x128xf32>
    %11 = vector.broadcast %10 : vector<1x8x128xf32> to vector<2x8x128xf32>
    %12 = arith.addf %8, %11 : vector<2x8x128xf32>
    %13 = arith.mulf %7, %7 : vector<2x8x128xf32>
    %14 = arith.mulf %12, %12 : vector<2x8x128xf32>
    %15 = arith.addf %13, %14 : vector<2x8x128xf32>
    %16 = math.sqrt %15 : vector<2x8x128xf32>
    %17 = vector.shape_cast %16 : vector<2x8x128xf32> to vector<1x2x8x128xf32>
    %cst = arith.constant dense<0.000000e+00> : vector<1xf32>
    %18 = vector.multi_reduction <add>, %17, %cst [1, 2, 3] : vector<1x2x8x128xf32> to vector<1xf32>
    %19 = vector.shape_cast %18 : vector<1xf32> to vector<1x1x1x1xf32>
    %20 = vector.extract %19[0, 0, 0, 0] : f32 from vector<1x1x1x1xf32>
    %cst_10 = arith.constant 2.048000e+03 : f32
    %21 = arith.divf %20, %cst_10 : f32
    %22 = vector.shape_cast %15 : vector<2x8x128xf32> to vector<1x2x8x128xf32>
    %cst_11 = arith.constant dense<0.000000e+00> : vector<1xf32>
    %23 = vector.multi_reduction <add>, %22, %cst_11 [1, 2, 3] : vector<1x2x8x128xf32> to vector<1xf32>
    %24 = vector.shape_cast %23 : vector<1xf32> to vector<1x1x1x1xf32>
    %25 = vector.extract %24[0, 0, 0, 0] : f32 from vector<1x1x1x1xf32>
    %cst_12 = arith.constant 2.048000e+03 : f32
    %26 = arith.mulf %cst_12, %21 : f32
    %27 = arith.mulf %26, %21 : f32
    %28 = arith.subf %25, %27 : f32
    %cst_13 = arith.constant 2.047000e+03 : f32
    %29 = arith.divf %28, %cst_13 : f32
    %cst_14 = arith.constant 9.99999997E-7 : f32
    %30 = arith.addf %29, %cst_14 : f32
    %31 = math.sqrt %30 : f32
    %32 = arith.mulf %21, %31 : f32
    %cst_15 = arith.constant 2.000000e+00 : f32
    %33 = arith.divf %cst_15, %32 : f32
    %34 = vector.broadcast %33 : f32 to vector<2x8x128xf32>
    %35 = arith.mulf %7, %34 : vector<2x8x128xf32>
    %36 = vector.broadcast %33 : f32 to vector<2x8x128xf32>
    %37 = arith.mulf %12, %36 : vector<2x8x128xf32>
    %c0_16 = arith.constant 0 : index
    %c0_17 = arith.constant 0 : index
    %c0_18 = arith.constant 0 : index
    %38 = vector.load %arg5[%c0_16, %c0_17, %c0_18] : memref<1x8x8xf32, #tpu.memory_space<vmem>>, vector<1x8x8xf32>
    %39 = vector.shape_cast %38 : vector<1x8x8xf32> to vector<8x8xf32>
    %c0_19 = arith.constant 0 : index
    %c0_20 = arith.constant 0 : index
    %c0_21 = arith.constant 0 : index
    %40 = vector.load %arg6[%c0_19, %c0_20, %c0_21] : memref<1x8x8xf32, #tpu.memory_space<vmem>>, vector<1x8x8xf32>
    %41 = vector.shape_cast %40 : vector<1x8x8xf32> to vector<8x8xf32>
    %42 = vector.shape_cast %39 : vector<8x8xf32> to vector<1x8x8xf32>
    %43 = vector.broadcast %42 : vector<1x8x8xf32> to vector<2x8x8xf32>
    %44 = arith.truncf %43 : vector<2x8x8xf32> to vector<2x8x8xbf16>
    %45 = vector.shape_cast %41 : vector<8x8xf32> to vector<1x8x8xf32>
    %46 = vector.broadcast %45 : vector<1x8x8xf32> to vector<2x8x8xf32>
    %47 = arith.truncf %46 : vector<2x8x8xf32> to vector<2x8x8xbf16>
    %48 = arith.addf %39, %41 : vector<8x8xf32>
    %49 = vector.shape_cast %48 : vector<8x8xf32> to vector<1x8x8xf32>
    %50 = vector.broadcast %49 : vector<1x8x8xf32> to vector<2x8x8xf32>
    %51 = arith.truncf %50 : vector<2x8x8xf32> to vector<2x8x8xbf16>
    %52 = arith.truncf %35 : vector<2x8x128xf32> to vector<2x8x128xbf16>
    "tpu.trace_start"() <{level = 10 : i32, message = "bts,bsd->btd"}> : () -> ()
    %cst_22 = arith.constant dense<0.000000e+00> : vector<2x8x128xf32>
    %53 = tpu.matmul %44, %52, %cst_22 {dimension_numbers = #tpu.dot_dimension_numbers<[2], [1], [1], [2], [0, 0, 0, 1, 1, 2], [0], [0]>} : vector<2x8x8xbf16>, vector<2x8x128xbf16>, vector<2x8x128xf32> -> vector<2x8x128xf32>
    "tpu.trace_stop"() : () -> ()
    %54 = arith.truncf %37 : vector<2x8x128xf32> to vector<2x8x128xbf16>
    "tpu.trace_start"() <{level = 10 : i32, message = "bts,bsd->btd"}> : () -> ()
    %cst_23 = arith.constant dense<0.000000e+00> : vector<2x8x128xf32>
    %55 = tpu.matmul %47, %54, %cst_23 {dimension_numbers = #tpu.dot_dimension_numbers<[2], [1], [1], [2], [0, 0, 0, 1, 1, 2], [0], [0]>} : vector<2x8x8xbf16>, vector<2x8x128xbf16>, vector<2x8x128xf32> -> vector<2x8x128xf32>
    "tpu.trace_stop"() : () -> ()
    %56 = arith.addf %35, %37 : vector<2x8x128xf32>
    %57 = arith.truncf %56 : vector<2x8x128xf32> to vector<2x8x128xbf16>
    "tpu.trace_start"() <{level = 10 : i32, message = "bts,bsd->btd"}> : () -> ()
    %cst_24 = arith.constant dense<0.000000e+00> : vector<2x8x128xf32>
    %58 = tpu.matmul %51, %57, %cst_24 {dimension_numbers = #tpu.dot_dimension_numbers<[2], [1], [1], [2], [0, 0, 0, 1, 1, 2], [0], [0]>} : vector<2x8x8xbf16>, vector<2x8x128xbf16>, vector<2x8x128xf32> -> vector<2x8x128xf32>
    "tpu.trace_stop"() : () -> ()
    %59 = arith.subf %53, %55 : vector<2x8x128xf32>
    %c0_25 = arith.constant 0 : index
    %c0_26 = arith.constant 0 : index
    %c0_27 = arith.constant 0 : index
    %60 = vector.load %arg7[%c0_25, %c0_26, %c0_27] : memref<1x8x1xf32, #tpu.memory_space<vmem>>, vector<1x8x1xf32>
    %61 = vector.shape_cast %60 : vector<1x8x1xf32> to vector<8x1xf32>
    %62 = vector.shape_cast %61 : vector<8x1xf32> to vector<1x8x1xf32>
    %63 = vector.broadcast %62 : vector<1x8x1xf32> to vector<2x8x128xf32>
    %64 = arith.addf %59, %63 : vector<2x8x128xf32>
    %65 = arith.addf %64, %7 : vector<2x8x128xf32>
    %66 = arith.subf %58, %53 : vector<2x8x128xf32>
    %67 = arith.subf %66, %55 : vector<2x8x128xf32>
    %c0_28 = arith.constant 0 : index
    %c0_29 = arith.constant 0 : index
    %c0_30 = arith.constant 0 : index
    %68 = vector.load %arg8[%c0_28, %c0_29, %c0_30] : memref<1x8x1xf32, #tpu.memory_space<vmem>>, vector<1x8x1xf32>
    %69 = vector.shape_cast %68 : vector<1x8x1xf32> to vector<8x1xf32>
    %70 = vector.shape_cast %69 : vector<8x1xf32> to vector<1x8x1xf32>
    %71 = vector.broadcast %70 : vector<1x8x1xf32> to vector<2x8x128xf32>
    %72 = arith.addf %67, %71 : vector<2x8x128xf32>
    %73 = arith.addf %72, %12 : vector<2x8x128xf32>
    %74 = arith.mulf %65, %65 : vector<2x8x128xf32>
    %75 = arith.mulf %73, %73 : vector<2x8x128xf32>
    %76 = arith.addf %74, %75 : vector<2x8x128xf32>
    %77 = math.sqrt %76 : vector<2x8x128xf32>
    %78 = vector.shape_cast %77 : vector<2x8x128xf32> to vector<1x2x8x128xf32>
    %cst_31 = arith.constant dense<0.000000e+00> : vector<1xf32>
    %79 = vector.multi_reduction <add>, %78, %cst_31 [1, 2, 3] : vector<1x2x8x128xf32> to vector<1xf32>
    %80 = vector.shape_cast %79 : vector<1xf32> to vector<1x1x1x1xf32>
    %81 = vector.extract %80[0, 0, 0, 0] : f32 from vector<1x1x1x1xf32>
    %cst_32 = arith.constant 2.048000e+03 : f32
    %82 = arith.divf %81, %cst_32 : f32
    %83 = vector.shape_cast %76 : vector<2x8x128xf32> to vector<1x2x8x128xf32>
    %cst_33 = arith.constant dense<0.000000e+00> : vector<1xf32>
    %84 = vector.multi_reduction <add>, %83, %cst_33 [1, 2, 3] : vector<1x2x8x128xf32> to vector<1xf32>
    %85 = vector.shape_cast %84 : vector<1xf32> to vector<1x1x1x1xf32>
    %86 = vector.extract %85[0, 0, 0, 0] : f32 from vector<1x1x1x1xf32>
    %cst_34 = arith.constant 2.048000e+03 : f32
    %87 = arith.mulf %cst_34, %82 : f32
    %88 = arith.mulf %87, %82 : f32
    %89 = arith.subf %86, %88 : f32
    %cst_35 = arith.constant 2.047000e+03 : f32
    %90 = arith.divf %89, %cst_35 : f32
    %cst_36 = arith.constant 9.99999997E-7 : f32
    %91 = arith.addf %90, %cst_36 : f32
    %92 = math.sqrt %91 : f32
    %93 = arith.mulf %82, %92 : f32
    %cst_37 = arith.constant 2.000000e+00 : f32
    %94 = arith.divf %cst_37, %93 : f32
    %95 = vector.broadcast %94 : f32 to vector<2x8x128xf32>
    %96 = arith.mulf %65, %95 : vector<2x8x128xf32>
    %97 = vector.shape_cast %96 : vector<2x8x128xf32> to vector<16x128xf32>
    %98 = vector.broadcast %94 : f32 to vector<2x8x128xf32>
    %99 = arith.mulf %73, %98 : vector<2x8x128xf32>
    %100 = vector.shape_cast %99 : vector<2x8x128xf32> to vector<16x128xf32>
    %c0_38 = arith.constant 0 : index
    %c0_39 = arith.constant 0 : index
    %c0_40 = arith.constant 0 : index
    %101 = vector.load %arg9[%c0_38, %c0_39, %c0_40] : memref<1x512x128xf32, #tpu.memory_space<vmem>>, vector<1x512x128xf32>
    %102 = vector.shape_cast %101 : vector<1x512x128xf32> to vector<512x128xf32>
    %c0_41 = arith.constant 0 : index
    %c0_42 = arith.constant 0 : index
    %c0_43 = arith.constant 0 : index
    %103 = vector.load %arg10[%c0_41, %c0_42, %c0_43] : memref<1x512x128xf32, #tpu.memory_space<vmem>>, vector<1x512x128xf32>
    %104 = vector.shape_cast %103 : vector<1x512x128xf32> to vector<512x128xf32>
    %c0_44 = arith.constant 0 : index
    %c0_45 = arith.constant 0 : index
    %c0_46 = arith.constant 0 : index
    %105 = vector.load %arg11[%c0_44, %c0_45, %c0_46] : memref<1x1x512xf32, #tpu.memory_space<vmem>>, vector<1x1x512xf32>
    %106 = vector.shape_cast %105 : vector<1x1x512xf32> to vector<1x512xf32>
    %c0_47 = arith.constant 0 : index
    %c0_48 = arith.constant 0 : index
    %c0_49 = arith.constant 0 : index
    %107 = vector.load %arg12[%c0_47, %c0_48, %c0_49] : memref<1x1x512xf32, #tpu.memory_space<vmem>>, vector<1x1x512xf32>
    %108 = vector.shape_cast %107 : vector<1x1x512xf32> to vector<1x512xf32>
    %109 = arith.truncf %97 : vector<16x128xf32> to vector<16x128xbf16>
    %110 = arith.truncf %102 : vector<512x128xf32> to vector<512x128xbf16>
    %cst_50 = arith.constant dense<0.000000e+00> : vector<16x512xf32>
    %111 = tpu.matmul %109, %110, %cst_50 {dimension_numbers = #tpu.dot_dimension_numbers<[1], [1], [0], [0], [0, 0, 1, 0], [], []>} : vector<16x128xbf16>, vector<512x128xbf16>, vector<16x512xf32> -> vector<16x512xf32>
    %112 = arith.truncf %100 : vector<16x128xf32> to vector<16x128xbf16>
    %113 = arith.truncf %104 : vector<512x128xf32> to vector<512x128xbf16>
    %cst_51 = arith.constant dense<0.000000e+00> : vector<16x512xf32>
    %114 = tpu.matmul %112, %113, %cst_51 {dimension_numbers = #tpu.dot_dimension_numbers<[1], [1], [0], [0], [0, 0, 1, 0], [], []>} : vector<16x128xbf16>, vector<512x128xbf16>, vector<16x512xf32> -> vector<16x512xf32>
    %115 = arith.addf %97, %100 : vector<16x128xf32>
    %116 = arith.truncf %115 : vector<16x128xf32> to vector<16x128xbf16>
    %117 = arith.addf %102, %104 : vector<512x128xf32>
    %118 = arith.truncf %117 : vector<512x128xf32> to vector<512x128xbf16>
    %cst_52 = arith.constant dense<0.000000e+00> : vector<16x512xf32>
    %119 = tpu.matmul %116, %118, %cst_52 {dimension_numbers = #tpu.dot_dimension_numbers<[1], [1], [0], [0], [0, 0, 1, 0], [], []>} : vector<16x128xbf16>, vector<512x128xbf16>, vector<16x512xf32> -> vector<16x512xf32>
    %120 = arith.subf %111, %114 : vector<16x512xf32>
    %121 = vector.broadcast %106 : vector<1x512xf32> to vector<16x512xf32>
    %122 = arith.addf %120, %121 : vector<16x512xf32>
    %123 = arith.subf %119, %111 : vector<16x512xf32>
    %124 = arith.subf %123, %114 : vector<16x512xf32>
    %125 = vector.broadcast %108 : vector<1x512xf32> to vector<16x512xf32>
    %126 = arith.addf %124, %125 : vector<16x512xf32>
    %c0_53 = arith.constant 0 : index
    %c0_54 = arith.constant 0 : index
    %c0_55 = arith.constant 0 : index
    %127 = vector.load %arg13[%c0_53, %c0_54, %c0_55] : memref<1x128x512xf32, #tpu.memory_space<vmem>>, vector<1x128x512xf32>
    %128 = vector.shape_cast %127 : vector<1x128x512xf32> to vector<128x512xf32>
    %c0_56 = arith.constant 0 : index
    %c0_57 = arith.constant 0 : index
    %c0_58 = arith.constant 0 : index
    %129 = vector.load %arg14[%c0_56, %c0_57, %c0_58] : memref<1x128x512xf32, #tpu.memory_space<vmem>>, vector<1x128x512xf32>
    %130 = vector.shape_cast %129 : vector<1x128x512xf32> to vector<128x512xf32>
    %c0_59 = arith.constant 0 : index
    %c0_60 = arith.constant 0 : index
    %c0_61 = arith.constant 0 : index
    %131 = vector.load %arg15[%c0_59, %c0_60, %c0_61] : memref<1x1x128xf32, #tpu.memory_space<vmem>>, vector<1x1x128xf32>
    %132 = vector.shape_cast %131 : vector<1x1x128xf32> to vector<1x128xf32>
    %c0_62 = arith.constant 0 : index
    %c0_63 = arith.constant 0 : index
    %c0_64 = arith.constant 0 : index
    %133 = vector.load %arg16[%c0_62, %c0_63, %c0_64] : memref<1x1x128xf32, #tpu.memory_space<vmem>>, vector<1x1x128xf32>
    %134 = vector.shape_cast %133 : vector<1x1x128xf32> to vector<1x128xf32>
    %135 = arith.truncf %122 : vector<16x512xf32> to vector<16x512xbf16>
    %136 = arith.truncf %128 : vector<128x512xf32> to vector<128x512xbf16>
    %cst_65 = arith.constant dense<0.000000e+00> : vector<16x128xf32>
    %137 = tpu.matmul %135, %136, %cst_65 {dimension_numbers = #tpu.dot_dimension_numbers<[1], [1], [0], [0], [0, 0, 1, 0], [], []>} : vector<16x512xbf16>, vector<128x512xbf16>, vector<16x128xf32> -> vector<16x128xf32>
    %138 = arith.truncf %126 : vector<16x512xf32> to vector<16x512xbf16>
    %139 = arith.truncf %130 : vector<128x512xf32> to vector<128x512xbf16>
    %cst_66 = arith.constant dense<0.000000e+00> : vector<16x128xf32>
    %140 = tpu.matmul %138, %139, %cst_66 {dimension_numbers = #tpu.dot_dimension_numbers<[1], [1], [0], [0], [0, 0, 1, 0], [], []>} : vector<16x512xbf16>, vector<128x512xbf16>, vector<16x128xf32> -> vector<16x128xf32>
    %141 = arith.addf %122, %126 : vector<16x512xf32>
    %142 = arith.truncf %141 : vector<16x512xf32> to vector<16x512xbf16>
    %143 = arith.addf %128, %130 : vector<128x512xf32>
    %144 = arith.truncf %143 : vector<128x512xf32> to vector<128x512xbf16>
    %cst_67 = arith.constant dense<0.000000e+00> : vector<16x128xf32>
    %145 = tpu.matmul %142, %144, %cst_67 {dimension_numbers = #tpu.dot_dimension_numbers<[1], [1], [0], [0], [0, 0, 1, 0], [], []>} : vector<16x512xbf16>, vector<128x512xbf16>, vector<16x128xf32> -> vector<16x128xf32>
    %146 = arith.subf %137, %140 : vector<16x128xf32>
    %147 = vector.broadcast %132 : vector<1x128xf32> to vector<16x128xf32>
    %148 = arith.addf %146, %147 : vector<16x128xf32>
    %149 = arith.subf %145, %137 : vector<16x128xf32>
    %150 = arith.subf %149, %140 : vector<16x128xf32>
    %151 = vector.broadcast %134 : vector<1x128xf32> to vector<16x128xf32>
    %152 = arith.addf %150, %151 : vector<16x128xf32>
    %153 = vector.shape_cast %148 : vector<16x128xf32> to vector<2x8x128xf32>
    %154 = arith.addf %153, %65 : vector<2x8x128xf32>
    %c0_68 = arith.constant 0 : index
    %c0_69 = arith.constant 0 : index
    %c0_70 = arith.constant 0 : index
    %155 = vector.load %arg17[%c0_68, %c0_69, %c0_70] : memref<2x8x128xf32, #tpu.memory_space<vmem>>, vector<2x8x128xf32>
    tpu.vector_store %arg17[%c0_68, %c0_69, %c0_70], %154 {strides = array<i32>} : memref<2x8x128xf32, #tpu.memory_space<vmem>>, vector<2x8x128xf32>,
    %156 = vector.shape_cast %152 : vector<16x128xf32> to vector<2x8x128xf32>
    %157 = arith.addf %156, %73 : vector<2x8x128xf32>
    %c0_71 = arith.constant 0 : index
    %c0_72 = arith.constant 0 : index
    %c0_73 = arith.constant 0 : index
    %158 = vector.load %arg18[%c0_71, %c0_72, %c0_73] : memref<2x8x128xf32, #tpu.memory_space<vmem>>, vector<2x8x128xf32>
    tpu.vector_store %arg18[%c0_71, %c0_72, %c0_73], %157 {strides = array<i32>} : memref<2x8x128xf32, #tpu.memory_space<vmem>>, vector<2x8x128xf32>,
    return
  }
  func.func @transform_0(%arg0: i32) -> (i32, i32, i32) {
    %c0_i32 = arith.constant 0 : i32
    %c0_i32_0 = arith.constant 0 : i32
    %c0_i32_1 = arith.constant 0 : i32
    %c0_i32_2 = arith.constant 0 : i32
    return %c0_i32, %c0_i32_0, %c0_i32_1 : i32, i32, i32
  }
  func.func @transform_1(%arg0: i32) -> (i32, i32, i32) {
    %c0_i32 = arith.constant 0 : i32
    %c0_i32_0 = arith.constant 0 : i32
    %c0_i32_1 = arith.constant 0 : i32
    %c0_i32_2 = arith.constant 0 : i32
    return %c0_i32, %c0_i32_0, %c0_i32_1 : i32, i32, i32
  }
  func.func @transform_2(%arg0: i32) -> (i32, i32) {
    %c0_i32 = arith.constant 0 : i32
    %c0_i32_0 = arith.constant 0 : i32
    %c0_i32_1 = arith.constant 0 : i32
    return %c0_i32, %c0_i32_0 : i32, i32
  }
  func.func @transform_3(%arg0: i32) -> (i32, i32) {
    %c0_i32 = arith.constant 0 : i32
    %c0_i32_0 = arith.constant 0 : i32
    %c0_i32_1 = arith.constant 0 : i32
    return %c0_i32, %c0_i32_0 : i32, i32
  }
  func.func @transform_4(%arg0: i32) -> (i32, i32, i32) {
    %c0_i32 = arith.constant 0 : i32
    %c0_i32_0 = arith.constant 0 : i32
    %c0_i32_1 = arith.constant 0 : i32
    return %arg0, %c0_i32, %c0_i32_0 : i32, i32, i32
  }
  func.func @transform_5(%arg0: i32) -> (i32, i32, i32) {
    %c0_i32 = arith.constant 0 : i32
    %c0_i32_0 = arith.constant 0 : i32
    %c0_i32_1 = arith.constant 0 : i32
    return %arg0, %c0_i32, %c0_i32_0 : i32, i32, i32
  }
  func.func @transform_6(%arg0: i32) -> (i32, i32, i32) {
    %c0_i32 = arith.constant 0 : i32
    %c0_i32_0 = arith.constant 0 : i32
    %c0_i32_1 = arith.constant 0 : i32
    return %arg0, %c0_i32, %c0_i32_0 : i32, i32, i32
  }
  func.func @transform_7(%arg0: i32) -> (i32, i32, i32) {
    %c0_i32 = arith.constant 0 : i32
    %c0_i32_0 = arith.constant 0 : i32
    %c0_i32_1 = arith.constant 0 : i32
    return %arg0, %c0_i32, %c0_i32_0 : i32, i32, i32
  }
  func.func @transform_8(%arg0: i32) -> (i32, i32, i32) {
    %c0_i32 = arith.constant 0 : i32
    %c0_i32_0 = arith.constant 0 : i32
    %c0_i32_1 = arith.constant 0 : i32
    return %arg0, %c0_i32, %c0_i32_0 : i32, i32, i32
  }
  func.func @transform_9(%arg0: i32) -> (i32, i32, i32) {
    %c0_i32 = arith.constant 0 : i32
    %c0_i32_0 = arith.constant 0 : i32
    %c0_i32_1 = arith.constant 0 : i32
    return %arg0, %c0_i32, %c0_i32_0 : i32, i32, i32
  }
  func.func @transform_10(%arg0: i32) -> (i32, i32, i32) {
    %c0_i32 = arith.constant 0 : i32
    %c0_i32_0 = arith.constant 0 : i32
    %c0_i32_1 = arith.constant 0 : i32
    return %arg0, %c0_i32, %c0_i32_0 : i32, i32, i32
  }
  func.func @transform_11(%arg0: i32) -> (i32, i32, i32) {
    %c0_i32 = arith.constant 0 : i32
    %c0_i32_0 = arith.constant 0 : i32
    %c0_i32_1 = arith.constant 0 : i32
    return %arg0, %c0_i32, %c0_i32_0 : i32, i32, i32
  }
  func.func @transform_12(%arg0: i32) -> (i32, i32, i32) {
    %c0_i32 = arith.constant 0 : i32
    %c0_i32_0 = arith.constant 0 : i32
    %c0_i32_1 = arith.constant 0 : i32
    return %arg0, %c0_i32, %c0_i32_0 : i32, i32, i32
  }
  func.func @transform_13(%arg0: i32) -> (i32, i32, i32) {
    %c0_i32 = arith.constant 0 : i32
    %c0_i32_0 = arith.constant 0 : i32
    %c0_i32_1 = arith.constant 0 : i32
    return %arg0, %c0_i32, %c0_i32_0 : i32, i32, i32
  }
  func.func @transform_14(%arg0: i32) -> (i32, i32, i32) {
    %c0_i32 = arith.constant 0 : i32
    %c0_i32_0 = arith.constant 0 : i32
    %c0_i32_1 = arith.constant 0 : i32
    return %arg0, %c0_i32, %c0_i32_0 : i32, i32, i32
  }
  func.func @transform_15(%arg0: i32) -> (i32, i32, i32) {
    %c0_i32 = arith.constant 0 : i32
    %c0_i32_0 = arith.constant 0 : i32
    %c0_i32_1 = arith.constant 0 : i32
    return %arg0, %c0_i32, %c0_i32_0 : i32, i32, i32
  }
  func.func @transform_16(%arg0: i32) -> (i32, i32, i32) {
    %c0_i32 = arith.constant 0 : i32
    %c0_i32_0 = arith.constant 0 : i32
    %c0_i32_1 = arith.constant 0 : i32
    %c0_i32_2 = arith.constant 0 : i32
    return %c0_i32, %c0_i32_0, %c0_i32_1 : i32, i32, i32
  }
  func.func @transform_17(%arg0: i32) -> (i32, i32, i32) {
    %c0_i32 = arith.constant 0 : i32
    %c0_i32_0 = arith.constant 0 : i32
    %c0_i32_1 = arith.constant 0 : i32
    %c0_i32_2 = arith.constant 0 : i32
    return %c0_i32, %c0_i32_0, %c0_i32_1 : i32, i32, i32
  }
}

module attributes {stable_mosaic.version = 11 : i64} {
  func.func @ce_kernel(%arg0: memref<2x8x512xf32, #tpu.memory_space<vmem>>, %arg1: memref<2x8xi32, #tpu.memory_space<vmem>>, %arg2: memref<1x1xf32, #tpu.memory_space<smem>>) attributes {dimension_semantics = [], scalar_prefetch = 0 : i64, scratch_operands = 0 : i64, tpu.core_type = #tpu.core_type<tc>} {
    %c0 = arith.constant 0 : index
    %c0_0 = arith.constant 0 : index
    %c0_1 = arith.constant 0 : index
    %0 = vector.load %arg0[%c0, %c0_0, %c0_1] : memref<2x8x512xf32, #tpu.memory_space<vmem>>, vector<2x8x512xf32>
    %c0_2 = arith.constant 0 : index
    %c0_3 = arith.constant 0 : index
    %1 = vector.load %arg1[%c0_2, %c0_3] : memref<2x8xi32, #tpu.memory_space<vmem>>, vector<2x8xi32>
    %cst = arith.constant dense<0xFF800000> : vector<2x8xf32>
    %2 = vector.multi_reduction <maximumf>, %0, %cst [2] : vector<2x8x512xf32> to vector<2x8xf32>
    %3 = vector.shape_cast %2 : vector<2x8xf32> to vector<2x8x1xf32>
    %4 = vector.broadcast %3 : vector<2x8x1xf32> to vector<2x8x512xf32>
    %5 = arith.subf %0, %4 : vector<2x8x512xf32>
    %6 = math.exp %5 : vector<2x8x512xf32>
    %cst_4 = arith.constant dense<0.000000e+00> : vector<2x8xf32>
    %7 = vector.multi_reduction <add>, %6, %cst_4 [2] : vector<2x8x512xf32> to vector<2x8xf32>
    %8 = vector.shape_cast %7 : vector<2x8xf32> to vector<2x8x1xf32>
    %9 = math.log %8 : vector<2x8x1xf32>
    %10 = arith.addf %9, %3 : vector<2x8x1xf32>
    %11 = tpu.iota {dimensions = array<i32: 2>} : vector<2x8x512xi32>
    %12 = vector.shape_cast %1 : vector<2x8xi32> to vector<2x8x1xi32>
    %13 = vector.broadcast %12 : vector<2x8x1xi32> to vector<2x8x512xi32>
    %14 = arith.cmpi eq, %11, %13 : vector<2x8x512xi32>
    %15 = arith.extui %14 : vector<2x8x512xi1> to vector<2x8x512xi32>
    %16 = arith.sitofp %15 : vector<2x8x512xi32> to vector<2x8x512xf32>
    %17 = arith.mulf %0, %16 : vector<2x8x512xf32>
    %cst_5 = arith.constant dense<0.000000e+00> : vector<2x8xf32>
    %18 = vector.multi_reduction <add>, %17, %cst_5 [2] : vector<2x8x512xf32> to vector<2x8xf32>
    %19 = vector.shape_cast %18 : vector<2x8xf32> to vector<2x8x1xf32>
    %20 = tpu.iota {dimensions = array<i32: 1>} : vector<2x8x1xi32>
    %c7_i32 = arith.constant 7 : i32
    %21 = vector.broadcast %c7_i32 : i32 to vector<2x8x1xi32>
    %22 = arith.cmpi slt, %20, %21 : vector<2x8x1xi32>
    %23 = arith.extui %22 : vector<2x8x1xi1> to vector<2x8x1xi32>
    %24 = arith.sitofp %23 : vector<2x8x1xi32> to vector<2x8x1xf32>
    %25 = arith.subf %10, %19 : vector<2x8x1xf32>
    %26 = arith.mulf %25, %24 : vector<2x8x1xf32>
    %27 = vector.shape_cast %26 : vector<2x8x1xf32> to vector<1x2x8x1xf32>
    %cst_6 = arith.constant dense<0.000000e+00> : vector<1xf32>
    %28 = vector.multi_reduction <add>, %27, %cst_6 [1, 2, 3] : vector<1x2x8x1xf32> to vector<1xf32>
    %29 = vector.shape_cast %28 : vector<1xf32> to vector<1x1x1x1xf32>
    %30 = vector.extract %29[0, 0, 0, 0] : f32 from vector<1x1x1x1xf32>
    %cst_7 = arith.constant 1.400000e+01 : f32
    %31 = arith.divf %30, %cst_7 : f32
    %c0_8 = arith.constant 0 : index
    %c0_9 = arith.constant 0 : index
    %32 = memref.load %arg2[%c0_8, %c0_9] : memref<1x1xf32, #tpu.memory_space<smem>>
    memref.store %31, %arg2[%c0_8, %c0_9] : memref<1x1xf32, #tpu.memory_space<smem>>
    return
  }
}

</mosaic_0001>

<llo_original>
// kernel: language_mixer_forward.4
$region0: #{language_mixer_forward.4}
  #allocation0 [shape = 'u32[]', space=smem, size = 0x4, offset = 0x4, fixed_abs, tag = 'smem constant byte address 0x4 - core index']
  #allocation1 [shape = 'u32[144,128]{1,0:T(1,128)}', space=vmem, size = 0x12000, scoped, tag = 'internal scratch']
  %s0 = inlined_call_operand.vmem [shape: f32[2,8,128], index: 0, kind: input, shape index: {}]
  %s1 = inlined_call_operand.vmem [shape: f32[2,8,128], index: 1, kind: input, shape index: {}]
  %s2 = inlined_call_operand.vmem [shape: f32[512,128], index: 2, kind: input, shape index: {}]
  %s3 = inlined_call_operand.vmem [shape: f32[512,128], index: 3, kind: input, shape index: {}]
  %s4 = inlined_call_operand.vmem [shape: f32[2,8,512], index: 4, kind: output, shape index: {}]
  %s5 = sld [smem:[#allocation0]]
  $region68: #{language_mixer_forward.4} parent=0
    _
  %s7 = ssub.s32 1, %s5
  %s8 = scalar_select 0, %s7, %s5
  $region1: #{language_mixer_forward.4} parent=0
    #allocation2 [shape = 'u8[32768]{0}', space=vmem, size = 0x8000, scoped, tag = 'output window, operand 0']
    loop: start=0, step=1, limit=4
    $region2: #{language_mixer_forward.4} parent=1 // loop_pre_header
      _
    $region3: #{language_mixer_forward.4} parent=1 // loop_header
      %s10 = sphi 0, %s14
      %p11 = scmp.ge.s32.totalorder %s10, 4
      %s18 = sphi 0, %s18
      %s20 = sphi 0, %s18
      %s21 = sphi 0, %s20
      %s35 = sphi 0, %s21
      %s39 = sphi 0, %s39
      %s41 = sphi 0, %s39
      %s42 = sphi 0, %s41
      %s56 = sphi 0, %s42
      %s62 = sphi 0, %s64
      %s65 = sphi 0, %s62
      %s66 = sphi 0, %s65
      %s82 = sphi 0, %s66
      %s88 = sphi 0, %s90
      %s91 = sphi 0, %s88
      %s92 = sphi 0, %s91
      %s108 = sphi 0, %s92
      %s114 = sphi 0, %s116
      %s117 = sphi 0, %s114
      %s118 = sphi 0, %s117
      %s134 = sphi 0, %s118
    $region4: #{language_mixer_forward.4} parent=1 // loop_header_branch
      %13 = sbr.rel (%p11) target = $region8
    $region5: #{language_mixer_forward.4} parent=1 // loop_body
      %s15 = ssub.s32 %s10, 1
      %s16 = ssub.s32 %s10, 2
      %s17 = sadd.s32 %s10, 1
      %s19 = sadd.s32 %s18, 1
      %p22 = scmp.eq.s32.totalorder %s10, 1
      %p23 = scmp.ne.s32.totalorder %s18, %s20
      %p24 = scmp.eq.s32.totalorder %s10, 0
      %p25 = por %p23, %p24
      %p26 = scmp.ne.s32.totalorder %s18, %s20
      %p27 = scmp.eq.s32.totalorder %s15, 1
      %p28 = por %p26, %p27
      %p29 = scmp.ne.s32.totalorder %s20, %s21
      %p30 = scmp.eq.s32.totalorder %s15, 0
      %p31 = por %p29, %p30
      %p32 = scmp.ne.s32.totalorder %s20, %s21
      %p33 = scmp.eq.s32.totalorder %s16, 1
      %p34 = por %p32, %p33
      %p36 = scmp.ne.s32.totalorder %s21, %s35
      %p37 = scmp.eq.s32.totalorder %s16, 0
      %p38 = por %p36, %p37
      %s40 = sadd.s32 %s39, 1
      %p43 = scmp.eq.s32.totalorder %s10, 1
      %p44 = scmp.ne.s32.totalorder %s39, %s41
      %p45 = scmp.eq.s32.totalorder %s10, 0
      %p46 = por %p44, %p45
      %p47 = scmp.ne.s32.totalorder %s39, %s41
      %p48 = scmp.eq.s32.totalorder %s15, 1
      %p49 = por %p47, %p48
      %p50 = scmp.ne.s32.totalorder %s41, %s42
      %p51 = scmp.eq.s32.totalorder %s15, 0
      %p52 = por %p50, %p51
      %p53 = scmp.ne.s32.totalorder %s41, %s42
      %p54 = scmp.eq.s32.totalorder %s16, 1
      %p55 = por %p53, %p54
      %p57 = scmp.ne.s32.totalorder %s42, %s56
      %p58 = scmp.eq.s32.totalorder %s16, 0
      %p59 = por %p57, %p58
      %s60 = ssub.s32 %s10, %s17
      %p61 = scmp.eq.s32.totalorder %s60, 0
      %s63 = sadd.s32 %s62, 1
      %s64 = scalar_select %p61, %s62, %s63
      %p67 = pneg %p61
      %p68 = scmp.eq.s32.totalorder %s10, 1
      %p69 = por %p67, %p68
      %p70 = scmp.ne.s32.totalorder %s62, %s65
      %p71 = scmp.eq.s32.totalorder %s10, 0
      %p72 = por %p70, %p71
      %p73 = scmp.ne.s32.totalorder %s62, %s65
      %p74 = scmp.eq.s32.totalorder %s15, 1
      %p75 = por %p73, %p74
      %p76 = scmp.ne.s32.totalorder %s65, %s66
      %p77 = scmp.eq.s32.totalorder %s15, 0
      %p78 = por %p76, %p77
      %p79 = scmp.ne.s32.totalorder %s65, %s66
      %p80 = scmp.eq.s32.totalorder %s16, 1
      %p81 = por %p79, %p80
      %p83 = scmp.ne.s32.totalorder %s66, %s82
      %p84 = scmp.eq.s32.totalorder %s16, 0
      %p85 = por %p83, %p84
      %s86 = ssub.s32 %s10, %s17
      %p87 = scmp.eq.s32.totalorder %s86, 0
      %s89 = sadd.s32 %s88, 1
      %s90 = scalar_select %p87, %s88, %s89
      %p93 = pneg %p87
      %p94 = scmp.eq.s32.totalorder %s10, 1
      %p95 = por %p93, %p94
      %p96 = scmp.ne.s32.totalorder %s88, %s91
      %p97 = scmp.eq.s32.totalorder %s10, 0
      %p98 = por %p96, %p97
      %p99 = scmp.ne.s32.totalorder %s88, %s91
      %p100 = scmp.eq.s32.totalorder %s15, 1
      %p101 = por %p99, %p100
      %p102 = scmp.ne.s32.totalorder %s91, %s92
      %p103 = scmp.eq.s32.totalorder %s15, 0
      %p104 = por %p102, %p103
      %p105 = scmp.ne.s32.totalorder %s91, %s92
      %p106 = scmp.eq.s32.totalorder %s16, 1
      %p107 = por %p105, %p106
      %p109 = scmp.ne.s32.totalorder %s92, %s108
      %p110 = scmp.eq.s32.totalorder %s16, 0
      %p111 = por %p109, %p110
      %s112 = ssub.s32 %s10, %s17
      %p113 = scmp.eq.s32.totalorder %s112, 0
      %s115 = sadd.s32 %s114, 1
      %s116 = scalar_select %p113, %s114, %s115
      %p119 = pneg %p113
      %p120 = scmp.eq.s32.totalorder %s10, 1
      %p121 = por %p119, %p120
      %p122 = scmp.ne.s32.totalorder %s114, %s117
      %p123 = scmp.eq.s32.totalorder %s10, 0
      %p124 = por %p122, %p123
      %p125 = scmp.ne.s32.totalorder %s114, %s117
      %p126 = scmp.eq.s32.totalorder %s15, 1
      %p127 = por %p125, %p126
      %p128 = scmp.ne.s32.totalorder %s117, %s118
      %p129 = scmp.eq.s32.totalorder %s15, 0
      %p130 = por %p128, %p129
      %p131 = scmp.ne.s32.totalorder %s117, %s118
      %p132 = scmp.eq.s32.totalorder %s16, 1
      %p133 = por %p131, %p132
      %p135 = scmp.ne.s32.totalorder %s118, %s134
      %p136 = scmp.eq.s32.totalorder %s16, 0
      %p137 = por %p135, %p136
      %p138 = scmp.le.s32.totalorder 1, %s10
      %p139 = scmp.lt.s32.totalorder %s10, 3
      %p140 = pnand %p138, %p139
      %p141 = pneg %p140
      // Predicated region
      $region9: #{language_mixer_forward.4} parent=5 // pred_check
        _
      $region10: #{language_mixer_forward.4} parent=5 // pred_check_branch
        %143 = sbr.rel (%p140) target = $region12
      $region11: #{language_mixer_forward.4} parent=5 // pred_region
        %s144 = ssub.s32 %s10, 1
        // Predicated region
        $region13: #{language_mixer_forward.4} parent=11 // pred_check
          %p145 = pneg %p31
        $region14: #{language_mixer_forward.4} parent=11 // pred_check_branch
          %147 = sbr.rel (%p145) target = $region16
        $region15: #{language_mixer_forward.4} parent=11 // pred_region
          _
        $region16: #{language_mixer_forward.4} parent=11 // pred_fallthru
          _
        // Predicated region
        $region17: #{language_mixer_forward.4} parent=11 // pred_check
          %p148 = pneg %p52
        $region18: #{language_mixer_forward.4} parent=11 // pred_check_branch
          %150 = sbr.rel (%p148) target = $region20
        $region19: #{language_mixer_forward.4} parent=11 // pred_region
          _
        $region20: #{language_mixer_forward.4} parent=11 // pred_fallthru
          _
      $region12: #{language_mixer_forward.4} parent=5 // pred_fallthru
        _
      %p151 = scmp.lt.s32.totalorder %s10, 2
      // Predicated region
      $region21: #{language_mixer_forward.4} parent=5 // pred_check
        %p152 = pneg %p151
      $region22: #{language_mixer_forward.4} parent=5 // pred_check_branch
        %154 = sbr.rel (%p152) target = $region24
      $region23: #{language_mixer_forward.4} parent=5 // pred_region
        // Predicated region
        $region25: #{language_mixer_forward.4} parent=23 // pred_check
          %p155 = pneg %p72
        $region26: #{language_mixer_forward.4} parent=23 // pred_check_branch
          %157 = sbr.rel (%p155) target = $region28
        $region27: #{language_mixer_forward.4} parent=23 // pred_region
          %s158 = smul.u32 32, %s10
          %p159 = scmp.lt.s32.totalorder %s158, 63
          %s160 = scalar_select %p159, %s158, 63
          %s161 = smul.addr %s160, 8
          %s162 = scalar_lea.vmem %s2, %s161
          %s163 = smul.u32 32, %s10
        $region28: #{language_mixer_forward.4} parent=23 // pred_fallthru
          _
        // Predicated region
        $region29: #{language_mixer_forward.4} parent=23 // pred_check
          %p164 = pneg %p98
        $region30: #{language_mixer_forward.4} parent=23 // pred_check_branch
          %166 = sbr.rel (%p164) target = $region32
        $region31: #{language_mixer_forward.4} parent=23 // pred_region
          %s167 = smul.u32 32, %s10
          %p168 = scmp.lt.s32.totalorder %s167, 63
          %s169 = scalar_select %p168, %s167, 63
          %s170 = smul.addr %s169, 8
          %s171 = scalar_lea.vmem %s3, %s170
          %s172 = smul.u32 32, %s10
        $region32: #{language_mixer_forward.4} parent=23 // pred_fallthru
          _
      $region24: #{language_mixer_forward.4} parent=5 // pred_fallthru
        _
      %p173 = scmp.le.s32.totalorder 1, %s10
      %p174 = scmp.lt.s32.totalorder %s10, 3
      %p175 = pnand %p173, %p174
      %p176 = pneg %p175
      // Predicated region
      $region33: #{language_mixer_forward.4} parent=5 // pred_check
        _
      $region34: #{language_mixer_forward.4} parent=5 // pred_check_branch
        %178 = sbr.rel (%p175) target = $region36
      $region35: #{language_mixer_forward.4} parent=5 // pred_region
        %s179 = ssub.s32 %s10, 1
        %p180 = pneg %p31
        %p181 = pneg %p28
        %p182 = pneg %p52
        %p183 = pneg %p49
        %s184 = smul.u32 32, %s15
        %p185 = scmp.lt.s32.totalorder %s184, 63
        %s186 = scalar_select %p185, %s184, 63
        %s187 = smul.addr %s186, 8
        %s188 = scalar_lea.vmem %s2, %s187
        %p189 = pneg %p78
        %p190 = pneg %p75
        %s191 = smul.u32 32, %s15
        %p192 = scmp.lt.s32.totalorder %s191, 63
        %s193 = scalar_select %p192, %s191, 63
        %s194 = smul.addr %s193, 8
        %s195 = scalar_lea.vmem %s3, %s194
        %p196 = pneg %p104
        %p197 = pneg %p101
        %p198 = pneg %p130
        %p199 = pneg %p127
        %s200 = sand.u32 %s117, 1
        %s201 = sand.u32 %s117, 1
        %s202 = smul.addr %s201, 32
        %s203 = scalar_lea.vmem [#allocation2], %s202
        %s204 = smul.u32 32, %s15
        %p205 = scmp.lt.s32.totalorder %s204, 63
        %s206 = scalar_select %p205, %s204, 63
        %s207 = smul.addr %s206, 8
        %s208 = scalar_lea.vmem %s2, %s207
        %s209 = smul.u32 32, %s15
        %s210 = smul.u32 32, %s15
        %p211 = scmp.lt.s32.totalorder %s210, 63
        %s212 = scalar_select %p211, %s210, 63
        %s213 = smul.addr %s212, 8
        %s214 = scalar_lea.vmem %s3, %s213
        %s215 = smul.u32 32, %s15
        %s216 = smul.u32 2, %s15
        %v218 = vld [vmem:[%s0] sm:$0xff]
        %v219 = vld [vmem:[%s0 + $0x8] sm:$0xff]
        %v220 = vpack.c.bf16 %v219, %v218
        %v221 = vld [vmem:[%s1] sm:$0xff]
        %v222 = vld [vmem:[%s1 + $0x8] sm:$0xff]
        %v223 = vpack.c.bf16 %v222, %v221
        %v224 = vld [vmem:[%s208] sm:$0xff]
        %v225 = vld [vmem:[%s208 + $0x8] sm:$0xff]
        %v226 = vld [vmem:[%s208 + $0x10] sm:$0xff]
        %v227 = vld [vmem:[%s208 + $0x18] sm:$0xff]
        %v228 = vld [vmem:[%s208 + $0x20] sm:$0xff]
        %v229 = vld [vmem:[%s208 + $0x28] sm:$0xff]
        %v230 = vld [vmem:[%s208 + $0x30] sm:$0xff]
        %v231 = vld [vmem:[%s208 + $0x38] sm:$0xff]
        %v232 = vld [vmem:[%s208 + $0x40] sm:$0xff]
        %v233 = vld [vmem:[%s208 + $0x48] sm:$0xff]
        %v234 = vld [vmem:[%s208 + $0x50] sm:$0xff]
        %v235 = vld [vmem:[%s208 + $0x58] sm:$0xff]
        %v236 = vld [vmem:[%s208 + $0x60] sm:$0xff]
        %v237 = vld [vmem:[%s208 + $0x68] sm:$0xff]
        %v238 = vld [vmem:[%s208 + $0x70] sm:$0xff]
        %v239 = vld [vmem:[%s208 + $0x78] sm:$0xff]
        %v240 = vld [vmem:[%s208 + $0x80] sm:$0xff]
        %v241 = vld [vmem:[%s208 + $0x88] sm:$0xff]
        %v242 = vld [vmem:[%s208 + $0x90] sm:$0xff]
        %v243 = vld [vmem:[%s208 + $0x98] sm:$0xff]
        %v244 = vld [vmem:[%s208 + $0xa0] sm:$0xff]
        %v245 = vld [vmem:[%s208 + $0xa8] sm:$0xff]
        %v246 = vld [vmem:[%s208 + $0xb0] sm:$0xff]
        %v247 = vld [vmem:[%s208 + $0xb8] sm:$0xff]
        %v248 = vld [vmem:[%s208 + $0xc0] sm:$0xff]
        %v249 = vld [vmem:[%s208 + $0xc8] sm:$0xff]
        %v250 = vld [vmem:[%s208 + $0xd0] sm:$0xff]
        %v251 = vld [vmem:[%s208 + $0xd8] sm:$0xff]
        %v252 = vld [vmem:[%s208 + $0xe0] sm:$0xff]
        %v253 = vld [vmem:[%s208 + $0xe8] sm:$0xff]
        %v254 = vld [vmem:[%s208 + $0xf0] sm:$0xff]
        %v255 = vld [vmem:[%s208 + $0xf8] sm:$0xff]
        %v256 = vpack.c.bf16 %v225, %v224
        %v257 = vpack.c.bf16 %v227, %v226
        %v258 = vpack.c.bf16 %v229, %v228
        %v259 = vpack.c.bf16 %v231, %v230
        %v260 = vpack.c.bf16 %v233, %v232
        %v261 = vpack.c.bf16 %v235, %v234
        %v262 = vpack.c.bf16 %v237, %v236
        %v263 = vpack.c.bf16 %v239, %v238
        %v264 = vpack.c.bf16 %v241, %v240
        %v265 = vpack.c.bf16 %v243, %v242
        %v266 = vpack.c.bf16 %v245, %v244
        %v267 = vpack.c.bf16 %v247, %v246
        %v268 = vpack.c.bf16 %v249, %v248
        %v269 = vpack.c.bf16 %v251, %v250
        %v270 = vpack.c.bf16 %v253, %v252
        %v271 = vpack.c.bf16 %v255, %v254
        %272 = vmatprep.subr.bf16.mxu0 0
        %273 = vmatpush1.bf16.xpose.msra.mxu0 %v256
        %274 = vmatprep.subr.bf16.mxu0 0
        %275 = vmatpush1.bf16.xpose.msra.mxu0 %v257
        %276 = vmatprep.subr.bf16.mxu0 0
        %277 = vmatpush1.bf16.xpose.msra.mxu0 %v258
        %278 = vmatprep.subr.bf16.mxu0 0
        %279 = vmatpush1.bf16.xpose.msra.mxu0 %v259
        %280 = vmatprep.subr.bf16.mxu0 0
        %281 = vmatpush1.bf16.xpose.msra.mxu0 %v260
        %282 = vmatprep.subr.bf16.mxu0 0
        %283 = vmatpush1.bf16.xpose.msra.mxu0 %v261
        %284 = vmatprep.subr.bf16.mxu0 0
        %285 = vmatpush1.bf16.xpose.msra.mxu0 %v262
        %286 = vmatprep.subr.bf16.mxu0 0
        %287 = vmatpush1.bf16.xpose.msra.mxu0 %v263
        %288 = vmatprep.subr.bf16.mxu0 0
        %289 = vmatpush1.bf16.xpose.msra.mxu0 %v264
        %290 = vmatprep.subr.bf16.mxu0 0
        %291 = vmatpush1.bf16.xpose.msra.mxu0 %v265
        %292 = vmatprep.subr.bf16.mxu0 0
        %293 = vmatpush1.bf16.xpose.msra.mxu0 %v266
        %294 = vmatprep.subr.bf16.mxu0 0
        %295 = vmatpush1.bf16.xpose.msra.mxu0 %v267
        %296 = vmatprep.subr.bf16.mxu0 0
        %297 = vmatpush1.bf16.xpose.msra.mxu0 %v268
        %298 = vmatprep.subr.bf16.mxu0 0
        %299 = vmatpush1.bf16.xpose.msra.mxu0 %v269
        %300 = vmatprep.subr.bf16.mxu0 0
        %301 = vmatpush1.bf16.xpose.msra.mxu0 %v270
        %302 = vmatprep.subr.bf16.mxu0 0
        %303 = vmatpush1.bf16.xpose.msra.mxu0 %v271
        %304 = vmatprep.mubr.bf16.mxu0 0
        %305 = vmatmul.mubr.bf16.gmra.mrb[0].mxu0 %v220
        %v306 = vpop.f32.mrb[0].mxu0
        %v307 = vadd.f32 0.0, %v306
        %v308 = vpop.f32.mrb[0].mxu0
        %v309 = vadd.f32 0.0, %v308
        %v310 = vpop.f32.mrb[0].mxu0
        %v311 = vadd.f32 0.0, %v310
        %v312 = vpop.f32.mrb[0].mxu0
        %v313 = vadd.f32 0.0, %v312
        %314 = vdwg.mxu0
        %v315 = vld [vmem:[%s214] sm:$0xff]
        %v316 = vld [vmem:[%s214 + $0x8] sm:$0xff]
        %v317 = vld [vmem:[%s214 + $0x10] sm:$0xff]
        %v318 = vld [vmem:[%s214 + $0x18] sm:$0xff]
        %v319 = vld [vmem:[%s214 + $0x20] sm:$0xff]
        %v320 = vld [vmem:[%s214 + $0x28] sm:$0xff]
        %v321 = vld [vmem:[%s214 + $0x30] sm:$0xff]
        %v322 = vld [vmem:[%s214 + $0x38] sm:$0xff]
        %v323 = vld [vmem:[%s214 + $0x40] sm:$0xff]
        %v324 = vld [vmem:[%s214 + $0x48] sm:$0xff]
        %v325 = vld [vmem:[%s214 + $0x50] sm:$0xff]
        %v326 = vld [vmem:[%s214 + $0x58] sm:$0xff]
        %v327 = vld [vmem:[%s214 + $0x60] sm:$0xff]
        %v328 = vld [vmem:[%s214 + $0x68] sm:$0xff]
        %v329 = vld [vmem:[%s214 + $0x70] sm:$0xff]
        %v330 = vld [vmem:[%s214 + $0x78] sm:$0xff]
        %v331 = vld [vmem:[%s214 + $0x80] sm:$0xff]
        %v332 = vld [vmem:[%s214 + $0x88] sm:$0xff]
        %v333 = vld [vmem:[%s214 + $0x90] sm:$0xff]
        %v334 = vld [vmem:[%s214 + $0x98] sm:$0xff]
        %v335 = vld [vmem:[%s214 + $0xa0] sm:$0xff]
        %v336 = vld [vmem:[%s214 + $0xa8] sm:$0xff]
        %v337 = vld [vmem:[%s214 + $0xb0] sm:$0xff]
        %v338 = vld [vmem:[%s214 + $0xb8] sm:$0xff]
        %v339 = vld [vmem:[%s214 + $0xc0] sm:$0xff]
        %v340 = vld [vmem:[%s214 + $0xc8] sm:$0xff]
        %v341 = vld [vmem:[%s214 + $0xd0] sm:$0xff]
        %v342 = vld [vmem:[%s214 + $0xd8] sm:$0xff]
        %v343 = vld [vmem:[%s214 + $0xe0] sm:$0xff]
        %v344 = vld [vmem:[%s214 + $0xe8] sm:$0xff]
        %v345 = vld [vmem:[%s214 + $0xf0] sm:$0xff]
        %v346 = vld [vmem:[%s214 + $0xf8] sm:$0xff]
        %v347 = vpack.c.bf16 %v316, %v315
        %v348 = vpack.c.bf16 %v318, %v317
        %v349 = vpack.c.bf16 %v320, %v319
        %v350 = vpack.c.bf16 %v322, %v321
        %v351 = vpack.c.bf16 %v324, %v323
        %v352 = vpack.c.bf16 %v326, %v325
        %v353 = vpack.c.bf16 %v328, %v327
        %v354 = vpack.c.bf16 %v330, %v329
        %v355 = vpack.c.bf16 %v332, %v331
        %v356 = vpack.c.bf16 %v334, %v333
        %v357 = vpack.c.bf16 %v336, %v335
        %v358 = vpack.c.bf16 %v338, %v337
        %v359 = vpack.c.bf16 %v340, %v339
        %v360 = vpack.c.bf16 %v342, %v341
        %v361 = vpack.c.bf16 %v344, %v343
        %v362 = vpack.c.bf16 %v346, %v345
        %363 = vmatprep.subr.bf16.mxu0 0
        %364 = vmatpush1.bf16.xpose.msra.mxu0 %v347
        %365 = vmatprep.subr.bf16.mxu0 0
        %366 = vmatpush1.bf16.xpose.msra.mxu0 %v348
        %367 = vmatprep.subr.bf16.mxu0 0
        %368 = vmatpush1.bf16.xpose.msra.mxu0 %v349
        %369 = vmatprep.subr.bf16.mxu0 0
        %370 = vmatpush1.bf16.xpose.msra.mxu0 %v350
        %371 = vmatprep.subr.bf16.mxu0 0
        %372 = vmatpush1.bf16.xpose.msra.mxu0 %v351
        %373 = vmatprep.subr.bf16.mxu0 0
        %374 = vmatpush1.bf16.xpose.msra.mxu0 %v352
        %375 = vmatprep.subr.bf16.mxu0 0
        %376 = vmatpush1.bf16.xpose.msra.mxu0 %v353
        %377 = vmatprep.subr.bf16.mxu0 0
        %378 = vmatpush1.bf16.xpose.msra.mxu0 %v354
        %379 = vmatprep.subr.bf16.mxu0 0
        %380 = vmatpush1.bf16.xpose.msra.mxu0 %v355
        %381 = vmatprep.subr.bf16.mxu0 0
        %382 = vmatpush1.bf16.xpose.msra.mxu0 %v356
        %383 = vmatprep.subr.bf16.mxu0 0
        %384 = vmatpush1.bf16.xpose.msra.mxu0 %v357
        %385 = vmatprep.subr.bf16.mxu0 0
        %386 = vmatpush1.bf16.xpose.msra.mxu0 %v358
        %387 = vmatprep.subr.bf16.mxu0 0
        %388 = vmatpush1.bf16.xpose.msra.mxu0 %v359
        %389 = vmatprep.subr.bf16.mxu0 0
        %390 = vmatpush1.bf16.xpose.msra.mxu0 %v360
        %391 = vmatprep.subr.bf16.mxu0 0
        %392 = vmatpush1.bf16.xpose.msra.mxu0 %v361
        %393 = vmatprep.subr.bf16.mxu0 0
        %394 = vmatpush1.bf16.xpose.msra.mxu0 %v362
        %395 = vmatprep.mubr.bf16.mxu0 0
        %396 = vmatmul.mubr.bf16.gmra.mrb[0].mxu0 %v223
        %v397 = vpop.f32.mrb[0].mxu0
        %v398 = vadd.f32 0.0, %v397
        %v399 = vpop.f32.mrb[0].mxu0
        %v400 = vadd.f32 0.0, %v399
        %v401 = vpop.f32.mrb[0].mxu0
        %v402 = vadd.f32 0.0, %v401
        %v403 = vpop.f32.mrb[0].mxu0
        %v404 = vadd.f32 0.0, %v403
        %405 = vdwg.mxu0
        %v406 = vsub.f32 %v307, %v398
        %v407 = vsub.f32 %v309, %v400
        %v408 = vsub.f32 %v311, %v402
        %v409 = vsub.f32 %v313, %v404
        %410 = vst [vmem:[%s203] sm:$0xff] %v406
        %411 = vst [vmem:[%s203 + $0x8] sm:$0xff] %v407
        %412 = vst [vmem:[%s203 + $0x10] sm:$0xff] %v408
        %413 = vst [vmem:[%s203 + $0x18] sm:$0xff] %v409
        %s414 = sand.u32 %s117, 1
        %s415 = sand.u32 %s117, 1
        %s416 = smul.addr %s415, 32
        %s417 = scalar_lea.vmem [#allocation2], %s416
        // Predicated region
        $region37: #{language_mixer_forward.4} parent=35 // pred_check
          %p418 = pneg %p127
        $region38: #{language_mixer_forward.4} parent=35 // pred_check_branch
          %420 = sbr.rel (%p418) target = $region40
        $region39: #{language_mixer_forward.4} parent=35 // pred_region
          %s421 = smul.u32 2, %s15
          %s422 = smul.addr %s421, 8
          %s423 = scalar_lea.vmem %s4, %s422
          // Predicated region
          $region41: #{language_mixer_forward.4} parent=39 // pred_check
            _
          $region42: #{language_mixer_forward.4} parent=39 // pred_check_branch
            %425 = sbr.rel (0) target = $region44
          $region43: #{language_mixer_forward.4} parent=39 // pred_region
            // Predicated region
            $region45: #{language_mixer_forward.4} parent=43 // pred_check
              _
            $region46: #{language_mixer_forward.4} parent=43 // pred_check_branch
              %427 = sbr.rel (0) target = $region48
            $region47: #{language_mixer_forward.4} parent=43 // pred_region
              loop: start=0, step=1, limit=1
              $region49: #{language_mixer_forward.4} parent=47 // loop_pre_header
                _
              $region50: #{language_mixer_forward.4} parent=47 // loop_header
                %s429 = sphi 0, %s433
                %p430 = scmp.ge.s32.totalorder %s429, 1
                %s434 = sphi %s417, %s417
                %s435 = sphi %s423, %s423
              $region51: #{language_mixer_forward.4} parent=47 // loop_header_branch
                %432 = sbr.rel (%p430) target = $region55
              $region52: #{language_mixer_forward.4} parent=47 // loop_body
                %v436 = vld [vmem:[%s434] sm:$0xff]
                %437 = vst [vmem:[%s435] sm:$0xff] %v436
                %v438 = vld [vmem:[%s434 + $0x8] sm:$0xff]
                %439 = vst [vmem:[%s435 + $0x8] sm:$0xff] %v438
                %v440 = vld [vmem:[%s434 + $0x10] sm:$0xff]
                %441 = vst [vmem:[%s435 + $0x20] sm:$0xff] %v440
                %v442 = vld [vmem:[%s434 + $0x18] sm:$0xff]
                %443 = vst [vmem:[%s435 + $0x28] sm:$0xff] %v442
              $region53: #{language_mixer_forward.4} parent=47 // loop_footer
                %s433 = sadd.s32 1, %s429
              $region54: #{language_mixer_forward.4} parent=47 // loop_footer_branch
                %428 = sbr.rel target = $region50
              $region55: #{language_mixer_forward.4} parent=47 // loop_exit
                _
            $region48: #{language_mixer_forward.4} parent=43 // pred_fallthru
              _
            // Predicated region
            $region56: #{language_mixer_forward.4} parent=43 // pred_check
              _
            $region57: #{language_mixer_forward.4} parent=43 // pred_check_branch
              %445 = sbr.rel target = $region59
            $region58: #{language_mixer_forward.4} parent=43 // pred_region
              _
            $region59: #{language_mixer_forward.4} parent=43 // pred_fallthru
              _
          $region44: #{language_mixer_forward.4} parent=39 // pred_fallthru
            _
          %446 = vnop
        $region40: #{language_mixer_forward.4} parent=35 // pred_fallthru
          _
      $region36: #{language_mixer_forward.4} parent=5 // pred_fallthru
        _
      %p447 = scmp.le.s32.totalorder 2, %s10
      // Predicated region
      $region60: #{language_mixer_forward.4} parent=5 // pred_check
        %p448 = pneg %p447
      $region61: #{language_mixer_forward.4} parent=5 // pred_check_branch
        %450 = sbr.rel (%p448) target = $region63
      $region62: #{language_mixer_forward.4} parent=5 // pred_region
        %s451 = ssub.s32 %s10, 2
        // Predicated region
        $region64: #{language_mixer_forward.4} parent=62 // pred_check
          %p452 = pneg %p133
        $region65: #{language_mixer_forward.4} parent=62 // pred_check_branch
          %454 = sbr.rel (%p452) target = $region67
        $region66: #{language_mixer_forward.4} parent=62 // pred_region
          %s455 = sand.u32 %s118, 1
          %s456 = sand.u32 %s118, 1
          %s457 = smul.addr %s456, 32
          %s458 = scalar_lea.vmem [#allocation2], %s457
        $region67: #{language_mixer_forward.4} parent=62 // pred_fallthru
          _
      $region63: #{language_mixer_forward.4} parent=5 // pred_fallthru
        _
    $region6: #{language_mixer_forward.4} parent=1 // loop_footer
      %s14 = sadd.s32 1, %s10
    $region7: #{language_mixer_forward.4} parent=1 // loop_footer_branch
      %9 = sbr.rel target = $region3
    $region8: #{language_mixer_forward.4} parent=1 // loop_exit
      _

// kernel: language_mixer_forward.5
$region0: #{language_mixer_forward.5}
  #allocation0 [shape = 'u32[]', space=smem, size = 0x4, offset = 0x4, fixed_abs, tag = 'smem constant byte address 0x4 - core index']
  #allocation1 [shape = 'u32[144,128]{1,0:T(1,128)}', space=vmem, size = 0x12000, scoped, tag = 'internal scratch']
  %s0 = inlined_call_operand.vmem [shape: f32[2,8,512], index: 0, kind: input, shape index: {}]
  %s1 = inlined_call_operand.vmem [shape: s32[2,8], index: 1, kind: input, shape index: {}]
  %s2 = inlined_call_operand.hbm [shape: f32[1,1], index: 2, kind: output, shape index: {}]
  %s3 = sld [smem:[#allocation0]]
  $region18: #{language_mixer_forward.5} parent=0
    _
  %s5 = ssub.s32 1, %s3
  %s6 = scalar_select 0, %s5, %s3
  $region1: #{language_mixer_forward.5} parent=0
    #allocation2 [shape = 'u8[512]{0}', space=smem, size = 0x200, scoped, tag = 'output window, operand 0, single buffered']
    #allocation3 [shape = 's32[1]{0}', space=sflag, size = 0x4, scoped, tag = 'scoped memory for language_mixer_forward.5']
    %7 = vsyncpa [#allocation3], 0
    // Predicated region
    $region2: #{language_mixer_forward.5} parent=1 // pred_check
      _
    $region3: #{language_mixer_forward.5} parent=1 // pred_check_branch
      %9 = sbr.rel (0) target = $region5
    $region4: #{language_mixer_forward.5} parent=1 // pred_region
      _
    $region5: #{language_mixer_forward.5} parent=1 // pred_fallthru
      _
    // Predicated region
    $region6: #{language_mixer_forward.5} parent=1 // pred_check
      _
    $region7: #{language_mixer_forward.5} parent=1 // pred_check_branch
      %11 = sbr.rel (0) target = $region9
    $region8: #{language_mixer_forward.5} parent=1 // pred_region
      _
    $region9: #{language_mixer_forward.5} parent=1 // pred_fallthru
      _
    %v12 = vld [vmem:[%s0] sm:$0xff]
    %v13 = vld [vmem:[%s0 + $0x8] sm:$0xff]
    %v14 = vld [vmem:[%s0 + $0x10] sm:$0xff]
    %v15 = vld [vmem:[%s0 + $0x18] sm:$0xff]
    %v16 = vld [vmem:[%s0 + $0x20] sm:$0xff]
    %v17 = vld [vmem:[%s0 + $0x28] sm:$0xff]
    %v18 = vld [vmem:[%s0 + $0x30] sm:$0xff]
    %v19 = vld [vmem:[%s0 + $0x38] sm:$0xff]
    %v20 = vld [vmem:[%s1] sm:$0x3]
    %v21 = vmax.f32 %v12, %v14
    %v22 = vmax.f32 %v13, %v15
    %v23 = vmax.f32 %v21, %v22
    %24 = vmax.xlane.f32.xlu0 %v23
    %v25 = vpop.xlane.xlu0 %24
    %v26 = vmax.f32 %v16, %v18
    %v27 = vmax.f32 %v17, %v19
    %v28 = vmax.f32 %v26, %v27
    %29 = vmax.xlane.f32.xlu0 %v28
    %v30 = vpop.xlane.xlu0 %29
    %v31 = vsub.f32 %v12, %v25
    %v32 = vsub.f32 %v13, %v25
    %v33 = vsub.f32 %v14, %v25
    %v34 = vsub.f32 %v15, %v25
    %v35 = vsub.f32 %v16, %v30
    %v36 = vsub.f32 %v17, %v30
    %v37 = vsub.f32 %v18, %v30
    %v38 = vsub.f32 %v19, %v30
    %v39 = vmul.f32 %v31, 1.442695
    %v40 = vpow.pop %v39
    %v41 = vmul.f32 %v32, 1.442695
    %v42 = vpow.pop %v41
    %v43 = vmul.f32 %v33, 1.442695
    %v44 = vpow.pop %v43
    %v45 = vmul.f32 %v34, 1.442695
    %v46 = vpow.pop %v45
    %v47 = vmul.f32 %v35, 1.442695
    %v48 = vpow.pop %v47
    %v49 = vmul.f32 %v36, 1.442695
    %v50 = vpow.pop %v49
    %v51 = vmul.f32 %v37, 1.442695
    %v52 = vpow.pop %v51
    %v53 = vmul.f32 %v38, 1.442695
    %v54 = vpow.pop %v53
    %v55 = vadd.f32 %v40, %v42
    %v56 = vadd.f32 %v55, %v44
    %v57 = vadd.f32 %v56, %v46
    %58 = vadd.xlane.f32.xlu0 %v57
    %v59 = vpop.xlane.xlu0 %58
    %v60 = vadd.f32 %v48, %v50
    %v61 = vadd.f32 %v60, %v52
    %v62 = vadd.f32 %v61, %v54
    %63 = vadd.xlane.f32.xlu0 %v62
    %v64 = vpop.xlane.xlu0 %63
    %v65 = vlog2.pop %v59
    %v66 = vmul.f32 %v65, 0.6931472
    %v67 = vlog2.pop %v64
    %v68 = vmul.f32 %v67, 0.6931472
    %v69 = vadd.f32 %v66, %v25
    %v70 = vadd.f32 %v68, %v30
    %v71 = vlaneseq
    %v72 = vand.u32 %v71, 127
    %v73 = vadd.s32 %v72, 128
    %v74 = vadd.s32 %v72, 256
    %v75 = vadd.s32 %v72, 384
    %v76 = vlaneseq
    %v77 = vshrl.u32 %v76, 7
    %v78 = vsub.s32 0, %v77
    %v79 = vrot.slane %v20, %v78
    %81 = vbcast.lane.b32.xlu0 %v79, 256
    %v82 = vpop.permute.xlu0 %81
    %v83 = vlaneseq
    %v84 = vshrl.u32 %v83, 7
    %v85 = vsub.s32 1, %v84
    %v86 = vrot.slane %v20, %v85
    %88 = vbcast.lane.b32.xlu0 %v86, 256
    %v89 = vpop.permute.xlu0 %88
    %vm90 = vcmp.eq.s32.totalorder %v72, %v82
    %vm91 = vcmp.eq.s32.totalorder %v73, %v82
    %vm92 = vcmp.eq.s32.totalorder %v74, %v82
    %vm93 = vcmp.eq.s32.totalorder %v75, %v82
    %vm94 = vcmp.eq.s32.totalorder %v72, %v89
    %vm95 = vcmp.eq.s32.totalorder %v73, %v89
    %vm96 = vcmp.eq.s32.totalorder %v74, %v89
    %vm97 = vcmp.eq.s32.totalorder %v75, %v89
    %v98 = vsel %vm90, 1, 0
    %v99 = vsel %vm91, 1, 0
    %v100 = vsel %vm92, 1, 0
    %v101 = vsel %vm93, 1, 0
    %v102 = vsel %vm94, 1, 0
    %v103 = vsel %vm95, 1, 0
    %v104 = vsel %vm96, 1, 0
    %v105 = vsel %vm97, 1, 0
    %v106 = vcvt.s32.f32 %v98
    %v107 = vcvt.s32.f32 %v99
    %v108 = vcvt.s32.f32 %v100
    %v109 = vcvt.s32.f32 %v101
    %v110 = vcvt.s32.f32 %v102
    %v111 = vcvt.s32.f32 %v103
    %v112 = vcvt.s32.f32 %v104
    %v113 = vcvt.s32.f32 %v105
    %v114 = vmul.f32 %v12, %v106
    %v115 = vmul.f32 %v13, %v107
    %v116 = vmul.f32 %v14, %v108
    %v117 = vmul.f32 %v15, %v109
    %v118 = vmul.f32 %v16, %v110
    %v119 = vmul.f32 %v17, %v111
    %v120 = vmul.f32 %v18, %v112
    %v121 = vmul.f32 %v19, %v113
    %v122 = vadd.f32 %v114, %v115
    %v123 = vadd.f32 %v122, %v116
    %v124 = vadd.f32 %v123, %v117
    %125 = vadd.xlane.f32.xlu0 %v124
    %v126 = vpop.xlane.xlu0 %125
    %v127 = vadd.f32 %v118, %v119
    %v128 = vadd.f32 %v127, %v120
    %v129 = vadd.f32 %v128, %v121
    %130 = vadd.xlane.f32.xlu0 %v129
    %v131 = vpop.xlane.xlu0 %130
    %v132 = vlaneseq
    %v133 = vshrl.u32 %v132, 7
    %vm134 = vcmp.lt.s32.totalorder %v133, 7
    %v135 = vsel %vm134, 1, 0
    %v136 = vcvt.s32.f32 %v135
    %v137 = vsub.f32 %v69, %v126
    %v138 = vsub.f32 %v70, %v131
    %v139 = vmul.f32 %v137, %v136
    %v140 = vmul.f32 %v138, %v136
    %vm141 = vcmask 7168
    %v142 = vsel %vm141, %v139, 0.0
    %v143 = vsel %vm141, %v140, 0.0
    %v144 = vadd.f32 %v142, %v143
    %145 = vadd.xlane.f32.xlu0 %v144
    %v146 = vpop.xlane.xlu0 %145
    %v147 = vrot.slane %v146, 4
    %v148 = vadd.f32 %v146, %v147
    %v149 = vrot.slane %v148, 2
    %v150 = vadd.f32 %v148, %v149
    %v151 = vrot.slane %v150, 1
    %v152 = vadd.f32 %v150, %v151
    %s153 = vtos %v152
    %v154 = vrcp.pop 14.0
    %s155 = vtos %v154
    %s156 = smul.f32 %s153, %s155
    %s157 = scalar_lea.smem [#allocation2], 0
    %158 = sst [smem:[%s157]] %s156
    // Predicated region
    $region10: #{language_mixer_forward.5} parent=1 // pred_check
      _
    $region11: #{language_mixer_forward.5} parent=1 // pred_check_branch
      %160 = sbr.rel (0) target = $region13
    $region12: #{language_mixer_forward.5} parent=1 // pred_region
      %s162 = ssub.s32 16, 16
      %163 = vsyncadd [#allocation3], %s162
      %166 = dma.smem_to_hbm [#allocation2], 16, %s2, [#allocation3]
    $region13: #{language_mixer_forward.5} parent=1 // pred_fallthru
      _
    // Predicated region
    $region14: #{language_mixer_forward.5} parent=1 // pred_check
      _
    $region15: #{language_mixer_forward.5} parent=1 // pred_check_branch
      %168 = sbr.rel (0) target = $region17
    $region16: #{language_mixer_forward.5} parent=1 // pred_region
      %169 = dma.done [#allocation3], 16
    $region17: #{language_mixer_forward.5} parent=1 // pred_fallthru
      _
    %170 = sfence
    %171 = vsyncpa [#allocation3], 1

// kernel: language_mixer_forward.3
$region0: #{language_mixer_forward.3}
  #allocation0 [shape = 'u32[]', space=smem, size = 0x4, offset = 0x4, fixed_abs, tag = 'smem constant byte address 0x4 - core index']
  #allocation1 [shape = 'u32[144,128]{1,0:T(1,128)}', space=vmem, size = 0x12000, scoped, tag = 'internal scratch']
  %s0 = inlined_call_operand.vmem [shape: f32[2,8,128], index: 0, kind: input, shape index: {}]
  %s1 = inlined_call_operand.vmem [shape: f32[2,8,128], index: 1, kind: input, shape index: {}]
  %s2 = inlined_call_operand.vmem [shape: f32[8,128], index: 2, kind: input, shape index: {}]
  %s3 = inlined_call_operand.vmem [shape: f32[8,128], index: 3, kind: input, shape index: {}]
  %s4 = inlined_call_operand.vmem [shape: f32[2,8,8], index: 4, kind: input, shape index: {}]
  %s5 = inlined_call_operand.vmem [shape: f32[2,8,8], index: 5, kind: input, shape index: {}]
  %s6 = inlined_call_operand.vmem [shape: f32[2,8,1], index: 6, kind: input, shape index: {}]
  %s7 = inlined_call_operand.vmem [shape: f32[2,8,1], index: 7, kind: input, shape index: {}]
  %s8 = inlined_call_operand.hbm [shape: f32[2,512,128], index: 8, kind: input, shape index: {}]
  %s9 = inlined_call_operand.hbm [shape: f32[2,512,128], index: 9, kind: input, shape index: {}]
  %s10 = inlined_call_operand.vmem [shape: f32[2,1,512], index: 10, kind: input, shape index: {}]
  %s11 = inlined_call_operand.vmem [shape: f32[2,1,512], index: 11, kind: input, shape index: {}]
  %s12 = inlined_call_operand.hbm [shape: f32[2,128,512], index: 12, kind: input, shape index: {}]
  %s13 = inlined_call_operand.hbm [shape: f32[2,128,512], index: 13, kind: input, shape index: {}]
  %s14 = inlined_call_operand.vmem [shape: f32[2,1,128], index: 14, kind: input, shape index: {}]
  %s15 = inlined_call_operand.vmem [shape: f32[2,1,128], index: 15, kind: input, shape index: {}]
  %s16 = inlined_call_operand.vmem [shape: f32[2,8,128], index: 16, kind: output, shape index: {0}]
  %s17 = inlined_call_operand.vmem [shape: f32[2,8,128], index: 17, kind: output, shape index: {1}]
  %18 = xla_tuple %s16, %s17
  %s19 = sld [smem:[#allocation0]]
  $region125: #{language_mixer_forward.3} parent=0
    _
  %s21 = ssub.s32 1, %s19
  %s22 = scalar_select 0, %s21, %s19
  $region1: #{language_mixer_forward.3} parent=0
    #allocation2 [shape = 'u8[524288]{0}', space=vmem, size = 0x80000, scoped, tag = 'input window, operand 8']
    #allocation3 [shape = 's32[2]{0}', space=sflag, size = 0x8, scoped, tag = 'scoped memory for language_mixer_forward.3']
    #allocation4 [shape = 'u8[524288]{0}', space=vmem, size = 0x80000, scoped, tag = 'input window, operand 9']
    #allocation5 [shape = 's32[2]{0}', space=sflag, size = 0x8, scoped, tag = 'scoped memory for language_mixer_forward.3']
    #allocation6 [shape = 'u8[524288]{0}', space=vmem, size = 0x80000, scoped, tag = 'input window, operand 12']
    #allocation7 [shape = 'u8[524288]{0}', space=vmem, size = 0x80000, scoped, tag = 'input window, operand 13']
    #allocation8 [shape = 's32[2]{0}', space=sflag, size = 0x8, scoped, tag = 'scoped memory for language_mixer_forward.3']
    %23 = vsyncpa [#allocation3], 0
    %s24 = scalar_lea.sflag [#allocation3], 1
    %25 = vsyncpa %s24, 0
    %26 = vsyncpa [#allocation5], 0
    %s27 = scalar_lea.sflag [#allocation5], 1
    %28 = vsyncpa %s27, 0
    %29 = vsyncpa [#allocation8], 0
    %s30 = scalar_lea.sflag [#allocation8], 1
    %31 = vsyncpa %s30, 0
    loop: start=0, step=1, limit=4
    $region2: #{language_mixer_forward.3} parent=1 // loop_pre_header
      _
    $region3: #{language_mixer_forward.3} parent=1 // loop_header
      %s33 = sphi 0, %s37
      %p34 = scmp.ge.s32.totalorder %s33, 4
      %s41 = sphi 0, %s41
      %s43 = sphi 0, %s41
      %s44 = sphi 0, %s43
      %s58 = sphi 0, %s44
      %s62 = sphi 0, %s62
      %s64 = sphi 0, %s62
      %s65 = sphi 0, %s64
      %s79 = sphi 0, %s65
      %s83 = sphi 0, %s83
      %s85 = sphi 0, %s83
      %s86 = sphi 0, %s85
      %s100 = sphi 0, %s86
      %s104 = sphi 0, %s104
      %s106 = sphi 0, %s104
      %s107 = sphi 0, %s106
      %s121 = sphi 0, %s107
      %s127 = sphi 0, %s129
      %s130 = sphi 0, %s127
      %s131 = sphi 0, %s130
      %s147 = sphi 0, %s131
      %s153 = sphi 0, %s155
      %s156 = sphi 0, %s153
      %s157 = sphi 0, %s156
      %s173 = sphi 0, %s157
      %s179 = sphi 0, %s181
      %s182 = sphi 0, %s179
      %s183 = sphi 0, %s182
      %s199 = sphi 0, %s183
      %s205 = sphi 0, %s207
      %s208 = sphi 0, %s205
      %s209 = sphi 0, %s208
      %s225 = sphi 0, %s209
      %s231 = sphi 0, %s233
      %s234 = sphi 0, %s231
      %s235 = sphi 0, %s234
      %s251 = sphi 0, %s235
      %s257 = sphi 0, %s259
      %s260 = sphi 0, %s257
      %s261 = sphi 0, %s260
      %s277 = sphi 0, %s261
      %s283 = sphi 0, %s285
      %s286 = sphi 0, %s283
      %s287 = sphi 0, %s286
      %s303 = sphi 0, %s287
      %s309 = sphi 0, %s311
      %s312 = sphi 0, %s309
      %s313 = sphi 0, %s312
      %s329 = sphi 0, %s313
      %s335 = sphi 0, %s337
      %s338 = sphi 0, %s335
      %s339 = sphi 0, %s338
      %s355 = sphi 0, %s339
      %s361 = sphi 0, %s363
      %s364 = sphi 0, %s361
      %s365 = sphi 0, %s364
      %s381 = sphi 0, %s365
      %s387 = sphi 0, %s389
      %s390 = sphi 0, %s387
      %s391 = sphi 0, %s390
      %s407 = sphi 0, %s391
      %s413 = sphi 0, %s415
      %s416 = sphi 0, %s413
      %s417 = sphi 0, %s416
      %s433 = sphi 0, %s417
      %s437 = sphi 0, %s437
      %s439 = sphi 0, %s437
      %s440 = sphi 0, %s439
      %s454 = sphi 0, %s440
      %s458 = sphi 0, %s458
      %s460 = sphi 0, %s458
      %s461 = sphi 0, %s460
      %s475 = sphi 0, %s461
    $region4: #{language_mixer_forward.3} parent=1 // loop_header_branch
      %36 = sbr.rel (%p34) target = $region8
    $region5: #{language_mixer_forward.3} parent=1 // loop_body
      %s38 = ssub.s32 %s33, 1
      %s39 = ssub.s32 %s33, 2
      %s40 = sadd.s32 %s33, 1
      %s42 = sadd.s32 %s41, 1
      %p45 = scmp.eq.s32.totalorder %s33, 1
      %p46 = scmp.ne.s32.totalorder %s41, %s43
      %p47 = scmp.eq.s32.totalorder %s33, 0
      %p48 = por %p46, %p47
      %p49 = scmp.ne.s32.totalorder %s41, %s43
      %p50 = scmp.eq.s32.totalorder %s38, 1
      %p51 = por %p49, %p50
      %p52 = scmp.ne.s32.totalorder %s43, %s44
      %p53 = scmp.eq.s32.totalorder %s38, 0
      %p54 = por %p52, %p53
      %p55 = scmp.ne.s32.totalorder %s43, %s44
      %p56 = scmp.eq.s32.totalorder %s39, 1
      %p57 = por %p55, %p56
      %p59 = scmp.ne.s32.totalorder %s44, %s58
      %p60 = scmp.eq.s32.totalorder %s39, 0
      %p61 = por %p59, %p60
      %s63 = sadd.s32 %s62, 1
      %p66 = scmp.eq.s32.totalorder %s33, 1
      %p67 = scmp.ne.s32.totalorder %s62, %s64
      %p68 = scmp.eq.s32.totalorder %s33, 0
      %p69 = por %p67, %p68
      %p70 = scmp.ne.s32.totalorder %s62, %s64
      %p71 = scmp.eq.s32.totalorder %s38, 1
      %p72 = por %p70, %p71
      %p73 = scmp.ne.s32.totalorder %s64, %s65
      %p74 = scmp.eq.s32.totalorder %s38, 0
      %p75 = por %p73, %p74
      %p76 = scmp.ne.s32.totalorder %s64, %s65
      %p77 = scmp.eq.s32.totalorder %s39, 1
      %p78 = por %p76, %p77
      %p80 = scmp.ne.s32.totalorder %s65, %s79
      %p81 = scmp.eq.s32.totalorder %s39, 0
      %p82 = por %p80, %p81
      %s84 = sadd.s32 %s83, 1
      %p87 = scmp.eq.s32.totalorder %s33, 1
      %p88 = scmp.ne.s32.totalorder %s83, %s85
      %p89 = scmp.eq.s32.totalorder %s33, 0
      %p90 = por %p88, %p89
      %p91 = scmp.ne.s32.totalorder %s83, %s85
      %p92 = scmp.eq.s32.totalorder %s38, 1
      %p93 = por %p91, %p92
      %p94 = scmp.ne.s32.totalorder %s85, %s86
      %p95 = scmp.eq.s32.totalorder %s38, 0
      %p96 = por %p94, %p95
      %p97 = scmp.ne.s32.totalorder %s85, %s86
      %p98 = scmp.eq.s32.totalorder %s39, 1
      %p99 = por %p97, %p98
      %p101 = scmp.ne.s32.totalorder %s86, %s100
      %p102 = scmp.eq.s32.totalorder %s39, 0
      %p103 = por %p101, %p102
      %s105 = sadd.s32 %s104, 1
      %p108 = scmp.eq.s32.totalorder %s33, 1
      %p109 = scmp.ne.s32.totalorder %s104, %s106
      %p110 = scmp.eq.s32.totalorder %s33, 0
      %p111 = por %p109, %p110
      %p112 = scmp.ne.s32.totalorder %s104, %s106
      %p113 = scmp.eq.s32.totalorder %s38, 1
      %p114 = por %p112, %p113
      %p115 = scmp.ne.s32.totalorder %s106, %s107
      %p116 = scmp.eq.s32.totalorder %s38, 0
      %p117 = por %p115, %p116
      %p118 = scmp.ne.s32.totalorder %s106, %s107
      %p119 = scmp.eq.s32.totalorder %s39, 1
      %p120 = por %p118, %p119
      %p122 = scmp.ne.s32.totalorder %s107, %s121
      %p123 = scmp.eq.s32.totalorder %s39, 0
      %p124 = por %p122, %p123
      %s125 = ssub.s32 %s33, %s40
      %p126 = scmp.eq.s32.totalorder %s125, 0
      %s128 = sadd.s32 %s127, 1
      %s129 = scalar_select %p126, %s127, %s128
      %p132 = pneg %p126
      %p133 = scmp.eq.s32.totalorder %s33, 1
      %p134 = por %p132, %p133
      %p135 = scmp.ne.s32.totalorder %s127, %s130
      %p136 = scmp.eq.s32.totalorder %s33, 0
      %p137 = por %p135, %p136
      %p138 = scmp.ne.s32.totalorder %s127, %s130
      %p139 = scmp.eq.s32.totalorder %s38, 1
      %p140 = por %p138, %p139
      %p141 = scmp.ne.s32.totalorder %s130, %s131
      %p142 = scmp.eq.s32.totalorder %s38, 0
      %p143 = por %p141, %p142
      %p144 = scmp.ne.s32.totalorder %s130, %s131
      %p145 = scmp.eq.s32.totalorder %s39, 1
      %p146 = por %p144, %p145
      %p148 = scmp.ne.s32.totalorder %s131, %s147
      %p149 = scmp.eq.s32.totalorder %s39, 0
      %p150 = por %p148, %p149
      %s151 = ssub.s32 %s33, %s40
      %p152 = scmp.eq.s32.totalorder %s151, 0
      %s154 = sadd.s32 %s153, 1
      %s155 = scalar_select %p152, %s153, %s154
      %p158 = pneg %p152
      %p159 = scmp.eq.s32.totalorder %s33, 1
      %p160 = por %p158, %p159
      %p161 = scmp.ne.s32.totalorder %s153, %s156
      %p162 = scmp.eq.s32.totalorder %s33, 0
      %p163 = por %p161, %p162
      %p164 = scmp.ne.s32.totalorder %s153, %s156
      %p165 = scmp.eq.s32.totalorder %s38, 1
      %p166 = por %p164, %p165
      %p167 = scmp.ne.s32.totalorder %s156, %s157
      %p168 = scmp.eq.s32.totalorder %s38, 0
      %p169 = por %p167, %p168
      %p170 = scmp.ne.s32.totalorder %s156, %s157
      %p171 = scmp.eq.s32.totalorder %s39, 1
      %p172 = por %p170, %p171
      %p174 = scmp.ne.s32.totalorder %s157, %s173
      %p175 = scmp.eq.s32.totalorder %s39, 0
      %p176 = por %p174, %p175
      %s177 = ssub.s32 %s33, %s40
      %p178 = scmp.eq.s32.totalorder %s177, 0
      %s180 = sadd.s32 %s179, 1
      %s181 = scalar_select %p178, %s179, %s180
      %p184 = pneg %p178
      %p185 = scmp.eq.s32.totalorder %s33, 1
      %p186 = por %p184, %p185
      %p187 = scmp.ne.s32.totalorder %s179, %s182
      %p188 = scmp.eq.s32.totalorder %s33, 0
      %p189 = por %p187, %p188
      %p190 = scmp.ne.s32.totalorder %s179, %s182
      %p191 = scmp.eq.s32.totalorder %s38, 1
      %p192 = por %p190, %p191
      %p193 = scmp.ne.s32.totalorder %s182, %s183
      %p194 = scmp.eq.s32.totalorder %s38, 0
      %p195 = por %p193, %p194
      %p196 = scmp.ne.s32.totalorder %s182, %s183
      %p197 = scmp.eq.s32.totalorder %s39, 1
      %p198 = por %p196, %p197
      %p200 = scmp.ne.s32.totalorder %s183, %s199
      %p201 = scmp.eq.s32.totalorder %s39, 0
      %p202 = por %p200, %p201
      %s203 = ssub.s32 %s33, %s40
      %p204 = scmp.eq.s32.totalorder %s203, 0
      %s206 = sadd.s32 %s205, 1
      %s207 = scalar_select %p204, %s205, %s206
      %p210 = pneg %p204
      %p211 = scmp.eq.s32.totalorder %s33, 1
      %p212 = por %p210, %p211
      %p213 = scmp.ne.s32.totalorder %s205, %s208
      %p214 = scmp.eq.s32.totalorder %s33, 0
      %p215 = por %p213, %p214
      %p216 = scmp.ne.s32.totalorder %s205, %s208
      %p217 = scmp.eq.s32.totalorder %s38, 1
      %p218 = por %p216, %p217
      %p219 = scmp.ne.s32.totalorder %s208, %s209
      %p220 = scmp.eq.s32.totalorder %s38, 0
      %p221 = por %p219, %p220
      %p222 = scmp.ne.s32.totalorder %s208, %s209
      %p223 = scmp.eq.s32.totalorder %s39, 1
      %p224 = por %p222, %p223
      %p226 = scmp.ne.s32.totalorder %s209, %s225
      %p227 = scmp.eq.s32.totalorder %s39, 0
      %p228 = por %p226, %p227
      %s229 = ssub.s32 %s33, %s40
      %p230 = scmp.eq.s32.totalorder %s229, 0
      %s232 = sadd.s32 %s231, 1
      %s233 = scalar_select %p230, %s231, %s232
      %p236 = pneg %p230
      %p237 = scmp.eq.s32.totalorder %s33, 1
      %p238 = por %p236, %p237
      %p239 = scmp.ne.s32.totalorder %s231, %s234
      %p240 = scmp.eq.s32.totalorder %s33, 0
      %p241 = por %p239, %p240
      %p242 = scmp.ne.s32.totalorder %s231, %s234
      %p243 = scmp.eq.s32.totalorder %s38, 1
      %p244 = por %p242, %p243
      %p245 = scmp.ne.s32.totalorder %s234, %s235
      %p246 = scmp.eq.s32.totalorder %s38, 0
      %p247 = por %p245, %p246
      %p248 = scmp.ne.s32.totalorder %s234, %s235
      %p249 = scmp.eq.s32.totalorder %s39, 1
      %p250 = por %p248, %p249
      %p252 = scmp.ne.s32.totalorder %s235, %s251
      %p253 = scmp.eq.s32.totalorder %s39, 0
      %p254 = por %p252, %p253
      %s255 = ssub.s32 %s33, %s40
      %p256 = scmp.eq.s32.totalorder %s255, 0
      %s258 = sadd.s32 %s257, 1
      %s259 = scalar_select %p256, %s257, %s258
      %p262 = pneg %p256
      %p263 = scmp.eq.s32.totalorder %s33, 1
      %p264 = por %p262, %p263
      %p265 = scmp.ne.s32.totalorder %s257, %s260
      %p266 = scmp.eq.s32.totalorder %s33, 0
      %p267 = por %p265, %p266
      %p268 = scmp.ne.s32.totalorder %s257, %s260
      %p269 = scmp.eq.s32.totalorder %s38, 1
      %p270 = por %p268, %p269
      %p271 = scmp.ne.s32.totalorder %s260, %s261
      %p272 = scmp.eq.s32.totalorder %s38, 0
      %p273 = por %p271, %p272
      %p274 = scmp.ne.s32.totalorder %s260, %s261
      %p275 = scmp.eq.s32.totalorder %s39, 1
      %p276 = por %p274, %p275
      %p278 = scmp.ne.s32.totalorder %s261, %s277
      %p279 = scmp.eq.s32.totalorder %s39, 0
      %p280 = por %p278, %p279
      %s281 = ssub.s32 %s33, %s40
      %p282 = scmp.eq.s32.totalorder %s281, 0
      %s284 = sadd.s32 %s283, 1
      %s285 = scalar_select %p282, %s283, %s284
      %p288 = pneg %p282
      %p289 = scmp.eq.s32.totalorder %s33, 1
      %p290 = por %p288, %p289
      %p291 = scmp.ne.s32.totalorder %s283, %s286
      %p292 = scmp.eq.s32.totalorder %s33, 0
      %p293 = por %p291, %p292
      %p294 = scmp.ne.s32.totalorder %s283, %s286
      %p295 = scmp.eq.s32.totalorder %s38, 1
      %p296 = por %p294, %p295
      %p297 = scmp.ne.s32.totalorder %s286, %s287
      %p298 = scmp.eq.s32.totalorder %s38, 0
      %p299 = por %p297, %p298
      %p300 = scmp.ne.s32.totalorder %s286, %s287
      %p301 = scmp.eq.s32.totalorder %s39, 1
      %p302 = por %p300, %p301
      %p304 = scmp.ne.s32.totalorder %s287, %s303
      %p305 = scmp.eq.s32.totalorder %s39, 0
      %p306 = por %p304, %p305
      %s307 = ssub.s32 %s33, %s40
      %p308 = scmp.eq.s32.totalorder %s307, 0
      %s310 = sadd.s32 %s309, 1
      %s311 = scalar_select %p308, %s309, %s310
      %p314 = pneg %p308
      %p315 = scmp.eq.s32.totalorder %s33, 1
      %p316 = por %p314, %p315
      %p317 = scmp.ne.s32.totalorder %s309, %s312
      %p318 = scmp.eq.s32.totalorder %s33, 0
      %p319 = por %p317, %p318
      %p320 = scmp.ne.s32.totalorder %s309, %s312
      %p321 = scmp.eq.s32.totalorder %s38, 1
      %p322 = por %p320, %p321
      %p323 = scmp.ne.s32.totalorder %s312, %s313
      %p324 = scmp.eq.s32.totalorder %s38, 0
      %p325 = por %p323, %p324
      %p326 = scmp.ne.s32.totalorder %s312, %s313
      %p327 = scmp.eq.s32.totalorder %s39, 1
      %p328 = por %p326, %p327
      %p330 = scmp.ne.s32.totalorder %s313, %s329
      %p331 = scmp.eq.s32.totalorder %s39, 0
      %p332 = por %p330, %p331
      %s333 = ssub.s32 %s33, %s40
      %p334 = scmp.eq.s32.totalorder %s333, 0
      %s336 = sadd.s32 %s335, 1
      %s337 = scalar_select %p334, %s335, %s336
      %p340 = pneg %p334
      %p341 = scmp.eq.s32.totalorder %s33, 1
      %p342 = por %p340, %p341
      %p343 = scmp.ne.s32.totalorder %s335, %s338
      %p344 = scmp.eq.s32.totalorder %s33, 0
      %p345 = por %p343, %p344
      %p346 = scmp.ne.s32.totalorder %s335, %s338
      %p347 = scmp.eq.s32.totalorder %s38, 1
      %p348 = por %p346, %p347
      %p349 = scmp.ne.s32.totalorder %s338, %s339
      %p350 = scmp.eq.s32.totalorder %s38, 0
      %p351 = por %p349, %p350
      %p352 = scmp.ne.s32.totalorder %s338, %s339
      %p353 = scmp.eq.s32.totalorder %s39, 1
      %p354 = por %p352, %p353
      %p356 = scmp.ne.s32.totalorder %s339, %s355
      %p357 = scmp.eq.s32.totalorder %s39, 0
      %p358 = por %p356, %p357
      %s359 = ssub.s32 %s33, %s40
      %p360 = scmp.eq.s32.totalorder %s359, 0
      %s362 = sadd.s32 %s361, 1
      %s363 = scalar_select %p360, %s361, %s362
      %p366 = pneg %p360
      %p367 = scmp.eq.s32.totalorder %s33, 1
      %p368 = por %p366, %p367
      %p369 = scmp.ne.s32.totalorder %s361, %s364
      %p370 = scmp.eq.s32.totalorder %s33, 0
      %p371 = por %p369, %p370
      %p372 = scmp.ne.s32.totalorder %s361, %s364
      %p373 = scmp.eq.s32.totalorder %s38, 1
      %p374 = por %p372, %p373
      %p375 = scmp.ne.s32.totalorder %s364, %s365
      %p376 = scmp.eq.s32.totalorder %s38, 0
      %p377 = por %p375, %p376
      %p378 = scmp.ne.s32.totalorder %s364, %s365
      %p379 = scmp.eq.s32.totalorder %s39, 1
      %p380 = por %p378, %p379
      %p382 = scmp.ne.s32.totalorder %s365, %s381
      %p383 = scmp.eq.s32.totalorder %s39, 0
      %p384 = por %p382, %p383
      %s385 = ssub.s32 %s33, %s40
      %p386 = scmp.eq.s32.totalorder %s385, 0
      %s388 = sadd.s32 %s387, 1
      %s389 = scalar_select %p386, %s387, %s388
      %p392 = pneg %p386
      %p393 = scmp.eq.s32.totalorder %s33, 1
      %p394 = por %p392, %p393
      %p395 = scmp.ne.s32.totalorder %s387, %s390
      %p396 = scmp.eq.s32.totalorder %s33, 0
      %p397 = por %p395, %p396
      %p398 = scmp.ne.s32.totalorder %s387, %s390
      %p399 = scmp.eq.s32.totalorder %s38, 1
      %p400 = por %p398, %p399
      %p401 = scmp.ne.s32.totalorder %s390, %s391
      %p402 = scmp.eq.s32.totalorder %s38, 0
      %p403 = por %p401, %p402
      %p404 = scmp.ne.s32.totalorder %s390, %s391
      %p405 = scmp.eq.s32.totalorder %s39, 1
      %p406 = por %p404, %p405
      %p408 = scmp.ne.s32.totalorder %s391, %s407
      %p409 = scmp.eq.s32.totalorder %s39, 0
      %p410 = por %p408, %p409
      %s411 = ssub.s32 %s33, %s40
      %p412 = scmp.eq.s32.totalorder %s411, 0
      %s414 = sadd.s32 %s413, 1
      %s415 = scalar_select %p412, %s413, %s414
      %p418 = pneg %p412
      %p419 = scmp.eq.s32.totalorder %s33, 1
      %p420 = por %p418, %p419
      %p421 = scmp.ne.s32.totalorder %s413, %s416
      %p422 = scmp.eq.s32.totalorder %s33, 0
      %p423 = por %p421, %p422
      %p424 = scmp.ne.s32.totalorder %s413, %s416
      %p425 = scmp.eq.s32.totalorder %s38, 1
      %p426 = por %p424, %p425
      %p427 = scmp.ne.s32.totalorder %s416, %s417
      %p428 = scmp.eq.s32.totalorder %s38, 0
      %p429 = por %p427, %p428
      %p430 = scmp.ne.s32.totalorder %s416, %s417
      %p431 = scmp.eq.s32.totalorder %s39, 1
      %p432 = por %p430, %p431
      %p434 = scmp.ne.s32.totalorder %s417, %s433
      %p435 = scmp.eq.s32.totalorder %s39, 0
      %p436 = por %p434, %p435
      %s438 = sadd.s32 %s437, 1
      %p441 = scmp.eq.s32.totalorder %s33, 1
      %p442 = scmp.ne.s32.totalorder %s437, %s439
      %p443 = scmp.eq.s32.totalorder %s33, 0
      %p444 = por %p442, %p443
      %p445 = scmp.ne.s32.totalorder %s437, %s439
      %p446 = scmp.eq.s32.totalorder %s38, 1
      %p447 = por %p445, %p446
      %p448 = scmp.ne.s32.totalorder %s439, %s440
      %p449 = scmp.eq.s32.totalorder %s38, 0
      %p450 = por %p448, %p449
      %p451 = scmp.ne.s32.totalorder %s439, %s440
      %p452 = scmp.eq.s32.totalorder %s39, 1
      %p453 = por %p451, %p452
      %p455 = scmp.ne.s32.totalorder %s440, %s454
      %p456 = scmp.eq.s32.totalorder %s39, 0
      %p457 = por %p455, %p456
      %s459 = sadd.s32 %s458, 1
      %p462 = scmp.eq.s32.totalorder %s33, 1
      %p463 = scmp.ne.s32.totalorder %s458, %s460
      %p464 = scmp.eq.s32.totalorder %s33, 0
      %p465 = por %p463, %p464
      %p466 = scmp.ne.s32.totalorder %s458, %s460
      %p467 = scmp.eq.s32.totalorder %s38, 1
      %p468 = por %p466, %p467
      %p469 = scmp.ne.s32.totalorder %s460, %s461
      %p470 = scmp.eq.s32.totalorder %s38, 0
      %p471 = por %p469, %p470
      %p472 = scmp.ne.s32.totalorder %s460, %s461
      %p473 = scmp.eq.s32.totalorder %s39, 1
      %p474 = por %p472, %p473
      %p476 = scmp.ne.s32.totalorder %s461, %s475
      %p477 = scmp.eq.s32.totalorder %s39, 0
      %p478 = por %p476, %p477
      %p479 = scmp.le.s32.totalorder 1, %s33
      %p480 = scmp.lt.s32.totalorder %s33, 3
      %p481 = pnand %p479, %p480
      %p482 = pneg %p481
      // Predicated region
      $region9: #{language_mixer_forward.3} parent=5 // pred_check
        _
      $region10: #{language_mixer_forward.3} parent=5 // pred_check_branch
        %484 = sbr.rel (%p481) target = $region12
      $region11: #{language_mixer_forward.3} parent=5 // pred_region
        %s485 = ssub.s32 %s33, 1
        // Predicated region
        $region13: #{language_mixer_forward.3} parent=11 // pred_check
          %p486 = pneg %p54
        $region14: #{language_mixer_forward.3} parent=11 // pred_check_branch
          %488 = sbr.rel (%p486) target = $region16
        $region15: #{language_mixer_forward.3} parent=11 // pred_region
          _
        $region16: #{language_mixer_forward.3} parent=11 // pred_fallthru
          _
        // Predicated region
        $region17: #{language_mixer_forward.3} parent=11 // pred_check
          %p489 = pneg %p75
        $region18: #{language_mixer_forward.3} parent=11 // pred_check_branch
          %491 = sbr.rel (%p489) target = $region20
        $region19: #{language_mixer_forward.3} parent=11 // pred_region
          _
        $region20: #{language_mixer_forward.3} parent=11 // pred_fallthru
          _
        // Predicated region
        $region21: #{language_mixer_forward.3} parent=11 // pred_check
          %p492 = pneg %p96
        $region22: #{language_mixer_forward.3} parent=11 // pred_check_branch
          %494 = sbr.rel (%p492) target = $region24
        $region23: #{language_mixer_forward.3} parent=11 // pred_region
          _
        $region24: #{language_mixer_forward.3} parent=11 // pred_fallthru
          _
        // Predicated region
        $region25: #{language_mixer_forward.3} parent=11 // pred_check
          %p495 = pneg %p117
        $region26: #{language_mixer_forward.3} parent=11 // pred_check_branch
          %497 = sbr.rel (%p495) target = $region28
        $region27: #{language_mixer_forward.3} parent=11 // pred_region
          _
        $region28: #{language_mixer_forward.3} parent=11 // pred_fallthru
          _
      $region12: #{language_mixer_forward.3} parent=5 // pred_fallthru
        _
      %p498 = scmp.lt.s32.totalorder %s33, 2
      // Predicated region
      $region29: #{language_mixer_forward.3} parent=5 // pred_check
        %p499 = pneg %p498
      $region30: #{language_mixer_forward.3} parent=5 // pred_check_branch
        %501 = sbr.rel (%p499) target = $region32
      $region31: #{language_mixer_forward.3} parent=5 // pred_region
        // Predicated region
        $region33: #{language_mixer_forward.3} parent=31 // pred_check
          %p502 = pneg %p137
        $region34: #{language_mixer_forward.3} parent=31 // pred_check_branch
          %504 = sbr.rel (%p502) target = $region36
        $region35: #{language_mixer_forward.3} parent=31 // pred_region
          %p505 = scmp.lt.s32.totalorder %s33, 1
          %s506 = scalar_select %p505, %s33, 1
          %s507 = smul.addr %s506, 8
          %s508 = scalar_lea.vmem %s4, %s507
        $region36: #{language_mixer_forward.3} parent=31 // pred_fallthru
          _
        // Predicated region
        $region37: #{language_mixer_forward.3} parent=31 // pred_check
          %p509 = pneg %p163
        $region38: #{language_mixer_forward.3} parent=31 // pred_check_branch
          %511 = sbr.rel (%p509) target = $region40
        $region39: #{language_mixer_forward.3} parent=31 // pred_region
          %p512 = scmp.lt.s32.totalorder %s33, 1
          %s513 = scalar_select %p512, %s33, 1
          %s514 = smul.addr %s513, 8
          %s515 = scalar_lea.vmem %s5, %s514
        $region40: #{language_mixer_forward.3} parent=31 // pred_fallthru
          _
        // Predicated region
        $region41: #{language_mixer_forward.3} parent=31 // pred_check
          %p516 = pneg %p189
        $region42: #{language_mixer_forward.3} parent=31 // pred_check_branch
          %518 = sbr.rel (%p516) target = $region44
        $region43: #{language_mixer_forward.3} parent=31 // pred_region
          %p519 = scmp.lt.s32.totalorder %s33, 1
          %s520 = scalar_select %p519, %s33, 1
          %s521 = smul.addr %s520, 8
          %s522 = scalar_lea.vmem %s6, %s521
        $region44: #{language_mixer_forward.3} parent=31 // pred_fallthru
          _
        // Predicated region
        $region45: #{language_mixer_forward.3} parent=31 // pred_check
          %p523 = pneg %p215
        $region46: #{language_mixer_forward.3} parent=31 // pred_check_branch
          %525 = sbr.rel (%p523) target = $region48
        $region47: #{language_mixer_forward.3} parent=31 // pred_region
          %p526 = scmp.lt.s32.totalorder %s33, 1
          %s527 = scalar_select %p526, %s33, 1
          %s528 = smul.addr %s527, 8
          %s529 = scalar_lea.vmem %s7, %s528
        $region48: #{language_mixer_forward.3} parent=31 // pred_fallthru
          _
        // Predicated region
        $region49: #{language_mixer_forward.3} parent=31 // pred_check
          %p530 = pneg %p241
        $region50: #{language_mixer_forward.3} parent=31 // pred_check_branch
          %532 = sbr.rel (%p530) target = $region52
        $region51: #{language_mixer_forward.3} parent=31 // pred_region
          %s533 = sand.u32 %s231, 1
          %s534 = scalar_lea.sflag [#allocation3], %s533
          %s535 = sand.u32 %s231, 1
          %s536 = smul.addr %s535, 512
          %s537 = scalar_lea.vmem [#allocation2], %s536
          %s539 = ssub.s32 8192, 8192
          %540 = vsyncadd %s534, %s539
          %s541 = smul.addr %s33, 64
          %s542 = smul.addr %s541, 128
          %s543 = scalar_lea.hbm %s8, %s542
          %s544 = sshll.u32 %s537, 4
          %s545 = int_to_ptr.vmem [resolvable:$true] %s544
          %550 = dma.hbm_to_vmem [thread:$0]  %s543, 8192, %s545, %s534, 128, 128, 8
        $region52: #{language_mixer_forward.3} parent=31 // pred_fallthru
          _
        // Predicated region
        $region53: #{language_mixer_forward.3} parent=31 // pred_check
          %p551 = pneg %p267
        $region54: #{language_mixer_forward.3} parent=31 // pred_check_branch
          %553 = sbr.rel (%p551) target = $region56
        $region55: #{language_mixer_forward.3} parent=31 // pred_region
          %s554 = sand.u32 %s33, 1
          %s555 = scalar_lea.sflag [#allocation5], %s554
          %s556 = sand.u32 %s257, 1
          %s557 = smul.addr %s556, 512
          %s558 = scalar_lea.vmem [#allocation4], %s557
          %s560 = ssub.s32 8192, 8192
          %561 = vsyncadd %s555, %s560
          %s562 = smul.addr %s33, 64
          %s563 = smul.addr %s562, 128
          %s564 = scalar_lea.hbm %s9, %s563
          %s565 = sshll.u32 %s558, 4
          %s566 = int_to_ptr.vmem [resolvable:$true] %s565
          %571 = dma.hbm_to_vmem [thread:$0]  %s564, 8192, %s566, %s555, 128, 128, 8
        $region56: #{language_mixer_forward.3} parent=31 // pred_fallthru
          _
        // Predicated region
        $region57: #{language_mixer_forward.3} parent=31 // pred_check
          %p572 = pneg %p293
        $region58: #{language_mixer_forward.3} parent=31 // pred_check_branch
          %574 = sbr.rel (%p572) target = $region60
        $region59: #{language_mixer_forward.3} parent=31 // pred_region
          %p575 = scmp.lt.s32.totalorder %s33, 1
          %s576 = scalar_select %p575, %s33, 1
          %s577 = smul.addr %s576, 4
          %s578 = scalar_lea.vmem %s10, %s577
        $region60: #{language_mixer_forward.3} parent=31 // pred_fallthru
          _
        // Predicated region
        $region61: #{language_mixer_forward.3} parent=31 // pred_check
          %p579 = pneg %p319
        $region62: #{language_mixer_forward.3} parent=31 // pred_check_branch
          %581 = sbr.rel (%p579) target = $region64
        $region63: #{language_mixer_forward.3} parent=31 // pred_region
          %p582 = scmp.lt.s32.totalorder %s33, 1
          %s583 = scalar_select %p582, %s33, 1
          %s584 = smul.addr %s583, 4
          %s585 = scalar_lea.vmem %s11, %s584
        $region64: #{language_mixer_forward.3} parent=31 // pred_fallthru
          _
        // Predicated region
        $region65: #{language_mixer_forward.3} parent=31 // pred_check
          %p586 = pneg %p345
        $region66: #{language_mixer_forward.3} parent=31 // pred_check_branch
          %588 = sbr.rel (%p586) target = $region68
        $region67: #{language_mixer_forward.3} parent=31 // pred_region
          %s589 = sand.u32 %s33, 1
          %s590 = scalar_lea.sflag [#allocation5], %s589
          %s591 = sand.u32 %s335, 1
          %s592 = smul.addr %s591, 512
          %s593 = scalar_lea.vmem [#allocation6], %s592
          %s595 = ssub.s32 8192, 8192
          %596 = vsyncadd %s590, %s595
          %s597 = smul.addr %s33, 64
          %s598 = smul.addr %s597, 128
          %s599 = scalar_lea.hbm %s12, %s598
          %s600 = sshll.u32 %s593, 4
          %s601 = int_to_ptr.vmem [resolvable:$true] %s600
          %606 = dma.hbm_to_vmem [thread:$0]  %s599, 8192, %s601, %s590, 512, 512, 32
        $region68: #{language_mixer_forward.3} parent=31 // pred_fallthru
          _
        // Predicated region
        $region69: #{language_mixer_forward.3} parent=31 // pred_check
          %p607 = pneg %p371
        $region70: #{language_mixer_forward.3} parent=31 // pred_check_branch
          %609 = sbr.rel (%p607) target = $region72
        $region71: #{language_mixer_forward.3} parent=31 // pred_region
          %s610 = sand.u32 %s361, 1
          %s611 = scalar_lea.sflag [#allocation8], %s610
          %s612 = sand.u32 %s361, 1
          %s613 = smul.addr %s612, 512
          %s614 = scalar_lea.vmem [#allocation7], %s613
          %s616 = ssub.s32 8192, 8192
          %617 = vsyncadd %s611, %s616
          %s618 = smul.addr %s33, 64
          %s619 = smul.addr %s618, 128
          %s620 = scalar_lea.hbm %s13, %s619
          %s621 = sshll.u32 %s614, 4
          %s622 = int_to_ptr.vmem [resolvable:$true] %s621
          %627 = dma.hbm_to_vmem [thread:$0]  %s620, 8192, %s622, %s611, 512, 512, 32
        $region72: #{language_mixer_forward.3} parent=31 // pred_fallthru
          _
        // Predicated region
        $region73: #{language_mixer_forward.3} parent=31 // pred_check
          %p628 = pneg %p397
        $region74: #{language_mixer_forward.3} parent=31 // pred_check_branch
          %630 = sbr.rel (%p628) target = $region76
        $region75: #{language_mixer_forward.3} parent=31 // pred_region
          %p631 = scmp.lt.s32.totalorder %s33, 1
          %s632 = scalar_select %p631, %s33, 1
          %s633 = scalar_lea.vmem %s14, %s632
        $region76: #{language_mixer_forward.3} parent=31 // pred_fallthru
          _
        // Predicated region
        $region77: #{language_mixer_forward.3} parent=31 // pred_check
          %p634 = pneg %p423
        $region78: #{language_mixer_forward.3} parent=31 // pred_check_branch
          %636 = sbr.rel (%p634) target = $region80
        $region79: #{language_mixer_forward.3} parent=31 // pred_region
          %p637 = scmp.lt.s32.totalorder %s33, 1
          %s638 = scalar_select %p637, %s33, 1
          %s639 = scalar_lea.vmem %s15, %s638
        $region80: #{language_mixer_forward.3} parent=31 // pred_fallthru
          _
      $region32: #{language_mixer_forward.3} parent=5 // pred_fallthru
        _
      %p640 = scmp.le.s32.totalorder 1, %s33
      %p641 = scmp.lt.s32.totalorder %s33, 3
      %p642 = pnand %p640, %p641
      %p643 = pneg %p642
      // Predicated region
      $region81: #{language_mixer_forward.3} parent=5 // pred_check
        _
      $region82: #{language_mixer_forward.3} parent=5 // pred_check_branch
        %645 = sbr.rel (%p642) target = $region84
      $region83: #{language_mixer_forward.3} parent=5 // pred_region
        %s646 = ssub.s32 %s33, 1
        %s647 = sand.u32 %s234, 1
        %s648 = scalar_lea.sflag [#allocation3], %s647
        %s649 = sand.u32 %s234, 1
        %s650 = smul.addr %s649, 512
        %s651 = scalar_lea.vmem [#allocation2], %s650
        // Predicated region
        $region85: #{language_mixer_forward.3} parent=83 // pred_check
          %p652 = pneg %p247
        $region86: #{language_mixer_forward.3} parent=83 // pred_check_branch
          %654 = sbr.rel (%p652) target = $region88
        $region87: #{language_mixer_forward.3} parent=83 // pred_region
          %655 = dma.done %s648, 8192
        $region88: #{language_mixer_forward.3} parent=83 // pred_fallthru
          _
        %s656 = sand.u32 %s38, 1
        %s657 = scalar_lea.sflag [#allocation5], %s656
        %s658 = sand.u32 %s260, 1
        %s659 = smul.addr %s658, 512
        %s660 = scalar_lea.vmem [#allocation4], %s659
        // Predicated region
        $region89: #{language_mixer_forward.3} parent=83 // pred_check
          %p661 = pneg %p273
        $region90: #{language_mixer_forward.3} parent=83 // pred_check_branch
          %663 = sbr.rel (%p661) target = $region92
        $region91: #{language_mixer_forward.3} parent=83 // pred_region
          %664 = dma.done %s657, 8192
        $region92: #{language_mixer_forward.3} parent=83 // pred_fallthru
          _
        %s665 = sand.u32 %s38, 1
        %s666 = scalar_lea.sflag [#allocation5], %s665
        %s667 = sand.u32 %s338, 1
        %s668 = smul.addr %s667, 512
        %s669 = scalar_lea.vmem [#allocation6], %s668
        // Predicated region
        $region93: #{language_mixer_forward.3} parent=83 // pred_check
          %p670 = pneg %p351
        $region94: #{language_mixer_forward.3} parent=83 // pred_check_branch
          %672 = sbr.rel (%p670) target = $region96
        $region95: #{language_mixer_forward.3} parent=83 // pred_region
          %673 = dma.done %s666, 8192
        $region96: #{language_mixer_forward.3} parent=83 // pred_fallthru
          _
        %s674 = sand.u32 %s364, 1
        %s675 = scalar_lea.sflag [#allocation8], %s674
        %s676 = sand.u32 %s364, 1
        %s677 = smul.addr %s676, 512
        %s678 = scalar_lea.vmem [#allocation7], %s677
        // Predicated region
        $region97: #{language_mixer_forward.3} parent=83 // pred_check
          %p679 = pneg %p377
        $region98: #{language_mixer_forward.3} parent=83 // pred_check_branch
          %681 = sbr.rel (%p679) target = $region100
        $region99: #{language_mixer_forward.3} parent=83 // pred_region
          %682 = dma.done %s675, 8192
        $region100: #{language_mixer_forward.3} parent=83 // pred_fallthru
          _
        %p683 = pneg %p54
        %p684 = pneg %p51
        %p685 = pneg %p75
        %p686 = pneg %p72
        %p687 = pneg %p96
        %p688 = pneg %p93
        %p689 = pneg %p117
        %p690 = pneg %p114
        %p691 = scmp.lt.s32.totalorder %s38, 1
        %s692 = scalar_select %p691, %s38, 1
        %s693 = smul.addr %s692, 8
        %s694 = scalar_lea.vmem %s4, %s693
        %p695 = pneg %p143
        %p696 = pneg %p140
        %p697 = scmp.lt.s32.totalorder %s38, 1
        %s698 = scalar_select %p697, %s38, 1
        %s699 = smul.addr %s698, 8
        %s700 = scalar_lea.vmem %s5, %s699
        %p701 = pneg %p169
        %p702 = pneg %p166
        %p703 = scmp.lt.s32.totalorder %s38, 1
        %s704 = scalar_select %p703, %s38, 1
        %s705 = smul.addr %s704, 8
        %s706 = scalar_lea.vmem %s6, %s705
        %p707 = pneg %p195
        %p708 = pneg %p192
        %p709 = scmp.lt.s32.totalorder %s38, 1
        %s710 = scalar_select %p709, %s38, 1
        %s711 = smul.addr %s710, 8
        %s712 = scalar_lea.vmem %s7, %s711
        %p713 = pneg %p221
        %p714 = pneg %p218
        %s715 = sand.u32 %s234, 1
        %s716 = scalar_lea.sflag [#allocation3], %s715
        %s717 = sand.u32 %s234, 1
        %s718 = smul.addr %s717, 512
        %s719 = scalar_lea.vmem [#allocation2], %s718
        %p720 = pneg %p247
        %p721 = pneg %p244
        %s722 = sand.u32 %s38, 1
        %s723 = scalar_lea.sflag [#allocation5], %s722
        %s724 = sand.u32 %s260, 1
        %s725 = smul.addr %s724, 512
        %s726 = scalar_lea.vmem [#allocation4], %s725
        %p727 = pneg %p273
        %p728 = pneg %p270
        %p729 = scmp.lt.s32.totalorder %s38, 1
        %s730 = scalar_select %p729, %s38, 1
        %s731 = smul.addr %s730, 4
        %s732 = scalar_lea.vmem %s10, %s731
        %p733 = pneg %p299
        %p734 = pneg %p296
        %p735 = scmp.lt.s32.totalorder %s38, 1
        %s736 = scalar_select %p735, %s38, 1
        %s737 = smul.addr %s736, 4
        %s738 = scalar_lea.vmem %s11, %s737
        %p739 = pneg %p325
        %p740 = pneg %p322
        %s741 = sand.u32 %s38, 1
        %s742 = scalar_lea.sflag [#allocation5], %s741
        %s743 = sand.u32 %s338, 1
        %s744 = smul.addr %s743, 512
        %s745 = scalar_lea.vmem [#allocation6], %s744
        %p746 = pneg %p351
        %p747 = pneg %p348
        %s748 = sand.u32 %s364, 1
        %s749 = scalar_lea.sflag [#allocation8], %s748
        %s750 = sand.u32 %s364, 1
        %s751 = smul.addr %s750, 512
        %s752 = scalar_lea.vmem [#allocation7], %s751
        %p753 = pneg %p377
        %p754 = pneg %p374
        %p755 = scmp.lt.s32.totalorder %s38, 1
        %s756 = scalar_select %p755, %s38, 1
        %s757 = scalar_lea.vmem %s14, %s756
        %p758 = pneg %p403
        %p759 = pneg %p400
        %p760 = scmp.lt.s32.totalorder %s38, 1
        %s761 = scalar_select %p760, %s38, 1
        %s762 = scalar_lea.vmem %s15, %s761
        %p763 = pneg %p429
        %p764 = pneg %p426
        %p765 = pneg %p450
        %p766 = pneg %p447
        %p767 = pneg %p471
        %p768 = pneg %p468
        %p769 = scmp.lt.s32.totalorder %s38, 1
        %s770 = scalar_select %p769, %s38, 1
        %s771 = smul.addr %s770, 8
        %s772 = scalar_lea.vmem %s4, %s771
        %p773 = scmp.lt.s32.totalorder %s38, 1
        %s774 = scalar_select %p773, %s38, 1
        %s775 = smul.addr %s774, 8
        %s776 = scalar_lea.vmem %s5, %s775
        %p777 = scmp.lt.s32.totalorder %s38, 1
        %s778 = scalar_select %p777, %s38, 1
        %s779 = smul.addr %s778, 8
        %s780 = scalar_lea.vmem %s6, %s779
        %p781 = scmp.lt.s32.totalorder %s38, 1
        %s782 = scalar_select %p781, %s38, 1
        %s783 = smul.addr %s782, 8
        %s784 = scalar_lea.vmem %s7, %s783
        %p785 = scmp.lt.s32.totalorder %s38, 1
        %s786 = scalar_select %p785, %s38, 1
        %s787 = smul.addr %s786, 4
        %s788 = scalar_lea.vmem %s10, %s787
        %p789 = scmp.lt.s32.totalorder %s38, 1
        %s790 = scalar_select %p789, %s38, 1
        %s791 = smul.addr %s790, 4
        %s792 = scalar_lea.vmem %s11, %s791
        %p793 = scmp.lt.s32.totalorder %s38, 1
        %s794 = scalar_select %p793, %s38, 1
        %s795 = scalar_lea.vmem %s14, %s794
        %p796 = scmp.lt.s32.totalorder %s38, 1
        %s797 = scalar_select %p796, %s38, 1
        %s798 = scalar_lea.vmem %s15, %s797
        %p800 = scmp.eq.s32.totalorder %s38, 0
        // Predicated region
        $region101: #{language_mixer_forward.3} parent=83 // pred_check
          %p801 = pneg %p800
        $region102: #{language_mixer_forward.3} parent=83 // pred_check_branch
          %803 = sbr.rel (%p801) target = $region104
        $region103: #{language_mixer_forward.3} parent=83 // pred_region
          %v804 = vld [vmem:[%s0] sm:$0xff]
          %v805 = vld [vmem:[%s0 + $0x8] sm:$0xff]
          %806 = vst [vmem:[%s16] sm:$0xff] %v804
          %807 = vst [vmem:[%s16 + $0x8] sm:$0xff] %v805
          %v808 = vld [vmem:[%s1] sm:$0xff]
          %v809 = vld [vmem:[%s1 + $0x8] sm:$0xff]
          %810 = vst [vmem:[%s17] sm:$0xff] %v808
          %811 = vst [vmem:[%s17 + $0x8] sm:$0xff] %v809
        $region104: #{language_mixer_forward.3} parent=83 // pred_fallthru
          _
        %v812 = vld [vmem:[%s16] sm:$0xff]
        %v813 = vld [vmem:[%s16 + $0x8] sm:$0xff]
        %v814 = vld [vmem:[%s2] sm:$0xff]
        %v815 = vadd.f32 %v812, %v814
        %v816 = vadd.f32 %v813, %v814
        %v817 = vld [vmem:[%s17] sm:$0xff]
        %v818 = vld [vmem:[%s17 + $0x8] sm:$0xff]
        %v819 = vld [vmem:[%s3] sm:$0xff]
        %v820 = vadd.f32 %v817, %v819
        %v821 = vadd.f32 %v818, %v819
        %v822 = vmul.f32 %v815, %v815
        %v823 = vmul.f32 %v816, %v816
        %v824 = vmul.f32 %v820, %v820
        %v825 = vmul.f32 %v821, %v821
        %v826 = vadd.f32 %v822, %v824
        %v827 = vadd.f32 %v823, %v825
        %v828 = vrsqrt.pop %v826
        %v829 = vmul.f32 %v826, %v828
        %vm830 = vcmp.eq.f32.partialorder %v826, inf
        %v831 = vsel %vm830, %v826, %v829
        %vm832 = vcmp.eq.f32.partialorder %v826, 0.0
        %v833 = vand.u32 %v826, 2147483648
        %v834 = vsel %vm832, %v833, %v831
        %v835 = vrsqrt.pop %v827
        %v836 = vmul.f32 %v827, %v835
        %vm837 = vcmp.eq.f32.partialorder %v827, inf
        %v838 = vsel %vm837, %v827, %v836
        %vm839 = vcmp.eq.f32.partialorder %v827, 0.0
        %v840 = vand.u32 %v827, 2147483648
        %v841 = vsel %vm839, %v840, %v838
        %v842 = vadd.f32 %v834, %v841
        %843 = vadd.xlane.f32.xlu0 %v842
        %v844 = vpop.xlane.xlu0 %843
        %v845 = vrot.slane %v844, 4
        %v846 = vadd.f32 %v844, %v845
        %v847 = vrot.slane %v846, 2
        %v848 = vadd.f32 %v846, %v847
        %v849 = vrot.slane %v848, 1
        %v850 = vadd.f32 %v848, %v849
        %s851 = vtos %v850
        %v852 = vrcp.pop 2048.0
        %s853 = vtos %v852
        %s854 = smul.f32 %s851, %s853
        %v855 = vadd.f32 %v826, %v827
        %856 = vadd.xlane.f32.xlu0 %v855
        %v857 = vpop.xlane.xlu0 %856
        %v858 = vrot.slane %v857, 4
        %v859 = vadd.f32 %v857, %v858
        %v860 = vrot.slane %v859, 2
        %v861 = vadd.f32 %v859, %v860
        %v862 = vrot.slane %v861, 1
        %v863 = vadd.f32 %v861, %v862
        %s864 = vtos %v863
        %s865 = smul.f32 %s854, 2048.0
        %s866 = smul.f32 %s865, %s854
        %s867 = ssub.f32 %s864, %s866
        %v868 = vrcp.pop 2047.0
        %s869 = vtos %v868
        %s870 = smul.f32 %s867, %s869
        %s871 = sadd.f32 %s870, 1e-06
        %v872 = vstv %s871
        %v873 = vrsqrt.pop %v872
        %v874 = vmul.f32 %v872, %v873
        %vm875 = vcmp.eq.f32.partialorder %v872, inf
        %v876 = vsel %vm875, %v872, %v874
        %vm877 = vcmp.eq.f32.partialorder %v872, 0.0
        %v878 = vand.u32 %v872, 2147483648
        %v879 = vsel %vm877, %v878, %v876
        %s880 = vtos %v879
        %s881 = smul.f32 %s854, %s880
        %v882 = vstv %s881
        %v883 = vrcp.pop %v882
        %s884 = vtos %v883
        %s885 = smul.f32 2.0, %s884
        %v886 = vstv %s885
        %v887 = vmul.f32 %v815, %v886
        %v888 = vmul.f32 %v816, %v886
        %v889 = vmul.f32 %v820, %v886
        %v890 = vmul.f32 %v821, %v886
        %v891 = vld [vmem:[%s772] sm:$0xff]
        %v892 = vld [vmem:[%s776] sm:$0xff]
        %v893 = vpack.c.bf16 %v891, %v891
        %v894 = vpack.c.bf16 %v892, %v892
        %v895 = vadd.f32 %v891, %v892
        %v896 = vpack.c.bf16 %v895, %v895
        %v897 = vpack.c.bf16 %v887, %v887
        %v898 = vpack.c.bf16 %v888, %v888
        %vm899 = vcmask 64512
        %v901 = vsel %vm899, %v893, 0
        %vm903 = vcmask 1043456
        %v905 = vsel %vm903, %v897, 0
        %907 = vmatprep.subr.bf16.mxu0 0
        %908 = vmatpush1.bf16.msra.mxu0 %v905
        %909 = vmatprep.subr.bf16.mxu0 0
        %910 = vmatpush1.bf16.msra.mxu0 0
        %911 = vmatprep.subr.bf16.mxu0 0
        %912 = vmatpush1.bf16.msra.mxu0 0
        %913 = vmatprep.subr.bf16.mxu0 0
        %914 = vmatpush1.bf16.msra.mxu0 0
        %915 = vmatprep.subr.bf16.mxu0 0
        %916 = vmatpush1.bf16.msra.mxu0 0
        %917 = vmatprep.subr.bf16.mxu0 0
        %918 = vmatpush1.bf16.msra.mxu0 0
        %919 = vmatprep.subr.bf16.mxu0 0
        %920 = vmatpush1.bf16.msra.mxu0 0
        %921 = vmatprep.subr.bf16.mxu0 0
        %922 = vmatpush1.bf16.msra.mxu0 0
        %923 = vmatprep.subr.bf16.mxu0 0
        %924 = vmatpush1.bf16.msra.mxu0 0
        %925 = vmatprep.subr.bf16.mxu0 0
        %926 = vmatpush1.bf16.msra.mxu0 0
        %927 = vmatprep.subr.bf16.mxu0 0
        %928 = vmatpush1.bf16.msra.mxu0 0
        %929 = vmatprep.subr.bf16.mxu0 0
        %930 = vmatpush1.bf16.msra.mxu0 0
        %931 = vmatprep.subr.bf16.mxu0 0
        %932 = vmatpush1.bf16.msra.mxu0 0
        %933 = vmatprep.subr.bf16.mxu0 0
        %934 = vmatpush1.bf16.msra.mxu0 0
        %935 = vmatprep.subr.bf16.mxu0 0
        %936 = vmatpush1.bf16.msra.mxu0 0
        %937 = vmatprep.subr.bf16.mxu0 0
        %938 = vmatpush1.bf16.msra.mxu0 0
        %939 = vmatprep.mubr.bf16.mxu0 0
        %940 = vmatmul.mubr.bf16.gmra.mrb[0].mxu0 %v901
        %v941 = vpop.f32.mrb[0].mxu0
        %v942 = vadd.f32 0.0, %v941
        %v943 = vpop.f32.mrb[0].mxu0
        %v944 = vpop.f32.mrb[0].mxu0
        %v945 = vpop.f32.mrb[0].mxu0
        %946 = vdwg.mxu0
        %v948 = vsel %vm903, %v898, 0
        %950 = vmatprep.subr.bf16.mxu0 0
        %951 = vmatpush1.bf16.msra.mxu0 %v948
        %952 = vmatprep.subr.bf16.mxu0 0
        %953 = vmatpush1.bf16.msra.mxu0 0
        %954 = vmatprep.subr.bf16.mxu0 0
        %955 = vmatpush1.bf16.msra.mxu0 0
        %956 = vmatprep.subr.bf16.mxu0 0
        %957 = vmatpush1.bf16.msra.mxu0 0
        %958 = vmatprep.subr.bf16.mxu0 0
        %959 = vmatpush1.bf16.msra.mxu0 0
        %960 = vmatprep.subr.bf16.mxu0 0
        %961 = vmatpush1.bf16.msra.mxu0 0
        %962 = vmatprep.subr.bf16.mxu0 0
        %963 = vmatpush1.bf16.msra.mxu0 0
        %964 = vmatprep.subr.bf16.mxu0 0
        %965 = vmatpush1.bf16.msra.mxu0 0
        %966 = vmatprep.subr.bf16.mxu0 0
        %967 = vmatpush1.bf16.msra.mxu0 0
        %968 = vmatprep.subr.bf16.mxu0 0
        %969 = vmatpush1.bf16.msra.mxu0 0
        %970 = vmatprep.subr.bf16.mxu0 0
        %971 = vmatpush1.bf16.msra.mxu0 0
        %972 = vmatprep.subr.bf16.mxu0 0
        %973 = vmatpush1.bf16.msra.mxu0 0
        %974 = vmatprep.subr.bf16.mxu0 0
        %975 = vmatpush1.bf16.msra.mxu0 0
        %976 = vmatprep.subr.bf16.mxu0 0
        %977 = vmatpush1.bf16.msra.mxu0 0
        %978 = vmatprep.subr.bf16.mxu0 0
        %979 = vmatpush1.bf16.msra.mxu0 0
        %980 = vmatprep.subr.bf16.mxu0 0
        %981 = vmatpush1.bf16.msra.mxu0 0
        %982 = vmatprep.mubr.bf16.mxu0 0
        %983 = vmatmul.mubr.bf16.gmra.mrb[0].mxu0 %v901
        %v984 = vpop.f32.mrb[0].mxu0
        %v985 = vadd.f32 0.0, %v984
        %v986 = vpop.f32.mrb[0].mxu0
        %v987 = vpop.f32.mrb[0].mxu0
        %v988 = vpop.f32.mrb[0].mxu0
        %989 = vdwg.mxu0
        %v990 = vpack.c.bf16 %v889, %v889
        %v991 = vpack.c.bf16 %v890, %v890
        %v993 = vsel %vm899, %v894, 0
        %v996 = vsel %vm903, %v990, 0
        %998 = vmatprep.subr.bf16.mxu0 0
        %999 = vmatpush1.bf16.msra.mxu0 %v996
        %1000 = vmatprep.subr.bf16.mxu0 0
        %1001 = vmatpush1.bf16.msra.mxu0 0
        %1002 = vmatprep.subr.bf16.mxu0 0
        %1003 = vmatpush1.bf16.msra.mxu0 0
        %1004 = vmatprep.subr.bf16.mxu0 0
        %1005 = vmatpush1.bf16.msra.mxu0 0
        %1006 = vmatprep.subr.bf16.mxu0 0
        %1007 = vmatpush1.bf16.msra.mxu0 0
        %1008 = vmatprep.subr.bf16.mxu0 0
        %1009 = vmatpush1.bf16.msra.mxu0 0
        %1010 = vmatprep.subr.bf16.mxu0 0
        %1011 = vmatpush1.bf16.msra.mxu0 0
        %1012 = vmatprep.subr.bf16.mxu0 0
        %1013 = vmatpush1.bf16.msra.mxu0 0
        %1014 = vmatprep.subr.bf16.mxu0 0
        %1015 = vmatpush1.bf16.msra.mxu0 0
        %1016 = vmatprep.subr.bf16.mxu0 0
        %1017 = vmatpush1.bf16.msra.mxu0 0
        %1018 = vmatprep.subr.bf16.mxu0 0
        %1019 = vmatpush1.bf16.msra.mxu0 0
        %1020 = vmatprep.subr.bf16.mxu0 0
        %1021 = vmatpush1.bf16.msra.mxu0 0
        %1022 = vmatprep.subr.bf16.mxu0 0
        %1023 = vmatpush1.bf16.msra.mxu0 0
        %1024 = vmatprep.subr.bf16.mxu0 0
        %1025 = vmatpush1.bf16.msra.mxu0 0
        %1026 = vmatprep.subr.bf16.mxu0 0
        %1027 = vmatpush1.bf16.msra.mxu0 0
        %1028 = vmatprep.subr.bf16.mxu0 0
        %1029 = vmatpush1.bf16.msra.mxu0 0
        %1030 = vmatprep.mubr.bf16.mxu0 0
        %1031 = vmatmul.mubr.bf16.gmra.mrb[0].mxu0 %v993
        %v1032 = vpop.f32.mrb[0].mxu0
        %v1033 = vadd.f32 0.0, %v1032
        %v1034 = vpop.f32.mrb[0].mxu0
        %v1035 = vpop.f32.mrb[0].mxu0
        %v1036 = vpop.f32.mrb[0].mxu0
        %1037 = vdwg.mxu0
        %v1039 = vsel %vm903, %v991, 0
        %1041 = vmatprep.subr.bf16.mxu0 0
        %1042 = vmatpush1.bf16.msra.mxu0 %v1039
        %1043 = vmatprep.subr.bf16.mxu0 0
        %1044 = vmatpush1.bf16.msra.mxu0 0
        %1045 = vmatprep.subr.bf16.mxu0 0
        %1046 = vmatpush1.bf16.msra.mxu0 0
        %1047 = vmatprep.subr.bf16.mxu0 0
        %1048 = vmatpush1.bf16.msra.mxu0 0
        %1049 = vmatprep.subr.bf16.mxu0 0
        %1050 = vmatpush1.bf16.msra.mxu0 0
        %1051 = vmatprep.subr.bf16.mxu0 0
        %1052 = vmatpush1.bf16.msra.mxu0 0
        %1053 = vmatprep.subr.bf16.mxu0 0
        %1054 = vmatpush1.bf16.msra.mxu0 0
        %1055 = vmatprep.subr.bf16.mxu0 0
        %1056 = vmatpush1.bf16.msra.mxu0 0
        %1057 = vmatprep.subr.bf16.mxu0 0
        %1058 = vmatpush1.bf16.msra.mxu0 0
        %1059 = vmatprep.subr.bf16.mxu0 0
        %1060 = vmatpush1.bf16.msra.mxu0 0
        %1061 = vmatprep.subr.bf16.mxu0 0
        %1062 = vmatpush1.bf16.msra.mxu0 0
        %1063 = vmatprep.subr.bf16.mxu0 0
        %1064 = vmatpush1.bf16.msra.mxu0 0
        %1065 = vmatprep.subr.bf16.mxu0 0
        %1066 = vmatpush1.bf16.msra.mxu0 0
        %1067 = vmatprep.subr.bf16.mxu0 0
        %1068 = vmatpush1.bf16.msra.mxu0 0
        %1069 = vmatprep.subr.bf16.mxu0 0
        %1070 = vmatpush1.bf16.msra.mxu0 0
        %1071 = vmatprep.subr.bf16.mxu0 0
        %1072 = vmatpush1.bf16.msra.mxu0 0
        %1073 = vmatprep.mubr.bf16.mxu0 0
        %1074 = vmatmul.mubr.bf16.gmra.mrb[0].mxu0 %v993
        %v1075 = vpop.f32.mrb[0].mxu0
        %v1076 = vadd.f32 0.0, %v1075
        %v1077 = vpop.f32.mrb[0].mxu0
        %v1078 = vpop.f32.mrb[0].mxu0
        %v1079 = vpop.f32.mrb[0].mxu0
        %1080 = vdwg.mxu0
        %v1081 = vadd.f32 %v887, %v889
        %v1082 = vadd.f32 %v888, %v890
        %v1083 = vpack.c.bf16 %v1081, %v1081
        %v1084 = vpack.c.bf16 %v1082, %v1082
        %v1086 = vsel %vm899, %v896, 0
        %v1089 = vsel %vm903, %v1083, 0
        %1091 = vmatprep.subr.bf16.mxu0 0
        %1092 = vmatpush1.bf16.msra.mxu0 %v1089
        %1093 = vmatprep.subr.bf16.mxu0 0
        %1094 = vmatpush1.bf16.msra.mxu0 0
        %1095 = vmatprep.subr.bf16.mxu0 0
        %1096 = vmatpush1.bf16.msra.mxu0 0
        %1097 = vmatprep.subr.bf16.mxu0 0
        %1098 = vmatpush1.bf16.msra.mxu0 0
        %1099 = vmatprep.subr.bf16.mxu0 0
        %1100 = vmatpush1.bf16.msra.mxu0 0
        %1101 = vmatprep.subr.bf16.mxu0 0
        %1102 = vmatpush1.bf16.msra.mxu0 0
        %1103 = vmatprep.subr.bf16.mxu0 0
        %1104 = vmatpush1.bf16.msra.mxu0 0
        %1105 = vmatprep.subr.bf16.mxu0 0
        %1106 = vmatpush1.bf16.msra.mxu0 0
        %1107 = vmatprep.subr.bf16.mxu0 0
        %1108 = vmatpush1.bf16.msra.mxu0 0
        %1109 = vmatprep.subr.bf16.mxu0 0
        %1110 = vmatpush1.bf16.msra.mxu0 0
        %1111 = vmatprep.subr.bf16.mxu0 0
        %1112 = vmatpush1.bf16.msra.mxu0 0
        %1113 = vmatprep.subr.bf16.mxu0 0
        %1114 = vmatpush1.bf16.msra.mxu0 0
        %1115 = vmatprep.subr.bf16.mxu0 0
        %1116 = vmatpush1.bf16.msra.mxu0 0
        %1117 = vmatprep.subr.bf16.mxu0 0
        %1118 = vmatpush1.bf16.msra.mxu0 0
        %1119 = vmatprep.subr.bf16.mxu0 0
        %1120 = vmatpush1.bf16.msra.mxu0 0
        %1121 = vmatprep.subr.bf16.mxu0 0
        %1122 = vmatpush1.bf16.msra.mxu0 0
        %1123 = vmatprep.mubr.bf16.mxu0 0
        %1124 = vmatmul.mubr.bf16.gmra.mrb[0].mxu0 %v1086
        %v1125 = vpop.f32.mrb[0].mxu0
        %v1126 = vadd.f32 0.0, %v1125
        %v1127 = vpop.f32.mrb[0].mxu0
        %v1128 = vpop.f32.mrb[0].mxu0
        %v1129 = vpop.f32.mrb[0].mxu0
        %1130 = vdwg.mxu0
        %v1132 = vsel %vm903, %v1084, 0
        %1134 = vmatprep.subr.bf16.mxu0 0
        %1135 = vmatpush1.bf16.msra.mxu0 %v1132
        %1136 = vmatprep.subr.bf16.mxu0 0
        %1137 = vmatpush1.bf16.msra.mxu0 0
        %1138 = vmatprep.subr.bf16.mxu0 0
        %1139 = vmatpush1.bf16.msra.mxu0 0
        %1140 = vmatprep.subr.bf16.mxu0 0
        %1141 = vmatpush1.bf16.msra.mxu0 0
        %1142 = vmatprep.subr.bf16.mxu0 0
        %1143 = vmatpush1.bf16.msra.mxu0 0
        %1144 = vmatprep.subr.bf16.mxu0 0
        %1145 = vmatpush1.bf16.msra.mxu0 0
        %1146 = vmatprep.subr.bf16.mxu0 0
        %1147 = vmatpush1.bf16.msra.mxu0 0
        %1148 = vmatprep.subr.bf16.mxu0 0
        %1149 = vmatpush1.bf16.msra.mxu0 0
        %1150 = vmatprep.subr.bf16.mxu0 0
        %1151 = vmatpush1.bf16.msra.mxu0 0
        %1152 = vmatprep.subr.bf16.mxu0 0
        %1153 = vmatpush1.bf16.msra.mxu0 0
        %1154 = vmatprep.subr.bf16.mxu0 0
        %1155 = vmatpush1.bf16.msra.mxu0 0
        %1156 = vmatprep.subr.bf16.mxu0 0
        %1157 = vmatpush1.bf16.msra.mxu0 0
        %1158 = vmatprep.subr.bf16.mxu0 0
        %1159 = vmatpush1.bf16.msra.mxu0 0
        %1160 = vmatprep.subr.bf16.mxu0 0
        %1161 = vmatpush1.bf16.msra.mxu0 0
        %1162 = vmatprep.subr.bf16.mxu0 0
        %1163 = vmatpush1.bf16.msra.mxu0 0
        %1164 = vmatprep.subr.bf16.mxu0 0
        %1165 = vmatpush1.bf16.msra.mxu0 0
        %1166 = vmatprep.mubr.bf16.mxu0 0
        %1167 = vmatmul.mubr.bf16.gmra.mrb[0].mxu0 %v1086
        %v1168 = vpop.f32.mrb[0].mxu0
        %v1169 = vadd.f32 0.0, %v1168
        %v1170 = vpop.f32.mrb[0].mxu0
        %v1171 = vpop.f32.mrb[0].mxu0
        %v1172 = vpop.f32.mrb[0].mxu0
        %1173 = vdwg.mxu0
        %v1174 = vsub.f32 %v942, %v1033
        %v1175 = vsub.f32 %v985, %v1076
        %v1176 = vld [vmem:[%s780] sm:$0xff]
        %1178 = vset.pattern.permute.xlu0 0
        %1179 = vperm.xlu0 %1178, %v1176
        %v1180 = vpop.permute.xlu0 %1179
        %v1182 = vadd.f32 %v1174, %v1180
        %v1183 = vadd.f32 %v1175, %v1180
        %v1184 = vadd.f32 %v1182, %v815
        %v1185 = vadd.f32 %v1183, %v816
        %v1186 = vsub.f32 %v1126, %v942
        %v1187 = vsub.f32 %v1169, %v985
        %v1188 = vsub.f32 %v1186, %v1033
        %v1189 = vsub.f32 %v1187, %v1076
        %v1190 = vld [vmem:[%s784] sm:$0xff]
        %1192 = vset.pattern.permute.xlu0 0
        %1193 = vperm.xlu0 %1192, %v1190
        %v1194 = vpop.permute.xlu0 %1193
        %v1196 = vadd.f32 %v1188, %v1194
        %v1197 = vadd.f32 %v1189, %v1194
        %v1198 = vadd.f32 %v1196, %v820
        %v1199 = vadd.f32 %v1197, %v821
        %v1200 = vmul.f32 %v1184, %v1184
        %v1201 = vmul.f32 %v1185, %v1185
        %v1202 = vmul.f32 %v1198, %v1198
        %v1203 = vmul.f32 %v1199, %v1199
        %v1204 = vadd.f32 %v1200, %v1202
        %v1205 = vadd.f32 %v1201, %v1203
        %v1206 = vrsqrt.pop %v1204
        %v1207 = vmul.f32 %v1204, %v1206
        %vm1208 = vcmp.eq.f32.partialorder %v1204, inf
        %v1209 = vsel %vm1208, %v1204, %v1207
        %vm1210 = vcmp.eq.f32.partialorder %v1204, 0.0
        %v1211 = vand.u32 %v1204, 2147483648
        %v1212 = vsel %vm1210, %v1211, %v1209
        %v1213 = vrsqrt.pop %v1205
        %v1214 = vmul.f32 %v1205, %v1213
        %vm1215 = vcmp.eq.f32.partialorder %v1205, inf
        %v1216 = vsel %vm1215, %v1205, %v1214
        %vm1217 = vcmp.eq.f32.partialorder %v1205, 0.0
        %v1218 = vand.u32 %v1205, 2147483648
        %v1219 = vsel %vm1217, %v1218, %v1216
        %v1220 = vadd.f32 %v1212, %v1219
        %1221 = vadd.xlane.f32.xlu0 %v1220
        %v1222 = vpop.xlane.xlu0 %1221
        %v1223 = vrot.slane %v1222, 4
        %v1224 = vadd.f32 %v1222, %v1223
        %v1225 = vrot.slane %v1224, 2
        %v1226 = vadd.f32 %v1224, %v1225
        %v1227 = vrot.slane %v1226, 1
        %v1228 = vadd.f32 %v1226, %v1227
        %s1229 = vtos %v1228
        %v1230 = vrcp.pop 2048.0
        %s1231 = vtos %v1230
        %s1232 = smul.f32 %s1229, %s1231
        %v1233 = vadd.f32 %v1204, %v1205
        %1234 = vadd.xlane.f32.xlu0 %v1233
        %v1235 = vpop.xlane.xlu0 %1234
        %v1236 = vrot.slane %v1235, 4
        %v1237 = vadd.f32 %v1235, %v1236
        %v1238 = vrot.slane %v1237, 2
        %v1239 = vadd.f32 %v1237, %v1238
        %v1240 = vrot.slane %v1239, 1
        %v1241 = vadd.f32 %v1239, %v1240
        %s1242 = vtos %v1241
        %s1243 = smul.f32 %s1232, 2048.0
        %s1244 = smul.f32 %s1243, %s1232
        %s1245 = ssub.f32 %s1242, %s1244
        %v1246 = vrcp.pop 2047.0
        %s1247 = vtos %v1246
        %s1248 = smul.f32 %s1245, %s1247
        %s1249 = sadd.f32 %s1248, 1e-06
        %v1250 = vstv %s1249
        %v1251 = vrsqrt.pop %v1250
        %v1252 = vmul.f32 %v1250, %v1251
        %vm1253 = vcmp.eq.f32.partialorder %v1250, inf
        %v1254 = vsel %vm1253, %v1250, %v1252
        %vm1255 = vcmp.eq.f32.partialorder %v1250, 0.0
        %v1256 = vand.u32 %v1250, 2147483648
        %v1257 = vsel %vm1255, %v1256, %v1254
        %s1258 = vtos %v1257
        %s1259 = smul.f32 %s1232, %s1258
        %v1260 = vstv %s1259
        %v1261 = vrcp.pop %v1260
        %s1262 = vtos %v1261
        %s1263 = smul.f32 2.0, %s1262
        %v1264 = vstv %s1263
        %v1265 = vmul.f32 %v1184, %v1264
        %v1266 = vmul.f32 %v1185, %v1264
        %v1267 = vmul.f32 %v1198, %v1264
        %v1268 = vmul.f32 %v1199, %v1264
        %v1269 = vld [vmem:[%s651] sm:$0xff]
        %v1270 = vld [vmem:[%s651 + $0x8] sm:$0xff]
        %v1271 = vld [vmem:[%s651 + $0x10] sm:$0xff]
        %v1272 = vld [vmem:[%s651 + $0x18] sm:$0xff]
        %v1273 = vld [vmem:[%s651 + $0x20] sm:$0xff]
        %v1274 = vld [vmem:[%s651 + $0x28] sm:$0xff]
        %v1275 = vld [vmem:[%s651 + $0x30] sm:$0xff]
        %v1276 = vld [vmem:[%s651 + $0x38] sm:$0xff]
        %v1277 = vld [vmem:[%s651 + $0x40] sm:$0xff]
        %v1278 = vld [vmem:[%s651 + $0x48] sm:$0xff]
        %v1279 = vld [vmem:[%s651 + $0x50] sm:$0xff]
        %v1280 = vld [vmem:[%s651 + $0x58] sm:$0xff]
        %v1281 = vld [vmem:[%s651 + $0x60] sm:$0xff]
        %v1282 = vld [vmem:[%s651 + $0x68] sm:$0xff]
        %v1283 = vld [vmem:[%s651 + $0x70] sm:$0xff]
        %v1284 = vld [vmem:[%s651 + $0x78] sm:$0xff]
        %v1285 = vld [vmem:[%s651 + $0x80] sm:$0xff]
        %v1286 = vld [vmem:[%s651 + $0x88] sm:$0xff]
        %v1287 = vld [vmem:[%s651 + $0x90] sm:$0xff]
        %v1288 = vld [vmem:[%s651 + $0x98] sm:$0xff]
        %v1289 = vld [vmem:[%s651 + $0xa0] sm:$0xff]
        %v1290 = vld [vmem:[%s651 + $0xa8] sm:$0xff]
        %v1291 = vld [vmem:[%s651 + $0xb0] sm:$0xff]
        %v1292 = vld [vmem:[%s651 + $0xb8] sm:$0xff]
        %v1293 = vld [vmem:[%s651 + $0xc0] sm:$0xff]
        %v1294 = vld [vmem:[%s651 + $0xc8] sm:$0xff]
        %v1295 = vld [vmem:[%s651 + $0xd0] sm:$0xff]
        %v1296 = vld [vmem:[%s651 + $0xd8] sm:$0xff]
        %v1297 = vld [vmem:[%s651 + $0xe0] sm:$0xff]
        %v1298 = vld [vmem:[%s651 + $0xe8] sm:$0xff]
        %v1299 = vld [vmem:[%s651 + $0xf0] sm:$0xff]
        %v1300 = vld [vmem:[%s651 + $0xf8] sm:$0xff]
        %v1301 = vld [vmem:[%s651 + $0x100] sm:$0xff]
        %v1302 = vld [vmem:[%s651 + $0x108] sm:$0xff]
        %v1303 = vld [vmem:[%s651 + $0x110] sm:$0xff]
        %v1304 = vld [vmem:[%s651 + $0x118] sm:$0xff]
        %v1305 = vld [vmem:[%s651 + $0x120] sm:$0xff]
        %v1306 = vld [vmem:[%s651 + $0x128] sm:$0xff]
        %v1307 = vld [vmem:[%s651 + $0x130] sm:$0xff]
        %v1308 = vld [vmem:[%s651 + $0x138] sm:$0xff]
        %v1309 = vld [vmem:[%s651 + $0x140] sm:$0xff]
        %v1310 = vld [vmem:[%s651 + $0x148] sm:$0xff]
        %v1311 = vld [vmem:[%s651 + $0x150] sm:$0xff]
        %v1312 = vld [vmem:[%s651 + $0x158] sm:$0xff]
        %v1313 = vld [vmem:[%s651 + $0x160] sm:$0xff]
        %v1314 = vld [vmem:[%s651 + $0x168] sm:$0xff]
        %v1315 = vld [vmem:[%s651 + $0x170] sm:$0xff]
        %v1316 = vld [vmem:[%s651 + $0x178] sm:$0xff]
        %v1317 = vld [vmem:[%s651 + $0x180] sm:$0xff]
        %v1318 = vld [vmem:[%s651 + $0x188] sm:$0xff]
        %v1319 = vld [vmem:[%s651 + $0x190] sm:$0xff]
        %v1320 = vld [vmem:[%s651 + $0x198] sm:$0xff]
        %v1321 = vld [vmem:[%s651 + $0x1a0] sm:$0xff]
        %v1322 = vld [vmem:[%s651 + $0x1a8] sm:$0xff]
        %v1323 = vld [vmem:[%s651 + $0x1b0] sm:$0xff]
        %v1324 = vld [vmem:[%s651 + $0x1b8] sm:$0xff]
        %v1325 = vld [vmem:[%s651 + $0x1c0] sm:$0xff]
        %v1326 = vld [vmem:[%s651 + $0x1c8] sm:$0xff]
        %v1327 = vld [vmem:[%s651 + $0x1d0] sm:$0xff]
        %v1328 = vld [vmem:[%s651 + $0x1d8] sm:$0xff]
        %v1329 = vld [vmem:[%s651 + $0x1e0] sm:$0xff]
        %v1330 = vld [vmem:[%s651 + $0x1e8] sm:$0xff]
        %v1331 = vld [vmem:[%s651 + $0x1f0] sm:$0xff]
        %v1332 = vld [vmem:[%s651 + $0x1f8] sm:$0xff]
        %v1333 = vld [vmem:[%s660] sm:$0xff]
        %v1334 = vld [vmem:[%s660 + $0x8] sm:$0xff]
        %v1335 = vld [vmem:[%s660 + $0x10] sm:$0xff]
        %v1336 = vld [vmem:[%s660 + $0x18] sm:$0xff]
        %v1337 = vld [vmem:[%s660 + $0x20] sm:$0xff]
        %v1338 = vld [vmem:[%s660 + $0x28] sm:$0xff]
        %v1339 = vld [vmem:[%s660 + $0x30] sm:$0xff]
        %v1340 = vld [vmem:[%s660 + $0x38] sm:$0xff]
        %v1341 = vld [vmem:[%s660 + $0x40] sm:$0xff]
        %v1342 = vld [vmem:[%s660 + $0x48] sm:$0xff]
        %v1343 = vld [vmem:[%s660 + $0x50] sm:$0xff]
        %v1344 = vld [vmem:[%s660 + $0x58] sm:$0xff]
        %v1345 = vld [vmem:[%s660 + $0x60] sm:$0xff]
        %v1346 = vld [vmem:[%s660 + $0x68] sm:$0xff]
        %v1347 = vld [vmem:[%s660 + $0x70] sm:$0xff]
        %v1348 = vld [vmem:[%s660 + $0x78] sm:$0xff]
        %v1349 = vld [vmem:[%s660 + $0x80] sm:$0xff]
        %v1350 = vld [vmem:[%s660 + $0x88] sm:$0xff]
        %v1351 = vld [vmem:[%s660 + $0x90] sm:$0xff]
        %v1352 = vld [vmem:[%s660 + $0x98] sm:$0xff]
        %v1353 = vld [vmem:[%s660 + $0xa0] sm:$0xff]
        %v1354 = vld [vmem:[%s660 + $0xa8] sm:$0xff]
        %v1355 = vld [vmem:[%s660 + $0xb0] sm:$0xff]
        %v1356 = vld [vmem:[%s660 + $0xb8] sm:$0xff]
        %v1357 = vld [vmem:[%s660 + $0xc0] sm:$0xff]
        %v1358 = vld [vmem:[%s660 + $0xc8] sm:$0xff]
        %v1359 = vld [vmem:[%s660 + $0xd0] sm:$0xff]
        %v1360 = vld [vmem:[%s660 + $0xd8] sm:$0xff]
        %v1361 = vld [vmem:[%s660 + $0xe0] sm:$0xff]
        %v1362 = vld [vmem:[%s660 + $0xe8] sm:$0xff]
        %v1363 = vld [vmem:[%s660 + $0xf0] sm:$0xff]
        %v1364 = vld [vmem:[%s660 + $0xf8] sm:$0xff]
        %v1365 = vld [vmem:[%s660 + $0x100] sm:$0xff]
        %v1366 = vld [vmem:[%s660 + $0x108] sm:$0xff]
        %v1367 = vld [vmem:[%s660 + $0x110] sm:$0xff]
        %v1368 = vld [vmem:[%s660 + $0x118] sm:$0xff]
        %v1369 = vld [vmem:[%s660 + $0x120] sm:$0xff]
        %v1370 = vld [vmem:[%s660 + $0x128] sm:$0xff]
        %v1371 = vld [vmem:[%s660 + $0x130] sm:$0xff]
        %v1372 = vld [vmem:[%s660 + $0x138] sm:$0xff]
        %v1373 = vld [vmem:[%s660 + $0x140] sm:$0xff]
        %v1374 = vld [vmem:[%s660 + $0x148] sm:$0xff]
        %v1375 = vld [vmem:[%s660 + $0x150] sm:$0xff]
        %v1376 = vld [vmem:[%s660 + $0x158] sm:$0xff]
        %v1377 = vld [vmem:[%s660 + $0x160] sm:$0xff]
        %v1378 = vld [vmem:[%s660 + $0x168] sm:$0xff]
        %v1379 = vld [vmem:[%s660 + $0x170] sm:$0xff]
        %v1380 = vld [vmem:[%s660 + $0x178] sm:$0xff]
        %v1381 = vld [vmem:[%s660 + $0x180] sm:$0xff]
        %v1382 = vld [vmem:[%s660 + $0x188] sm:$0xff]
        %v1383 = vld [vmem:[%s660 + $0x190] sm:$0xff]
        %v1384 = vld [vmem:[%s660 + $0x198] sm:$0xff]
        %v1385 = vld [vmem:[%s660 + $0x1a0] sm:$0xff]
        %v1386 = vld [vmem:[%s660 + $0x1a8] sm:$0xff]
        %v1387 = vld [vmem:[%s660 + $0x1b0] sm:$0xff]
        %v1388 = vld [vmem:[%s660 + $0x1b8] sm:$0xff]
        %v1389 = vld [vmem:[%s660 + $0x1c0] sm:$0xff]
        %v1390 = vld [vmem:[%s660 + $0x1c8] sm:$0xff]
        %v1391 = vld [vmem:[%s660 + $0x1d0] sm:$0xff]
        %v1392 = vld [vmem:[%s660 + $0x1d8] sm:$0xff]
        %v1393 = vld [vmem:[%s660 + $0x1e0] sm:$0xff]
        %v1394 = vld [vmem:[%s660 + $0x1e8] sm:$0xff]
        %v1395 = vld [vmem:[%s660 + $0x1f0] sm:$0xff]
        %v1396 = vld [vmem:[%s660 + $0x1f8] sm:$0xff]
        %v1397 = vld [vmem:[%s788] sm:$0xf]
        %v1398 = vld [vmem:[%s792] sm:$0xf]
        %v1399 = vpack.c.bf16 %v1266, %v1265
        %v1400 = vpack.c.bf16 %v1270, %v1269
        %v1401 = vpack.c.bf16 %v1272, %v1271
        %v1402 = vpack.c.bf16 %v1274, %v1273
        %v1403 = vpack.c.bf16 %v1276, %v1275
        %v1404 = vpack.c.bf16 %v1278, %v1277
        %v1405 = vpack.c.bf16 %v1280, %v1279
        %v1406 = vpack.c.bf16 %v1282, %v1281
        %v1407 = vpack.c.bf16 %v1284, %v1283
        %v1408 = vpack.c.bf16 %v1286, %v1285
        %v1409 = vpack.c.bf16 %v1288, %v1287
        %v1410 = vpack.c.bf16 %v1290, %v1289
        %v1411 = vpack.c.bf16 %v1292, %v1291
        %v1412 = vpack.c.bf16 %v1294, %v1293
        %v1413 = vpack.c.bf16 %v1296, %v1295
        %v1414 = vpack.c.bf16 %v1298, %v1297
        %v1415 = vpack.c.bf16 %v1300, %v1299
        %v1416 = vpack.c.bf16 %v1302, %v1301
        %v1417 = vpack.c.bf16 %v1304, %v1303
        %v1418 = vpack.c.bf16 %v1306, %v1305
        %v1419 = vpack.c.bf16 %v1308, %v1307
        %v1420 = vpack.c.bf16 %v1310, %v1309
        %v1421 = vpack.c.bf16 %v1312, %v1311
        %v1422 = vpack.c.bf16 %v1314, %v1313
        %v1423 = vpack.c.bf16 %v1316, %v1315
        %v1424 = vpack.c.bf16 %v1318, %v1317
        %v1425 = vpack.c.bf16 %v1320, %v1319
        %v1426 = vpack.c.bf16 %v1322, %v1321
        %v1427 = vpack.c.bf16 %v1324, %v1323
        %v1428 = vpack.c.bf16 %v1326, %v1325
        %v1429 = vpack.c.bf16 %v1328, %v1327
        %v1430 = vpack.c.bf16 %v1330, %v1329
        %v1431 = vpack.c.bf16 %v1332, %v1331
        %1432 = vmatprep.subr.bf16.mxu0 0
        %1433 = vmatpush1.bf16.xpose.msra.mxu0 %v1400
        %1434 = vmatprep.subr.bf16.mxu0 0
        %1435 = vmatpush1.bf16.xpose.msra.mxu0 %v1401
        %1436 = vmatprep.subr.bf16.mxu0 0
        %1437 = vmatpush1.bf16.xpose.msra.mxu0 %v1402
        %1438 = vmatprep.subr.bf16.mxu0 0
        %1439 = vmatpush1.bf16.xpose.msra.mxu0 %v1403
        %1440 = vmatprep.subr.bf16.mxu0 0
        %1441 = vmatpush1.bf16.xpose.msra.mxu0 %v1404
        %1442 = vmatprep.subr.bf16.mxu0 0
        %1443 = vmatpush1.bf16.xpose.msra.mxu0 %v1405
        %1444 = vmatprep.subr.bf16.mxu0 0
        %1445 = vmatpush1.bf16.xpose.msra.mxu0 %v1406
        %1446 = vmatprep.subr.bf16.mxu0 0
        %1447 = vmatpush1.bf16.xpose.msra.mxu0 %v1407
        %1448 = vmatprep.subr.bf16.mxu0 0
        %1449 = vmatpush1.bf16.xpose.msra.mxu0 %v1408
        %1450 = vmatprep.subr.bf16.mxu0 0
        %1451 = vmatpush1.bf16.xpose.msra.mxu0 %v1409
        %1452 = vmatprep.subr.bf16.mxu0 0
        %1453 = vmatpush1.bf16.xpose.msra.mxu0 %v1410
        %1454 = vmatprep.subr.bf16.mxu0 0
        %1455 = vmatpush1.bf16.xpose.msra.mxu0 %v1411
        %1456 = vmatprep.subr.bf16.mxu0 0
        %1457 = vmatpush1.bf16.xpose.msra.mxu0 %v1412
        %1458 = vmatprep.subr.bf16.mxu0 0
        %1459 = vmatpush1.bf16.xpose.msra.mxu0 %v1413
        %1460 = vmatprep.subr.bf16.mxu0 0
        %1461 = vmatpush1.bf16.xpose.msra.mxu0 %v1414
        %1462 = vmatprep.subr.bf16.mxu0 0
        %1463 = vmatpush1.bf16.xpose.msra.mxu0 %v1415
        %1464 = vmatprep.mubr.bf16.mxu0 0
        %1465 = vmatmul.mubr.bf16.gmra.mrb[0].mxu0 %v1399
        %v1466 = vpop.f32.mrb[0].mxu0
        %v1467 = vadd.f32 0.0, %v1466
        %v1468 = vpop.f32.mrb[0].mxu0
        %v1469 = vadd.f32 0.0, %v1468
        %v1470 = vpop.f32.mrb[0].mxu0
        %v1471 = vadd.f32 0.0, %v1470
        %v1472 = vpop.f32.mrb[0].mxu0
        %v1473 = vadd.f32 0.0, %v1472
        %1474 = vdwg.mxu0
        %1475 = vmatprep.subr.bf16.mxu0 0
        %1476 = vmatpush1.bf16.xpose.msra.mxu0 %v1416
        %1477 = vmatprep.subr.bf16.mxu0 0
        %1478 = vmatpush1.bf16.xpose.msra.mxu0 %v1417
        %1479 = vmatprep.subr.bf16.mxu0 0
        %1480 = vmatpush1.bf16.xpose.msra.mxu0 %v1418
        %1481 = vmatprep.subr.bf16.mxu0 0
        %1482 = vmatpush1.bf16.xpose.msra.mxu0 %v1419
        %1483 = vmatprep.subr.bf16.mxu0 0
        %1484 = vmatpush1.bf16.xpose.msra.mxu0 %v1420
        %1485 = vmatprep.subr.bf16.mxu0 0
        %1486 = vmatpush1.bf16.xpose.msra.mxu0 %v1421
        %1487 = vmatprep.subr.bf16.mxu0 0
        %1488 = vmatpush1.bf16.xpose.msra.mxu0 %v1422
        %1489 = vmatprep.subr.bf16.mxu0 0
        %1490 = vmatpush1.bf16.xpose.msra.mxu0 %v1423
        %1491 = vmatprep.subr.bf16.mxu0 0
        %1492 = vmatpush1.bf16.xpose.msra.mxu0 %v1424
        %1493 = vmatprep.subr.bf16.mxu0 0
        %1494 = vmatpush1.bf16.xpose.msra.mxu0 %v1425
        %1495 = vmatprep.subr.bf16.mxu0 0
        %1496 = vmatpush1.bf16.xpose.msra.mxu0 %v1426
        %1497 = vmatprep.subr.bf16.mxu0 0
        %1498 = vmatpush1.bf16.xpose.msra.mxu0 %v1427
        %1499 = vmatprep.subr.bf16.mxu0 0
        %1500 = vmatpush1.bf16.xpose.msra.mxu0 %v1428
        %1501 = vmatprep.subr.bf16.mxu0 0
        %1502 = vmatpush1.bf16.xpose.msra.mxu0 %v1429
        %1503 = vmatprep.subr.bf16.mxu0 0
        %1504 = vmatpush1.bf16.xpose.msra.mxu0 %v1430
        %1505 = vmatprep.subr.bf16.mxu0 0
        %1506 = vmatpush1.bf16.xpose.msra.mxu0 %v1431
        %1507 = vmatprep.mubr.bf16.mxu0 0
        %1508 = vmatmul.mubr.bf16.gmra.mrb[0].mxu0 %v1399
        %v1509 = vpop.f32.mrb[0].mxu0
        %v1510 = vadd.f32 0.0, %v1509
        %v1511 = vpop.f32.mrb[0].mxu0
        %v1512 = vadd.f32 0.0, %v1511
        %v1513 = vpop.f32.mrb[0].mxu0
        %v1514 = vadd.f32 0.0, %v1513
        %v1515 = vpop.f32.mrb[0].mxu0
        %v1516 = vadd.f32 0.0, %v1515
        %1517 = vdwg.mxu0
        %v1518 = vpack.c.bf16 %v1268, %v1267
        %v1519 = vpack.c.bf16 %v1334, %v1333
        %v1520 = vpack.c.bf16 %v1336, %v1335
        %v1521 = vpack.c.bf16 %v1338, %v1337
        %v1522 = vpack.c.bf16 %v1340, %v1339
        %v1523 = vpack.c.bf16 %v1342, %v1341
        %v1524 = vpack.c.bf16 %v1344, %v1343
        %v1525 = vpack.c.bf16 %v1346, %v1345
        %v1526 = vpack.c.bf16 %v1348, %v1347
        %v1527 = vpack.c.bf16 %v1350, %v1349
        %v1528 = vpack.c.bf16 %v1352, %v1351
        %v1529 = vpack.c.bf16 %v1354, %v1353
        %v1530 = vpack.c.bf16 %v1356, %v1355
        %v1531 = vpack.c.bf16 %v1358, %v1357
        %v1532 = vpack.c.bf16 %v1360, %v1359
        %v1533 = vpack.c.bf16 %v1362, %v1361
        %v1534 = vpack.c.bf16 %v1364, %v1363
        %v1535 = vpack.c.bf16 %v1366, %v1365
        %v1536 = vpack.c.bf16 %v1368, %v1367
        %v1537 = vpack.c.bf16 %v1370, %v1369
        %v1538 = vpack.c.bf16 %v1372, %v1371
        %v1539 = vpack.c.bf16 %v1374, %v1373
        %v1540 = vpack.c.bf16 %v1376, %v1375
        %v1541 = vpack.c.bf16 %v1378, %v1377
        %v1542 = vpack.c.bf16 %v1380, %v1379
        %v1543 = vpack.c.bf16 %v1382, %v1381
        %v1544 = vpack.c.bf16 %v1384, %v1383
        %v1545 = vpack.c.bf16 %v1386, %v1385
        %v1546 = vpack.c.bf16 %v1388, %v1387
        %v1547 = vpack.c.bf16 %v1390, %v1389
        %v1548 = vpack.c.bf16 %v1392, %v1391
        %v1549 = vpack.c.bf16 %v1394, %v1393
        %v1550 = vpack.c.bf16 %v1396, %v1395
        %1551 = vmatprep.subr.bf16.mxu0 0
        %1552 = vmatpush1.bf16.xpose.msra.mxu0 %v1519
        %1553 = vmatprep.subr.bf16.mxu0 0
        %1554 = vmatpush1.bf16.xpose.msra.mxu0 %v1520
        %1555 = vmatprep.subr.bf16.mxu0 0
        %1556 = vmatpush1.bf16.xpose.msra.mxu0 %v1521
        %1557 = vmatprep.subr.bf16.mxu0 0
        %1558 = vmatpush1.bf16.xpose.msra.mxu0 %v1522
        %1559 = vmatprep.subr.bf16.mxu0 0
        %1560 = vmatpush1.bf16.xpose.msra.mxu0 %v1523
        %1561 = vmatprep.subr.bf16.mxu0 0
        %1562 = vmatpush1.bf16.xpose.msra.mxu0 %v1524
        %1563 = vmatprep.subr.bf16.mxu0 0
        %1564 = vmatpush1.bf16.xpose.msra.mxu0 %v1525
        %1565 = vmatprep.subr.bf16.mxu0 0
        %1566 = vmatpush1.bf16.xpose.msra.mxu0 %v1526
        %1567 = vmatprep.subr.bf16.mxu0 0
        %1568 = vmatpush1.bf16.xpose.msra.mxu0 %v1527
        %1569 = vmatprep.subr.bf16.mxu0 0
        %1570 = vmatpush1.bf16.xpose.msra.mxu0 %v1528
        %1571 = vmatprep.subr.bf16.mxu0 0
        %1572 = vmatpush1.bf16.xpose.msra.mxu0 %v1529
        %1573 = vmatprep.subr.bf16.mxu0 0
        %1574 = vmatpush1.bf16.xpose.msra.mxu0 %v1530
        %1575 = vmatprep.subr.bf16.mxu0 0
        %1576 = vmatpush1.bf16.xpose.msra.mxu0 %v1531
        %1577 = vmatprep.subr.bf16.mxu0 0
        %1578 = vmatpush1.bf16.xpose.msra.mxu0 %v1532
        %1579 = vmatprep.subr.bf16.mxu0 0
        %1580 = vmatpush1.bf16.xpose.msra.mxu0 %v1533
        %1581 = vmatprep.subr.bf16.mxu0 0
        %1582 = vmatpush1.bf16.xpose.msra.mxu0 %v1534
        %1583 = vmatprep.mubr.bf16.mxu0 0
        %1584 = vmatmul.mubr.bf16.gmra.mrb[0].mxu0 %v1518
        %v1585 = vpop.f32.mrb[0].mxu0
        %v1586 = vadd.f32 0.0, %v1585
        %v1587 = vpop.f32.mrb[0].mxu0
        %v1588 = vadd.f32 0.0, %v1587
        %v1589 = vpop.f32.mrb[0].mxu0
        %v1590 = vadd.f32 0.0, %v1589
        %v1591 = vpop.f32.mrb[0].mxu0
        %v1592 = vadd.f32 0.0, %v1591
        %1593 = vdwg.mxu0
        %1594 = vmatprep.subr.bf16.mxu0 0
        %1595 = vmatpush1.bf16.xpose.msra.mxu0 %v1535
        %1596 = vmatprep.subr.bf16.mxu0 0
        %1597 = vmatpush1.bf16.xpose.msra.mxu0 %v1536
        %1598 = vmatprep.subr.bf16.mxu0 0
        %1599 = vmatpush1.bf16.xpose.msra.mxu0 %v1537
        %1600 = vmatprep.subr.bf16.mxu0 0
        %1601 = vmatpush1.bf16.xpose.msra.mxu0 %v1538
        %1602 = vmatprep.subr.bf16.mxu0 0
        %1603 = vmatpush1.bf16.xpose.msra.mxu0 %v1539
        %1604 = vmatprep.subr.bf16.mxu0 0
        %1605 = vmatpush1.bf16.xpose.msra.mxu0 %v1540
        %1606 = vmatprep.subr.bf16.mxu0 0
        %1607 = vmatpush1.bf16.xpose.msra.mxu0 %v1541
        %1608 = vmatprep.subr.bf16.mxu0 0
        %1609 = vmatpush1.bf16.xpose.msra.mxu0 %v1542
        %1610 = vmatprep.subr.bf16.mxu0 0
        %1611 = vmatpush1.bf16.xpose.msra.mxu0 %v1543
        %1612 = vmatprep.subr.bf16.mxu0 0
        %1613 = vmatpush1.bf16.xpose.msra.mxu0 %v1544
        %1614 = vmatprep.subr.bf16.mxu0 0
        %1615 = vmatpush1.bf16.xpose.msra.mxu0 %v1545
        %1616 = vmatprep.subr.bf16.mxu0 0
        %1617 = vmatpush1.bf16.xpose.msra.mxu0 %v1546
        %1618 = vmatprep.subr.bf16.mxu0 0
        %1619 = vmatpush1.bf16.xpose.msra.mxu0 %v1547
        %1620 = vmatprep.subr.bf16.mxu0 0
        %1621 = vmatpush1.bf16.xpose.msra.mxu0 %v1548
        %1622 = vmatprep.subr.bf16.mxu0 0
        %1623 = vmatpush1.bf16.xpose.msra.mxu0 %v1549
        %1624 = vmatprep.subr.bf16.mxu0 0
        %1625 = vmatpush1.bf16.xpose.msra.mxu0 %v1550
        %1626 = vmatprep.mubr.bf16.mxu0 0
        %1627 = vmatmul.mubr.bf16.gmra.mrb[0].mxu0 %v1518
        %v1628 = vpop.f32.mrb[0].mxu0
        %v1629 = vadd.f32 0.0, %v1628
        %v1630 = vpop.f32.mrb[0].mxu0
        %v1631 = vadd.f32 0.0, %v1630
        %v1632 = vpop.f32.mrb[0].mxu0
        %v1633 = vadd.f32 0.0, %v1632
        %v1634 = vpop.f32.mrb[0].mxu0
        %v1635 = vadd.f32 0.0, %v1634
        %1636 = vdwg.mxu0
        %v1637 = vadd.f32 %v1265, %v1267
        %v1638 = vadd.f32 %v1266, %v1268
        %v1639 = vpack.c.bf16 %v1638, %v1637
        %v1640 = vadd.f32 %v1269, %v1333
        %v1641 = vadd.f32 %v1270, %v1334
        %v1642 = vadd.f32 %v1271, %v1335
        %v1643 = vadd.f32 %v1272, %v1336
        %v1644 = vadd.f32 %v1273, %v1337
        %v1645 = vadd.f32 %v1274, %v1338
        %v1646 = vadd.f32 %v1275, %v1339
        %v1647 = vadd.f32 %v1276, %v1340
        %v1648 = vadd.f32 %v1277, %v1341
        %v1649 = vadd.f32 %v1278, %v1342
        %v1650 = vadd.f32 %v1279, %v1343
        %v1651 = vadd.f32 %v1280, %v1344
        %v1652 = vadd.f32 %v1281, %v1345
        %v1653 = vadd.f32 %v1282, %v1346
        %v1654 = vadd.f32 %v1283, %v1347
        %v1655 = vadd.f32 %v1284, %v1348
        %v1656 = vadd.f32 %v1285, %v1349
        %v1657 = vadd.f32 %v1286, %v1350
        %v1658 = vadd.f32 %v1287, %v1351
        %v1659 = vadd.f32 %v1288, %v1352
        %v1660 = vadd.f32 %v1289, %v1353
        %v1661 = vadd.f32 %v1290, %v1354
        %v1662 = vadd.f32 %v1291, %v1355
        %v1663 = vadd.f32 %v1292, %v1356
        %v1664 = vadd.f32 %v1293, %v1357
        %v1665 = vadd.f32 %v1294, %v1358
        %v1666 = vadd.f32 %v1295, %v1359
        %v1667 = vadd.f32 %v1296, %v1360
        %v1668 = vadd.f32 %v1297, %v1361
        %v1669 = vadd.f32 %v1298, %v1362
        %v1670 = vadd.f32 %v1299, %v1363
        %v1671 = vadd.f32 %v1300, %v1364
        %v1672 = vadd.f32 %v1301, %v1365
        %v1673 = vadd.f32 %v1302, %v1366
        %v1674 = vadd.f32 %v1303, %v1367
        %v1675 = vadd.f32 %v1304, %v1368
        %v1676 = vadd.f32 %v1305, %v1369
        %v1677 = vadd.f32 %v1306, %v1370
        %v1678 = vadd.f32 %v1307, %v1371
        %v1679 = vadd.f32 %v1308, %v1372
        %v1680 = vadd.f32 %v1309, %v1373
        %v1681 = vadd.f32 %v1310, %v1374
        %v1682 = vadd.f32 %v1311, %v1375
        %v1683 = vadd.f32 %v1312, %v1376
        %v1684 = vadd.f32 %v1313, %v1377
        %v1685 = vadd.f32 %v1314, %v1378
        %v1686 = vadd.f32 %v1315, %v1379
        %v1687 = vadd.f32 %v1316, %v1380
        %v1688 = vadd.f32 %v1317, %v1381
        %v1689 = vadd.f32 %v1318, %v1382
        %v1690 = vadd.f32 %v1319, %v1383
        %v1691 = vadd.f32 %v1320, %v1384
        %v1692 = vadd.f32 %v1321, %v1385
        %v1693 = vadd.f32 %v1322, %v1386
        %v1694 = vadd.f32 %v1323, %v1387
        %v1695 = vadd.f32 %v1324, %v1388
        %v1696 = vadd.f32 %v1325, %v1389
        %v1697 = vadd.f32 %v1326, %v1390
        %v1698 = vadd.f32 %v1327, %v1391
        %v1699 = vadd.f32 %v1328, %v1392
        %v1700 = vadd.f32 %v1329, %v1393
        %v1701 = vadd.f32 %v1330, %v1394
        %v1702 = vadd.f32 %v1331, %v1395
        %v1703 = vadd.f32 %v1332, %v1396
        %v1704 = vpack.c.bf16 %v1641, %v1640
        %v1705 = vpack.c.bf16 %v1643, %v1642
        %v1706 = vpack.c.bf16 %v1645, %v1644
        %v1707 = vpack.c.bf16 %v1647, %v1646
        %v1708 = vpack.c.bf16 %v1649, %v1648
        %v1709 = vpack.c.bf16 %v1651, %v1650
        %v1710 = vpack.c.bf16 %v1653, %v1652
        %v1711 = vpack.c.bf16 %v1655, %v1654
        %v1712 = vpack.c.bf16 %v1657, %v1656
        %v1713 = vpack.c.bf16 %v1659, %v1658
        %v1714 = vpack.c.bf16 %v1661, %v1660
        %v1715 = vpack.c.bf16 %v1663, %v1662
        %v1716 = vpack.c.bf16 %v1665, %v1664
        %v1717 = vpack.c.bf16 %v1667, %v1666
        %v1718 = vpack.c.bf16 %v1669, %v1668
        %v1719 = vpack.c.bf16 %v1671, %v1670
        %v1720 = vpack.c.bf16 %v1673, %v1672
        %v1721 = vpack.c.bf16 %v1675, %v1674
        %v1722 = vpack.c.bf16 %v1677, %v1676
        %v1723 = vpack.c.bf16 %v1679, %v1678
        %v1724 = vpack.c.bf16 %v1681, %v1680
        %v1725 = vpack.c.bf16 %v1683, %v1682
        %v1726 = vpack.c.bf16 %v1685, %v1684
        %v1727 = vpack.c.bf16 %v1687, %v1686
        %v1728 = vpack.c.bf16 %v1689, %v1688
        %v1729 = vpack.c.bf16 %v1691, %v1690
        %v1730 = vpack.c.bf16 %v1693, %v1692
        %v1731 = vpack.c.bf16 %v1695, %v1694
        %v1732 = vpack.c.bf16 %v1697, %v1696
        %v1733 = vpack.c.bf16 %v1699, %v1698
        %v1734 = vpack.c.bf16 %v1701, %v1700
        %v1735 = vpack.c.bf16 %v1703, %v1702
        %1736 = vmatprep.subr.bf16.mxu0 0
        %1737 = vmatpush1.bf16.xpose.msra.mxu0 %v1704
        %1738 = vmatprep.subr.bf16.mxu0 0
        %1739 = vmatpush1.bf16.xpose.msra.mxu0 %v1705
        %1740 = vmatprep.subr.bf16.mxu0 0
        %1741 = vmatpush1.bf16.xpose.msra.mxu0 %v1706
        %1742 = vmatprep.subr.bf16.mxu0 0
        %1743 = vmatpush1.bf16.xpose.msra.mxu0 %v1707
        %1744 = vmatprep.subr.bf16.mxu0 0
        %1745 = vmatpush1.bf16.xpose.msra.mxu0 %v1708
        %1746 = vmatprep.subr.bf16.mxu0 0
        %1747 = vmatpush1.bf16.xpose.msra.mxu0 %v1709
        %1748 = vmatprep.subr.bf16.mxu0 0
        %1749 = vmatpush1.bf16.xpose.msra.mxu0 %v1710
        %1750 = vmatprep.subr.bf16.mxu0 0
        %1751 = vmatpush1.bf16.xpose.msra.mxu0 %v1711
        %1752 = vmatprep.subr.bf16.mxu0 0
        %1753 = vmatpush1.bf16.xpose.msra.mxu0 %v1712
        %1754 = vmatprep.subr.bf16.mxu0 0
        %1755 = vmatpush1.bf16.xpose.msra.mxu0 %v1713
        %1756 = vmatprep.subr.bf16.mxu0 0
        %1757 = vmatpush1.bf16.xpose.msra.mxu0 %v1714
        %1758 = vmatprep.subr.bf16.mxu0 0
        %1759 = vmatpush1.bf16.xpose.msra.mxu0 %v1715
        %1760 = vmatprep.subr.bf16.mxu0 0
        %1761 = vmatpush1.bf16.xpose.msra.mxu0 %v1716
        %1762 = vmatprep.subr.bf16.mxu0 0
        %1763 = vmatpush1.bf16.xpose.msra.mxu0 %v1717
        %1764 = vmatprep.subr.bf16.mxu0 0
        %1765 = vmatpush1.bf16.xpose.msra.mxu0 %v1718
        %1766 = vmatprep.subr.bf16.mxu0 0
        %1767 = vmatpush1.bf16.xpose.msra.mxu0 %v1719
        %1768 = vmatprep.mubr.bf16.mxu0 0
        %1769 = vmatmul.mubr.bf16.gmra.mrb[0].mxu0 %v1639
        %v1770 = vpop.f32.mrb[0].mxu0
        %v1771 = vadd.f32 0.0, %v1770
        %v1772 = vpop.f32.mrb[0].mxu0
        %v1773 = vadd.f32 0.0, %v1772
        %v1774 = vpop.f32.mrb[0].mxu0
        %v1775 = vadd.f32 0.0, %v1774
        %v1776 = vpop.f32.mrb[0].mxu0
        %v1777 = vadd.f32 0.0, %v1776
        %1778 = vdwg.mxu0
        %1779 = vmatprep.subr.bf16.mxu0 0
        %1780 = vmatpush1.bf16.xpose.msra.mxu0 %v1720
        %1781 = vmatprep.subr.bf16.mxu0 0
        %1782 = vmatpush1.bf16.xpose.msra.mxu0 %v1721
        %1783 = vmatprep.subr.bf16.mxu0 0
        %1784 = vmatpush1.bf16.xpose.msra.mxu0 %v1722
        %1785 = vmatprep.subr.bf16.mxu0 0
        %1786 = vmatpush1.bf16.xpose.msra.mxu0 %v1723
        %1787 = vmatprep.subr.bf16.mxu0 0
        %1788 = vmatpush1.bf16.xpose.msra.mxu0 %v1724
        %1789 = vmatprep.subr.bf16.mxu0 0
        %1790 = vmatpush1.bf16.xpose.msra.mxu0 %v1725
        %1791 = vmatprep.subr.bf16.mxu0 0
        %1792 = vmatpush1.bf16.xpose.msra.mxu0 %v1726
        %1793 = vmatprep.subr.bf16.mxu0 0
        %1794 = vmatpush1.bf16.xpose.msra.mxu0 %v1727
        %1795 = vmatprep.subr.bf16.mxu0 0
        %1796 = vmatpush1.bf16.xpose.msra.mxu0 %v1728
        %1797 = vmatprep.subr.bf16.mxu0 0
        %1798 = vmatpush1.bf16.xpose.msra.mxu0 %v1729
        %1799 = vmatprep.subr.bf16.mxu0 0
        %1800 = vmatpush1.bf16.xpose.msra.mxu0 %v1730
        %1801 = vmatprep.subr.bf16.mxu0 0
        %1802 = vmatpush1.bf16.xpose.msra.mxu0 %v1731
        %1803 = vmatprep.subr.bf16.mxu0 0
        %1804 = vmatpush1.bf16.xpose.msra.mxu0 %v1732
        %1805 = vmatprep.subr.bf16.mxu0 0
        %1806 = vmatpush1.bf16.xpose.msra.mxu0 %v1733
        %1807 = vmatprep.subr.bf16.mxu0 0
        %1808 = vmatpush1.bf16.xpose.msra.mxu0 %v1734
        %1809 = vmatprep.subr.bf16.mxu0 0
        %1810 = vmatpush1.bf16.xpose.msra.mxu0 %v1735
        %1811 = vmatprep.mubr.bf16.mxu0 0
        %1812 = vmatmul.mubr.bf16.gmra.mrb[0].mxu0 %v1639
        %v1813 = vpop.f32.mrb[0].mxu0
        %v1814 = vadd.f32 0.0, %v1813
        %v1815 = vpop.f32.mrb[0].mxu0
        %v1816 = vadd.f32 0.0, %v1815
        %v1817 = vpop.f32.mrb[0].mxu0
        %v1818 = vadd.f32 0.0, %v1817
        %v1819 = vpop.f32.mrb[0].mxu0
        %v1820 = vadd.f32 0.0, %v1819
        %1821 = vdwg.mxu0
        %v1822 = vsub.f32 %v1467, %v1586
        %v1823 = vsub.f32 %v1469, %v1588
        %v1824 = vsub.f32 %v1510, %v1629
        %v1825 = vsub.f32 %v1512, %v1631
        %v1826 = vsub.f32 %v1471, %v1590
        %v1827 = vsub.f32 %v1473, %v1592
        %v1828 = vsub.f32 %v1514, %v1633
        %v1829 = vsub.f32 %v1516, %v1635
        %v1831 = vlaneseq
        %v1832 = vshrl.u32 %v1831, 7
        %v1833 = vsub.s32 0, %v1832
        %v1834 = vrot.slane %v1397, %v1833
        %v1835 = vlaneseq
        %v1836 = vshrl.u32 %v1835, 7
        %v1837 = vsub.s32 1, %v1836
        %v1838 = vrot.slane %v1397, %v1837
        %v1839 = vlaneseq
        %v1840 = vshrl.u32 %v1839, 7
        %v1841 = vsub.s32 2, %v1840
        %v1842 = vrot.slane %v1397, %v1841
        %v1843 = vlaneseq
        %v1844 = vshrl.u32 %v1843, 7
        %v1845 = vsub.s32 3, %v1844
        %v1846 = vrot.slane %v1397, %v1845
        %v1851 = vadd.f32 %v1822, %v1834
        %v1852 = vadd.f32 %v1823, %v1838
        %v1853 = vadd.f32 %v1824, %v1842
        %v1854 = vadd.f32 %v1825, %v1846
        %v1855 = vadd.f32 %v1826, %v1834
        %v1856 = vadd.f32 %v1827, %v1838
        %v1857 = vadd.f32 %v1828, %v1842
        %v1858 = vadd.f32 %v1829, %v1846
        %v1859 = vsub.f32 %v1771, %v1467
        %v1860 = vsub.f32 %v1773, %v1469
        %v1861 = vsub.f32 %v1814, %v1510
        %v1862 = vsub.f32 %v1816, %v1512
        %v1863 = vsub.f32 %v1775, %v1471
        %v1864 = vsub.f32 %v1777, %v1473
        %v1865 = vsub.f32 %v1818, %v1514
        %v1866 = vsub.f32 %v1820, %v1516
        %v1867 = vsub.f32 %v1859, %v1586
        %v1868 = vsub.f32 %v1860, %v1588
        %v1869 = vsub.f32 %v1861, %v1629
        %v1870 = vsub.f32 %v1862, %v1631
        %v1871 = vsub.f32 %v1863, %v1590
        %v1872 = vsub.f32 %v1864, %v1592
        %v1873 = vsub.f32 %v1865, %v1633
        %v1874 = vsub.f32 %v1866, %v1635
        %v1876 = vlaneseq
        %v1877 = vshrl.u32 %v1876, 7
        %v1878 = vsub.s32 0, %v1877
        %v1879 = vrot.slane %v1398, %v1878
        %v1880 = vlaneseq
        %v1881 = vshrl.u32 %v1880, 7
        %v1882 = vsub.s32 1, %v1881
        %v1883 = vrot.slane %v1398, %v1882
        %v1884 = vlaneseq
        %v1885 = vshrl.u32 %v1884, 7
        %v1886 = vsub.s32 2, %v1885
        %v1887 = vrot.slane %v1398, %v1886
        %v1888 = vlaneseq
        %v1889 = vshrl.u32 %v1888, 7
        %v1890 = vsub.s32 3, %v1889
        %v1891 = vrot.slane %v1398, %v1890
        %v1896 = vadd.f32 %v1867, %v1879
        %v1897 = vadd.f32 %v1868, %v1883
        %v1898 = vadd.f32 %v1869, %v1887
        %v1899 = vadd.f32 %v1870, %v1891
        %v1900 = vadd.f32 %v1871, %v1879
        %v1901 = vadd.f32 %v1872, %v1883
        %v1902 = vadd.f32 %v1873, %v1887
        %v1903 = vadd.f32 %v1874, %v1891
        %v1904 = vld [vmem:[%s669] sm:$0xff]
        %v1905 = vld [vmem:[%s669 + $0x8] sm:$0xff]
        %v1906 = vld [vmem:[%s669 + $0x10] sm:$0xff]
        %v1907 = vld [vmem:[%s669 + $0x18] sm:$0xff]
        %v1908 = vld [vmem:[%s669 + $0x20] sm:$0xff]
        %v1909 = vld [vmem:[%s669 + $0x28] sm:$0xff]
        %v1910 = vld [vmem:[%s669 + $0x30] sm:$0xff]
        %v1911 = vld [vmem:[%s669 + $0x38] sm:$0xff]
        %v1912 = vld [vmem:[%s669 + $0x40] sm:$0xff]
        %v1913 = vld [vmem:[%s669 + $0x48] sm:$0xff]
        %v1914 = vld [vmem:[%s669 + $0x50] sm:$0xff]
        %v1915 = vld [vmem:[%s669 + $0x58] sm:$0xff]
        %v1916 = vld [vmem:[%s669 + $0x60] sm:$0xff]
        %v1917 = vld [vmem:[%s669 + $0x68] sm:$0xff]
        %v1918 = vld [vmem:[%s669 + $0x70] sm:$0xff]
        %v1919 = vld [vmem:[%s669 + $0x78] sm:$0xff]
        %v1920 = vld [vmem:[%s669 + $0x80] sm:$0xff]
        %v1921 = vld [vmem:[%s669 + $0x88] sm:$0xff]
        %v1922 = vld [vmem:[%s669 + $0x90] sm:$0xff]
        %v1923 = vld [vmem:[%s669 + $0x98] sm:$0xff]
        %v1924 = vld [vmem:[%s669 + $0xa0] sm:$0xff]
        %v1925 = vld [vmem:[%s669 + $0xa8] sm:$0xff]
        %v1926 = vld [vmem:[%s669 + $0xb0] sm:$0xff]
        %v1927 = vld [vmem:[%s669 + $0xb8] sm:$0xff]
        %v1928 = vld [vmem:[%s669 + $0xc0] sm:$0xff]
        %v1929 = vld [vmem:[%s669 + $0xc8] sm:$0xff]
        %v1930 = vld [vmem:[%s669 + $0xd0] sm:$0xff]
        %v1931 = vld [vmem:[%s669 + $0xd8] sm:$0xff]
        %v1932 = vld [vmem:[%s669 + $0xe0] sm:$0xff]
        %v1933 = vld [vmem:[%s669 + $0xe8] sm:$0xff]
        %v1934 = vld [vmem:[%s669 + $0xf0] sm:$0xff]
        %v1935 = vld [vmem:[%s669 + $0xf8] sm:$0xff]
        %v1936 = vld [vmem:[%s669 + $0x100] sm:$0xff]
        %v1937 = vld [vmem:[%s669 + $0x108] sm:$0xff]
        %v1938 = vld [vmem:[%s669 + $0x110] sm:$0xff]
        %v1939 = vld [vmem:[%s669 + $0x118] sm:$0xff]
        %v1940 = vld [vmem:[%s669 + $0x120] sm:$0xff]
        %v1941 = vld [vmem:[%s669 + $0x128] sm:$0xff]
        %v1942 = vld [vmem:[%s669 + $0x130] sm:$0xff]
        %v1943 = vld [vmem:[%s669 + $0x138] sm:$0xff]
        %v1944 = vld [vmem:[%s669 + $0x140] sm:$0xff]
        %v1945 = vld [vmem:[%s669 + $0x148] sm:$0xff]
        %v1946 = vld [vmem:[%s669 + $0x150] sm:$0xff]
        %v1947 = vld [vmem:[%s669 + $0x158] sm:$0xff]
        %v1948 = vld [vmem:[%s669 + $0x160] sm:$0xff]
        %v1949 = vld [vmem:[%s669 + $0x168] sm:$0xff]
        %v1950 = vld [vmem:[%s669 + $0x170] sm:$0xff]
        %v1951 = vld [vmem:[%s669 + $0x178] sm:$0xff]
        %v1952 = vld [vmem:[%s669 + $0x180] sm:$0xff]
        %v1953 = vld [vmem:[%s669 + $0x188] sm:$0xff]
        %v1954 = vld [vmem:[%s669 + $0x190] sm:$0xff]
        %v1955 = vld [vmem:[%s669 + $0x198] sm:$0xff]
        %v1956 = vld [vmem:[%s669 + $0x1a0] sm:$0xff]
        %v1957 = vld [vmem:[%s669 + $0x1a8] sm:$0xff]
        %v1958 = vld [vmem:[%s669 + $0x1b0] sm:$0xff]
        %v1959 = vld [vmem:[%s669 + $0x1b8] sm:$0xff]
        %v1960 = vld [vmem:[%s669 + $0x1c0] sm:$0xff]
        %v1961 = vld [vmem:[%s669 + $0x1c8] sm:$0xff]
        %v1962 = vld [vmem:[%s669 + $0x1d0] sm:$0xff]
        %v1963 = vld [vmem:[%s669 + $0x1d8] sm:$0xff]
        %v1964 = vld [vmem:[%s669 + $0x1e0] sm:$0xff]
        %v1965 = vld [vmem:[%s669 + $0x1e8] sm:$0xff]
        %v1966 = vld [vmem:[%s669 + $0x1f0] sm:$0xff]
        %v1967 = vld [vmem:[%s669 + $0x1f8] sm:$0xff]
        %v1968 = vld [vmem:[%s678] sm:$0xff]
        %v1969 = vld [vmem:[%s678 + $0x8] sm:$0xff]
        %v1970 = vld [vmem:[%s678 + $0x10] sm:$0xff]
        %v1971 = vld [vmem:[%s678 + $0x18] sm:$0xff]
        %v1972 = vld [vmem:[%s678 + $0x20] sm:$0xff]
        %v1973 = vld [vmem:[%s678 + $0x28] sm:$0xff]
        %v1974 = vld [vmem:[%s678 + $0x30] sm:$0xff]
        %v1975 = vld [vmem:[%s678 + $0x38] sm:$0xff]
        %v1976 = vld [vmem:[%s678 + $0x40] sm:$0xff]
        %v1977 = vld [vmem:[%s678 + $0x48] sm:$0xff]
        %v1978 = vld [vmem:[%s678 + $0x50] sm:$0xff]
        %v1979 = vld [vmem:[%s678 + $0x58] sm:$0xff]
        %v1980 = vld [vmem:[%s678 + $0x60] sm:$0xff]
        %v1981 = vld [vmem:[%s678 + $0x68] sm:$0xff]
        %v1982 = vld [vmem:[%s678 + $0x70] sm:$0xff]
        %v1983 = vld [vmem:[%s678 + $0x78] sm:$0xff]
        %v1984 = vld [vmem:[%s678 + $0x80] sm:$0xff]
        %v1985 = vld [vmem:[%s678 + $0x88] sm:$0xff]
        %v1986 = vld [vmem:[%s678 + $0x90] sm:$0xff]
        %v1987 = vld [vmem:[%s678 + $0x98] sm:$0xff]
        %v1988 = vld [vmem:[%s678 + $0xa0] sm:$0xff]
        %v1989 = vld [vmem:[%s678 + $0xa8] sm:$0xff]
        %v1990 = vld [vmem:[%s678 + $0xb0] sm:$0xff]
        %v1991 = vld [vmem:[%s678 + $0xb8] sm:$0xff]
        %v1992 = vld [vmem:[%s678 + $0xc0] sm:$0xff]
        %v1993 = vld [vmem:[%s678 + $0xc8] sm:$0xff]
        %v1994 = vld [vmem:[%s678 + $0xd0] sm:$0xff]
        %v1995 = vld [vmem:[%s678 + $0xd8] sm:$0xff]
        %v1996 = vld [vmem:[%s678 + $0xe0] sm:$0xff]
        %v1997 = vld [vmem:[%s678 + $0xe8] sm:$0xff]
        %v1998 = vld [vmem:[%s678 + $0xf0] sm:$0xff]
        %v1999 = vld [vmem:[%s678 + $0xf8] sm:$0xff]
        %v2000 = vld [vmem:[%s678 + $0x100] sm:$0xff]
        %v2001 = vld [vmem:[%s678 + $0x108] sm:$0xff]
        %v2002 = vld [vmem:[%s678 + $0x110] sm:$0xff]
        %v2003 = vld [vmem:[%s678 + $0x118] sm:$0xff]
        %v2004 = vld [vmem:[%s678 + $0x120] sm:$0xff]
        %v2005 = vld [vmem:[%s678 + $0x128] sm:$0xff]
        %v2006 = vld [vmem:[%s678 + $0x130] sm:$0xff]
        %v2007 = vld [vmem:[%s678 + $0x138] sm:$0xff]
        %v2008 = vld [vmem:[%s678 + $0x140] sm:$0xff]
        %v2009 = vld [vmem:[%s678 + $0x148] sm:$0xff]
        %v2010 = vld [vmem:[%s678 + $0x150] sm:$0xff]
        %v2011 = vld [vmem:[%s678 + $0x158] sm:$0xff]
        %v2012 = vld [vmem:[%s678 + $0x160] sm:$0xff]
        %v2013 = vld [vmem:[%s678 + $0x168] sm:$0xff]
        %v2014 = vld [vmem:[%s678 + $0x170] sm:$0xff]
        %v2015 = vld [vmem:[%s678 + $0x178] sm:$0xff]
        %v2016 = vld [vmem:[%s678 + $0x180] sm:$0xff]
        %v2017 = vld [vmem:[%s678 + $0x188] sm:$0xff]
        %v2018 = vld [vmem:[%s678 + $0x190] sm:$0xff]
        %v2019 = vld [vmem:[%s678 + $0x198] sm:$0xff]
        %v2020 = vld [vmem:[%s678 + $0x1a0] sm:$0xff]
        %v2021 = vld [vmem:[%s678 + $0x1a8] sm:$0xff]
        %v2022 = vld [vmem:[%s678 + $0x1b0] sm:$0xff]
        %v2023 = vld [vmem:[%s678 + $0x1b8] sm:$0xff]
        %v2024 = vld [vmem:[%s678 + $0x1c0] sm:$0xff]
        %v2025 = vld [vmem:[%s678 + $0x1c8] sm:$0xff]
        %v2026 = vld [vmem:[%s678 + $0x1d0] sm:$0xff]
        %v2027 = vld [vmem:[%s678 + $0x1d8] sm:$0xff]
        %v2028 = vld [vmem:[%s678 + $0x1e0] sm:$0xff]
        %v2029 = vld [vmem:[%s678 + $0x1e8] sm:$0xff]
        %v2030 = vld [vmem:[%s678 + $0x1f0] sm:$0xff]
        %v2031 = vld [vmem:[%s678 + $0x1f8] sm:$0xff]
        %v2032 = vld [vmem:[%s795] sm:$0x1]
        %v2033 = vld [vmem:[%s798] sm:$0x1]
        %v2034 = vpack.c.bf16 %v1855, %v1851
        %v2035 = vpack.c.bf16 %v1856, %v1852
        %v2036 = vpack.c.bf16 %v1857, %v1853
        %v2037 = vpack.c.bf16 %v1858, %v1854
        %v2038 = vpack.c.bf16 %v1908, %v1904
        %v2039 = vpack.c.bf16 %v1909, %v1905
        %v2040 = vpack.c.bf16 %v1910, %v1906
        %v2041 = vpack.c.bf16 %v1911, %v1907
        %v2042 = vpack.c.bf16 %v1916, %v1912
        %v2043 = vpack.c.bf16 %v1917, %v1913
        %v2044 = vpack.c.bf16 %v1918, %v1914
        %v2045 = vpack.c.bf16 %v1919, %v1915
        %v2046 = vpack.c.bf16 %v1924, %v1920
        %v2047 = vpack.c.bf16 %v1925, %v1921
        %v2048 = vpack.c.bf16 %v1926, %v1922
        %v2049 = vpack.c.bf16 %v1927, %v1923
        %v2050 = vpack.c.bf16 %v1932, %v1928
        %v2051 = vpack.c.bf16 %v1933, %v1929
        %v2052 = vpack.c.bf16 %v1934, %v1930
        %v2053 = vpack.c.bf16 %v1935, %v1931
        %v2054 = vpack.c.bf16 %v1940, %v1936
        %v2055 = vpack.c.bf16 %v1941, %v1937
        %v2056 = vpack.c.bf16 %v1942, %v1938
        %v2057 = vpack.c.bf16 %v1943, %v1939
        %v2058 = vpack.c.bf16 %v1948, %v1944
        %v2059 = vpack.c.bf16 %v1949, %v1945
        %v2060 = vpack.c.bf16 %v1950, %v1946
        %v2061 = vpack.c.bf16 %v1951, %v1947
        %v2062 = vpack.c.bf16 %v1956, %v1952
        %v2063 = vpack.c.bf16 %v1957, %v1953
        %v2064 = vpack.c.bf16 %v1958, %v1954
        %v2065 = vpack.c.bf16 %v1959, %v1955
        %v2066 = vpack.c.bf16 %v1964, %v1960
        %v2067 = vpack.c.bf16 %v1965, %v1961
        %v2068 = vpack.c.bf16 %v1966, %v1962
        %v2069 = vpack.c.bf16 %v1967, %v1963
        %2070 = vmatprep.subr.bf16.mxu0 %v2039
        %2071 = vmatpush1.bf16.xpose.msra.mxu0 %v2038
        %2072 = vmatprep.subr.bf16.mxu0 %v2043
        %2073 = vmatpush1.bf16.xpose.msra.mxu0 %v2042
        %2074 = vmatprep.subr.bf16.mxu0 %v2047
        %2075 = vmatpush1.bf16.xpose.msra.mxu0 %v2046
        %2076 = vmatprep.subr.bf16.mxu0 %v2051
        %2077 = vmatpush1.bf16.xpose.msra.mxu0 %v2050
        %2078 = vmatprep.subr.bf16.mxu0 %v2055
        %2079 = vmatpush1.bf16.xpose.msra.mxu0 %v2054
        %2080 = vmatprep.subr.bf16.mxu0 %v2059
        %2081 = vmatpush1.bf16.xpose.msra.mxu0 %v2058
        %2082 = vmatprep.subr.bf16.mxu0 %v2063
        %2083 = vmatpush1.bf16.xpose.msra.mxu0 %v2062
        %2084 = vmatprep.subr.bf16.mxu0 %v2067
        %2085 = vmatpush1.bf16.xpose.msra.mxu0 %v2066
        %2086 = vmatprep.subr.bf16.mxu0 0
        %2087 = vmatpush1.bf16.xpose.msra.mxu0 0
        %2088 = vmatprep.subr.bf16.mxu0 0
        %2089 = vmatpush1.bf16.xpose.msra.mxu0 0
        %2090 = vmatprep.subr.bf16.mxu0 0
        %2091 = vmatpush1.bf16.xpose.msra.mxu0 0
        %2092 = vmatprep.subr.bf16.mxu0 0
        %2093 = vmatpush1.bf16.xpose.msra.mxu0 0
        %2094 = vmatprep.subr.bf16.mxu0 0
        %2095 = vmatpush1.bf16.xpose.msra.mxu0 0
        %2096 = vmatprep.subr.bf16.mxu0 0
        %2097 = vmatpush1.bf16.xpose.msra.mxu0 0
        %2098 = vmatprep.subr.bf16.mxu0 0
        %2099 = vmatpush1.bf16.xpose.msra.mxu0 0
        %2100 = vmatprep.subr.bf16.mxu0 0
        %2101 = vmatpush1.bf16.xpose.msra.mxu0 0
        %2102 = vmatprep.mubr.bf16.mxu0 %v2035
        %2103 = vmatmul.mubr.bf16.gmra.mrb[0].mxu0 %v2034
        %v2104 = vpop.f32.mrb[0].mxu0
        %v2105 = vadd.f32 0.0, %v2104
        %v2106 = vpop.f32.mrb[0].mxu0
        %v2107 = vpop.f32.mrb[0].mxu0
        %v2108 = vadd.f32 0.0, %v2107
        %v2109 = vpop.f32.mrb[0].mxu0
        %2110 = vdwg.mxu0
        %2111 = vmatprep.subr.bf16.mxu0 %v2041
        %2112 = vmatpush1.bf16.xpose.msra.mxu0 %v2040
        %2113 = vmatprep.subr.bf16.mxu0 %v2045
        %2114 = vmatpush1.bf16.xpose.msra.mxu0 %v2044
        %2115 = vmatprep.subr.bf16.mxu0 %v2049
        %2116 = vmatpush1.bf16.xpose.msra.mxu0 %v2048
        %2117 = vmatprep.subr.bf16.mxu0 %v2053
        %2118 = vmatpush1.bf16.xpose.msra.mxu0 %v2052
        %2119 = vmatprep.subr.bf16.mxu0 %v2057
        %2120 = vmatpush1.bf16.xpose.msra.mxu0 %v2056
        %2121 = vmatprep.subr.bf16.mxu0 %v2061
        %2122 = vmatpush1.bf16.xpose.msra.mxu0 %v2060
        %2123 = vmatprep.subr.bf16.mxu0 %v2065
        %2124 = vmatpush1.bf16.xpose.msra.mxu0 %v2064
        %2125 = vmatprep.subr.bf16.mxu0 %v2069
        %2126 = vmatpush1.bf16.xpose.msra.mxu0 %v2068
        %2127 = vmatprep.subr.bf16.mxu0 0
        %2128 = vmatpush1.bf16.xpose.msra.mxu0 0
        %2129 = vmatprep.subr.bf16.mxu0 0
        %2130 = vmatpush1.bf16.xpose.msra.mxu0 0
        %2131 = vmatprep.subr.bf16.mxu0 0
        %2132 = vmatpush1.bf16.xpose.msra.mxu0 0
        %2133 = vmatprep.subr.bf16.mxu0 0
        %2134 = vmatpush1.bf16.xpose.msra.mxu0 0
        %2135 = vmatprep.subr.bf16.mxu0 0
        %2136 = vmatpush1.bf16.xpose.msra.mxu0 0
        %2137 = vmatprep.subr.bf16.mxu0 0
        %2138 = vmatpush1.bf16.xpose.msra.mxu0 0
        %2139 = vmatprep.subr.bf16.mxu0 0
        %2140 = vmatpush1.bf16.xpose.msra.mxu0 0
        %2141 = vmatprep.subr.bf16.mxu0 0
        %2142 = vmatpush1.bf16.xpose.msra.mxu0 0
        %2143 = vmatprep.mubr.bf16.mxu0 %v2037
        %2144 = vmatmul.mubr.bf16.gmra.mrb[0].mxu0 %v2036
        %v2145 = vpop.f32.mrb[0].mxu0
        %v2146 = vadd.f32 %v2105, %v2145
        %v2147 = vpop.f32.mrb[0].mxu0
        %v2148 = vpop.f32.mrb[0].mxu0
        %v2149 = vadd.f32 %v2108, %v2148
        %v2150 = vpop.f32.mrb[0].mxu0
        %2151 = vdwg.mxu0
        %v2152 = vpack.c.bf16 %v1900, %v1896
        %v2153 = vpack.c.bf16 %v1901, %v1897
        %v2154 = vpack.c.bf16 %v1902, %v1898
        %v2155 = vpack.c.bf16 %v1903, %v1899
        %v2156 = vpack.c.bf16 %v1972, %v1968
        %v2157 = vpack.c.bf16 %v1973, %v1969
        %v2158 = vpack.c.bf16 %v1974, %v1970
        %v2159 = vpack.c.bf16 %v1975, %v1971
        %v2160 = vpack.c.bf16 %v1980, %v1976
        %v2161 = vpack.c.bf16 %v1981, %v1977
        %v2162 = vpack.c.bf16 %v1982, %v1978
        %v2163 = vpack.c.bf16 %v1983, %v1979
        %v2164 = vpack.c.bf16 %v1988, %v1984
        %v2165 = vpack.c.bf16 %v1989, %v1985
        %v2166 = vpack.c.bf16 %v1990, %v1986
        %v2167 = vpack.c.bf16 %v1991, %v1987
        %v2168 = vpack.c.bf16 %v1996, %v1992
        %v2169 = vpack.c.bf16 %v1997, %v1993
        %v2170 = vpack.c.bf16 %v1998, %v1994
        %v2171 = vpack.c.bf16 %v1999, %v1995
        %v2172 = vpack.c.bf16 %v2004, %v2000
        %v2173 = vpack.c.bf16 %v2005, %v2001
        %v2174 = vpack.c.bf16 %v2006, %v2002
        %v2175 = vpack.c.bf16 %v2007, %v2003
        %v2176 = vpack.c.bf16 %v2012, %v2008
        %v2177 = vpack.c.bf16 %v2013, %v2009
        %v2178 = vpack.c.bf16 %v2014, %v2010
        %v2179 = vpack.c.bf16 %v2015, %v2011
        %v2180 = vpack.c.bf16 %v2020, %v2016
        %v2181 = vpack.c.bf16 %v2021, %v2017
        %v2182 = vpack.c.bf16 %v2022, %v2018
        %v2183 = vpack.c.bf16 %v2023, %v2019
        %v2184 = vpack.c.bf16 %v2028, %v2024
        %v2185 = vpack.c.bf16 %v2029, %v2025
        %v2186 = vpack.c.bf16 %v2030, %v2026
        %v2187 = vpack.c.bf16 %v2031, %v2027
        %2188 = vmatprep.subr.bf16.mxu0 %v2157
        %2189 = vmatpush1.bf16.xpose.msra.mxu0 %v2156
        %2190 = vmatprep.subr.bf16.mxu0 %v2161
        %2191 = vmatpush1.bf16.xpose.msra.mxu0 %v2160
        %2192 = vmatprep.subr.bf16.mxu0 %v2165
        %2193 = vmatpush1.bf16.xpose.msra.mxu0 %v2164
        %2194 = vmatprep.subr.bf16.mxu0 %v2169
        %2195 = vmatpush1.bf16.xpose.msra.mxu0 %v2168
        %2196 = vmatprep.subr.bf16.mxu0 %v2173
        %2197 = vmatpush1.bf16.xpose.msra.mxu0 %v2172
        %2198 = vmatprep.subr.bf16.mxu0 %v2177
        %2199 = vmatpush1.bf16.xpose.msra.mxu0 %v2176
        %2200 = vmatprep.subr.bf16.mxu0 %v2181
        %2201 = vmatpush1.bf16.xpose.msra.mxu0 %v2180
        %2202 = vmatprep.subr.bf16.mxu0 %v2185
        %2203 = vmatpush1.bf16.xpose.msra.mxu0 %v2184
        %2204 = vmatprep.subr.bf16.mxu0 0
        %2205 = vmatpush1.bf16.xpose.msra.mxu0 0
        %2206 = vmatprep.subr.bf16.mxu0 0
        %2207 = vmatpush1.bf16.xpose.msra.mxu0 0
        %2208 = vmatprep.subr.bf16.mxu0 0
        %2209 = vmatpush1.bf16.xpose.msra.mxu0 0
        %2210 = vmatprep.subr.bf16.mxu0 0
        %2211 = vmatpush1.bf16.xpose.msra.mxu0 0
        %2212 = vmatprep.subr.bf16.mxu0 0
        %2213 = vmatpush1.bf16.xpose.msra.mxu0 0
        %2214 = vmatprep.subr.bf16.mxu0 0
        %2215 = vmatpush1.bf16.xpose.msra.mxu0 0
        %2216 = vmatprep.subr.bf16.mxu0 0
        %2217 = vmatpush1.bf16.xpose.msra.mxu0 0
        %2218 = vmatprep.subr.bf16.mxu0 0
        %2219 = vmatpush1.bf16.xpose.msra.mxu0 0
        %2220 = vmatprep.mubr.bf16.mxu0 %v2153
        %2221 = vmatmul.mubr.bf16.gmra.mrb[0].mxu0 %v2152
        %v2222 = vpop.f32.mrb[0].mxu0
        %v2223 = vadd.f32 0.0, %v2222
        %v2224 = vpop.f32.mrb[0].mxu0
        %v2225 = vpop.f32.mrb[0].mxu0
        %v2226 = vadd.f32 0.0, %v2225
        %v2227 = vpop.f32.mrb[0].mxu0
        %2228 = vdwg.mxu0
        %2229 = vmatprep.subr.bf16.mxu0 %v2159
        %2230 = vmatpush1.bf16.xpose.msra.mxu0 %v2158
        %2231 = vmatprep.subr.bf16.mxu0 %v2163
        %2232 = vmatpush1.bf16.xpose.msra.mxu0 %v2162
        %2233 = vmatprep.subr.bf16.mxu0 %v2167
        %2234 = vmatpush1.bf16.xpose.msra.mxu0 %v2166
        %2235 = vmatprep.subr.bf16.mxu0 %v2171
        %2236 = vmatpush1.bf16.xpose.msra.mxu0 %v2170
        %2237 = vmatprep.subr.bf16.mxu0 %v2175
        %2238 = vmatpush1.bf16.xpose.msra.mxu0 %v2174
        %2239 = vmatprep.subr.bf16.mxu0 %v2179
        %2240 = vmatpush1.bf16.xpose.msra.mxu0 %v2178
        %2241 = vmatprep.subr.bf16.mxu0 %v2183
        %2242 = vmatpush1.bf16.xpose.msra.mxu0 %v2182
        %2243 = vmatprep.subr.bf16.mxu0 %v2187
        %2244 = vmatpush1.bf16.xpose.msra.mxu0 %v2186
        %2245 = vmatprep.subr.bf16.mxu0 0
        %2246 = vmatpush1.bf16.xpose.msra.mxu0 0
        %2247 = vmatprep.subr.bf16.mxu0 0
        %2248 = vmatpush1.bf16.xpose.msra.mxu0 0
        %2249 = vmatprep.subr.bf16.mxu0 0
        %2250 = vmatpush1.bf16.xpose.msra.mxu0 0
        %2251 = vmatprep.subr.bf16.mxu0 0
        %2252 = vmatpush1.bf16.xpose.msra.mxu0 0
        %2253 = vmatprep.subr.bf16.mxu0 0
        %2254 = vmatpush1.bf16.xpose.msra.mxu0 0
        %2255 = vmatprep.subr.bf16.mxu0 0
        %2256 = vmatpush1.bf16.xpose.msra.mxu0 0
        %2257 = vmatprep.subr.bf16.mxu0 0
        %2258 = vmatpush1.bf16.xpose.msra.mxu0 0
        %2259 = vmatprep.subr.bf16.mxu0 0
        %2260 = vmatpush1.bf16.xpose.msra.mxu0 0
        %2261 = vmatprep.mubr.bf16.mxu0 %v2155
        %2262 = vmatmul.mubr.bf16.gmra.mrb[0].mxu0 %v2154
        %v2263 = vpop.f32.mrb[0].mxu0
        %v2264 = vadd.f32 %v2223, %v2263
        %v2265 = vpop.f32.mrb[0].mxu0
        %v2266 = vpop.f32.mrb[0].mxu0
        %v2267 = vadd.f32 %v2226, %v2266
        %v2268 = vpop.f32.mrb[0].mxu0
        %2269 = vdwg.mxu0
        %v2270 = vadd.f32 %v1851, %v1896
        %v2271 = vadd.f32 %v1852, %v1897
        %v2272 = vadd.f32 %v1853, %v1898
        %v2273 = vadd.f32 %v1854, %v1899
        %v2274 = vadd.f32 %v1855, %v1900
        %v2275 = vadd.f32 %v1856, %v1901
        %v2276 = vadd.f32 %v1857, %v1902
        %v2277 = vadd.f32 %v1858, %v1903
        %v2278 = vpack.c.bf16 %v2274, %v2270
        %v2279 = vpack.c.bf16 %v2275, %v2271
        %v2280 = vpack.c.bf16 %v2276, %v2272
        %v2281 = vpack.c.bf16 %v2277, %v2273
        %v2282 = vadd.f32 %v1904, %v1968
        %v2283 = vadd.f32 %v1905, %v1969
        %v2284 = vadd.f32 %v1906, %v1970
        %v2285 = vadd.f32 %v1907, %v1971
        %v2286 = vadd.f32 %v1908, %v1972
        %v2287 = vadd.f32 %v1909, %v1973
        %v2288 = vadd.f32 %v1910, %v1974
        %v2289 = vadd.f32 %v1911, %v1975
        %v2290 = vadd.f32 %v1912, %v1976
        %v2291 = vadd.f32 %v1913, %v1977
        %v2292 = vadd.f32 %v1914, %v1978
        %v2293 = vadd.f32 %v1915, %v1979
        %v2294 = vadd.f32 %v1916, %v1980
        %v2295 = vadd.f32 %v1917, %v1981
        %v2296 = vadd.f32 %v1918, %v1982
        %v2297 = vadd.f32 %v1919, %v1983
        %v2298 = vadd.f32 %v1920, %v1984
        %v2299 = vadd.f32 %v1921, %v1985
        %v2300 = vadd.f32 %v1922, %v1986
        %v2301 = vadd.f32 %v1923, %v1987
        %v2302 = vadd.f32 %v1924, %v1988
        %v2303 = vadd.f32 %v1925, %v1989
        %v2304 = vadd.f32 %v1926, %v1990
        %v2305 = vadd.f32 %v1927, %v1991
        %v2306 = vadd.f32 %v1928, %v1992
        %v2307 = vadd.f32 %v1929, %v1993
        %v2308 = vadd.f32 %v1930, %v1994
        %v2309 = vadd.f32 %v1931, %v1995
        %v2310 = vadd.f32 %v1932, %v1996
        %v2311 = vadd.f32 %v1933, %v1997
        %v2312 = vadd.f32 %v1934, %v1998
        %v2313 = vadd.f32 %v1935, %v1999
        %v2314 = vadd.f32 %v1936, %v2000
        %v2315 = vadd.f32 %v1937, %v2001
        %v2316 = vadd.f32 %v1938, %v2002
        %v2317 = vadd.f32 %v1939, %v2003
        %v2318 = vadd.f32 %v1940, %v2004
        %v2319 = vadd.f32 %v1941, %v2005
        %v2320 = vadd.f32 %v1942, %v2006
        %v2321 = vadd.f32 %v1943, %v2007
        %v2322 = vadd.f32 %v1944, %v2008
        %v2323 = vadd.f32 %v1945, %v2009
        %v2324 = vadd.f32 %v1946, %v2010
        %v2325 = vadd.f32 %v1947, %v2011
        %v2326 = vadd.f32 %v1948, %v2012
        %v2327 = vadd.f32 %v1949, %v2013
        %v2328 = vadd.f32 %v1950, %v2014
        %v2329 = vadd.f32 %v1951, %v2015
        %v2330 = vadd.f32 %v1952, %v2016
        %v2331 = vadd.f32 %v1953, %v2017
        %v2332 = vadd.f32 %v1954, %v2018
        %v2333 = vadd.f32 %v1955, %v2019
        %v2334 = vadd.f32 %v1956, %v2020
        %v2335 = vadd.f32 %v1957, %v2021
        %v2336 = vadd.f32 %v1958, %v2022
        %v2337 = vadd.f32 %v1959, %v2023
        %v2338 = vadd.f32 %v1960, %v2024
        %v2339 = vadd.f32 %v1961, %v2025
        %v2340 = vadd.f32 %v1962, %v2026
        %v2341 = vadd.f32 %v1963, %v2027
        %v2342 = vadd.f32 %v1964, %v2028
        %v2343 = vadd.f32 %v1965, %v2029
        %v2344 = vadd.f32 %v1966, %v2030
        %v2345 = vadd.f32 %v1967, %v2031
        %v2346 = vpack.c.bf16 %v2286, %v2282
        %v2347 = vpack.c.bf16 %v2287, %v2283
        %v2348 = vpack.c.bf16 %v2288, %v2284
        %v2349 = vpack.c.bf16 %v2289, %v2285
        %v2350 = vpack.c.bf16 %v2294, %v2290
        %v2351 = vpack.c.bf16 %v2295, %v2291
        %v2352 = vpack.c.bf16 %v2296, %v2292
        %v2353 = vpack.c.bf16 %v2297, %v2293
        %v2354 = vpack.c.bf16 %v2302, %v2298
        %v2355 = vpack.c.bf16 %v2303, %v2299
        %v2356 = vpack.c.bf16 %v2304, %v2300
        %v2357 = vpack.c.bf16 %v2305, %v2301
        %v2358 = vpack.c.bf16 %v2310, %v2306
        %v2359 = vpack.c.bf16 %v2311, %v2307
        %v2360 = vpack.c.bf16 %v2312, %v2308
        %v2361 = vpack.c.bf16 %v2313, %v2309
        %v2362 = vpack.c.bf16 %v2318, %v2314
        %v2363 = vpack.c.bf16 %v2319, %v2315
        %v2364 = vpack.c.bf16 %v2320, %v2316
        %v2365 = vpack.c.bf16 %v2321, %v2317
        %v2366 = vpack.c.bf16 %v2326, %v2322
        %v2367 = vpack.c.bf16 %v2327, %v2323
        %v2368 = vpack.c.bf16 %v2328, %v2324
        %v2369 = vpack.c.bf16 %v2329, %v2325
        %v2370 = vpack.c.bf16 %v2334, %v2330
        %v2371 = vpack.c.bf16 %v2335, %v2331
        %v2372 = vpack.c.bf16 %v2336, %v2332
        %v2373 = vpack.c.bf16 %v2337, %v2333
        %v2374 = vpack.c.bf16 %v2342, %v2338
        %v2375 = vpack.c.bf16 %v2343, %v2339
        %v2376 = vpack.c.bf16 %v2344, %v2340
        %v2377 = vpack.c.bf16 %v2345, %v2341
        %2378 = vmatprep.subr.bf16.mxu0 %v2347
        %2379 = vmatpush1.bf16.xpose.msra.mxu0 %v2346
        %2380 = vmatprep.subr.bf16.mxu0 %v2351
        %2381 = vmatpush1.bf16.xpose.msra.mxu0 %v2350
        %2382 = vmatprep.subr.bf16.mxu0 %v2355
        %2383 = vmatpush1.bf16.xpose.msra.mxu0 %v2354
        %2384 = vmatprep.subr.bf16.mxu0 %v2359
        %2385 = vmatpush1.bf16.xpose.msra.mxu0 %v2358
        %2386 = vmatprep.subr.bf16.mxu0 %v2363
        %2387 = vmatpush1.bf16.xpose.msra.mxu0 %v2362
        %2388 = vmatprep.subr.bf16.mxu0 %v2367
        %2389 = vmatpush1.bf16.xpose.msra.mxu0 %v2366
        %2390 = vmatprep.subr.bf16.mxu0 %v2371
        %2391 = vmatpush1.bf16.xpose.msra.mxu0 %v2370
        %2392 = vmatprep.subr.bf16.mxu0 %v2375
        %2393 = vmatpush1.bf16.xpose.msra.mxu0 %v2374
        %2394 = vmatprep.subr.bf16.mxu0 0
        %2395 = vmatpush1.bf16.xpose.msra.mxu0 0
        %2396 = vmatprep.subr.bf16.mxu0 0
        %2397 = vmatpush1.bf16.xpose.msra.mxu0 0
        %2398 = vmatprep.subr.bf16.mxu0 0
        %2399 = vmatpush1.bf16.xpose.msra.mxu0 0
        %2400 = vmatprep.subr.bf16.mxu0 0
        %2401 = vmatpush1.bf16.xpose.msra.mxu0 0
        %2402 = vmatprep.subr.bf16.mxu0 0
        %2403 = vmatpush1.bf16.xpose.msra.mxu0 0
        %2404 = vmatprep.subr.bf16.mxu0 0
        %2405 = vmatpush1.bf16.xpose.msra.mxu0 0
        %2406 = vmatprep.subr.bf16.mxu0 0
        %2407 = vmatpush1.bf16.xpose.msra.mxu0 0
        %2408 = vmatprep.subr.bf16.mxu0 0
        %2409 = vmatpush1.bf16.xpose.msra.mxu0 0
        %2410 = vmatprep.mubr.bf16.mxu0 %v2279
        %2411 = vmatmul.mubr.bf16.gmra.mrb[0].mxu0 %v2278
        %v2412 = vpop.f32.mrb[0].mxu0
        %v2413 = vadd.f32 0.0, %v2412
        %v2414 = vpop.f32.mrb[0].mxu0
        %v2415 = vpop.f32.mrb[0].mxu0
        %v2416 = vadd.f32 0.0, %v2415
        %v2417 = vpop.f32.mrb[0].mxu0
        %2418 = vdwg.mxu0
        %2419 = vmatprep.subr.bf16.mxu0 %v2349
        %2420 = vmatpush1.bf16.xpose.msra.mxu0 %v2348
        %2421 = vmatprep.subr.bf16.mxu0 %v2353
        %2422 = vmatpush1.bf16.xpose.msra.mxu0 %v2352
        %2423 = vmatprep.subr.bf16.mxu0 %v2357
        %2424 = vmatpush1.bf16.xpose.msra.mxu0 %v2356
        %2425 = vmatprep.subr.bf16.mxu0 %v2361
        %2426 = vmatpush1.bf16.xpose.msra.mxu0 %v2360
        %2427 = vmatprep.subr.bf16.mxu0 %v2365
        %2428 = vmatpush1.bf16.xpose.msra.mxu0 %v2364
        %2429 = vmatprep.subr.bf16.mxu0 %v2369
        %2430 = vmatpush1.bf16.xpose.msra.mxu0 %v2368
        %2431 = vmatprep.subr.bf16.mxu0 %v2373
        %2432 = vmatpush1.bf16.xpose.msra.mxu0 %v2372
        %2433 = vmatprep.subr.bf16.mxu0 %v2377
        %2434 = vmatpush1.bf16.xpose.msra.mxu0 %v2376
        %2435 = vmatprep.subr.bf16.mxu0 0
        %2436 = vmatpush1.bf16.xpose.msra.mxu0 0
        %2437 = vmatprep.subr.bf16.mxu0 0
        %2438 = vmatpush1.bf16.xpose.msra.mxu0 0
        %2439 = vmatprep.subr.bf16.mxu0 0
        %2440 = vmatpush1.bf16.xpose.msra.mxu0 0
        %2441 = vmatprep.subr.bf16.mxu0 0
        %2442 = vmatpush1.bf16.xpose.msra.mxu0 0
        %2443 = vmatprep.subr.bf16.mxu0 0
        %2444 = vmatpush1.bf16.xpose.msra.mxu0 0
        %2445 = vmatprep.subr.bf16.mxu0 0
        %2446 = vmatpush1.bf16.xpose.msra.mxu0 0
        %2447 = vmatprep.subr.bf16.mxu0 0
        %2448 = vmatpush1.bf16.xpose.msra.mxu0 0
        %2449 = vmatprep.subr.bf16.mxu0 0
        %2450 = vmatpush1.bf16.xpose.msra.mxu0 0
        %2451 = vmatprep.mubr.bf16.mxu0 %v2281
        %2452 = vmatmul.mubr.bf16.gmra.mrb[0].mxu0 %v2280
        %v2453 = vpop.f32.mrb[0].mxu0
        %v2454 = vadd.f32 %v2413, %v2453
        %v2455 = vpop.f32.mrb[0].mxu0
        %v2456 = vpop.f32.mrb[0].mxu0
        %v2457 = vadd.f32 %v2416, %v2456
        %v2458 = vpop.f32.mrb[0].mxu0
        %2459 = vdwg.mxu0
        %v2460 = vsub.f32 %v2146, %v2264
        %v2461 = vsub.f32 %v2149, %v2267
        %v2463 = vlaneseq
        %v2464 = vshrl.u32 %v2463, 7
        %v2465 = vsub.s32 0, %v2464
        %v2466 = vrot.slane %v2032, %v2465
        %v2468 = vadd.f32 %v2460, %v2466
        %v2469 = vadd.f32 %v2461, %v2466
        %v2470 = vsub.f32 %v2454, %v2146
        %v2471 = vsub.f32 %v2457, %v2149
        %v2472 = vsub.f32 %v2470, %v2264
        %v2473 = vsub.f32 %v2471, %v2267
        %v2475 = vlaneseq
        %v2476 = vshrl.u32 %v2475, 7
        %v2477 = vsub.s32 0, %v2476
        %v2478 = vrot.slane %v2033, %v2477
        %v2480 = vadd.f32 %v2472, %v2478
        %v2481 = vadd.f32 %v2473, %v2478
        %v2482 = vadd.f32 %v2468, %v1184
        %v2483 = vadd.f32 %v2469, %v1185
        %2484 = vst [vmem:[%s16] sm:$0xff] %v2482
        %2485 = vst [vmem:[%s16 + $0x8] sm:$0xff] %v2483
        %v2486 = vadd.f32 %v2480, %v1198
        %v2487 = vadd.f32 %v2481, %v1199
        %2488 = vst [vmem:[%s17] sm:$0xff] %v2486
        %2489 = vst [vmem:[%s17 + $0x8] sm:$0xff] %v2487
        // Predicated region
        $region105: #{language_mixer_forward.3} parent=83 // pred_check
          %p2490 = pneg %p447
        $region106: #{language_mixer_forward.3} parent=83 // pred_check_branch
          %2492 = sbr.rel (%p2490) target = $region108
        $region107: #{language_mixer_forward.3} parent=83 // pred_region
          _
        $region108: #{language_mixer_forward.3} parent=83 // pred_fallthru
          _
        // Predicated region
        $region109: #{language_mixer_forward.3} parent=83 // pred_check
          %p2493 = pneg %p468
        $region110: #{language_mixer_forward.3} parent=83 // pred_check_branch
          %2495 = sbr.rel (%p2493) target = $region112
        $region111: #{language_mixer_forward.3} parent=83 // pred_region
          _
        $region112: #{language_mixer_forward.3} parent=83 // pred_fallthru
          _
        // Predicated region
        $region113: #{language_mixer_forward.3} parent=83 // pred_check
          %p2496 = pneg %p447
        $region114: #{language_mixer_forward.3} parent=83 // pred_check_branch
          %2498 = sbr.rel (%p2496) target = $region116
        $region115: #{language_mixer_forward.3} parent=83 // pred_region
          _
        $region116: #{language_mixer_forward.3} parent=83 // pred_fallthru
          _
        // Predicated region
        $region117: #{language_mixer_forward.3} parent=83 // pred_check
          %p2499 = pneg %p468
        $region118: #{language_mixer_forward.3} parent=83 // pred_check_branch
          %2501 = sbr.rel (%p2499) target = $region120
        $region119: #{language_mixer_forward.3} parent=83 // pred_region
          _
        $region120: #{language_mixer_forward.3} parent=83 // pred_fallthru
          _
      $region84: #{language_mixer_forward.3} parent=5 // pred_fallthru
        _
      %p2502 = scmp.le.s32.totalorder 2, %s33
      // Predicated region
      $region121: #{language_mixer_forward.3} parent=5 // pred_check
        %p2503 = pneg %p2502
      $region122: #{language_mixer_forward.3} parent=5 // pred_check_branch
        %2505 = sbr.rel (%p2503) target = $region124
      $region123: #{language_mixer_forward.3} parent=5 // pred_region
        %s2506 = ssub.s32 %s33, 2
      $region124: #{language_mixer_forward.3} parent=5 // pred_fallthru
        _
    $region6: #{language_mixer_forward.3} parent=1 // loop_footer
      %s37 = sadd.s32 1, %s33
    $region7: #{language_mixer_forward.3} parent=1 // loop_footer_branch
      %32 = sbr.rel target = $region3
    $region8: #{language_mixer_forward.3} parent=1 // loop_exit
      _
    %2507 = vsyncpa [#allocation3], 1
    %s2508 = scalar_lea.sflag [#allocation3], 1
    %2509 = vsyncpa %s2508, 1
    %2510 = vsyncpa [#allocation5], 1
    %s2511 = scalar_lea.sflag [#allocation5], 1
    %2512 = vsyncpa %s2511, 1
    %2513 = vsyncpa [#allocation8], 1
    %s2514 = scalar_lea.sflag [#allocation8], 1
    %2515 = vsyncpa %s2514, 1

</llo_original>
